<compile_context>
chip_gen: v7x
topology: tpu7x:2x2x1
jax: 0.10.0
libtpu: 0.0.40
codegen_flags: <defaults>
</compile_context>

<pallas_src>
import functools

import jax
import jax.numpy as jnp
import numpy as np
from jax.experimental import pallas as pl
from jax.experimental.pallas import tpu as pltpu


def _round_up(x, m):
    return (x + m - 1) // m * m


def _chip_defaults():
    """(default tile in tokens, vmem_limit_bytes), sized from physical VMEM.

    bf16 qkv/attn_exp + f32 softmax temporaries cost ~30-40 KiB per packed
    128-lane row: ~15-20 MiB at 1024 tokens, ~30-40 MiB at 2048 tokens.
    """
    try:
        cap = int(pltpu.get_tpu_info().vmem_capacity_bytes)
    except Exception:
        cap = 64 << 20          # conservative (v7x per-TensorCore VMEM)
    tile_tokens = 2048 if cap >= (96 << 20) else 1024
    vmem_limit = int(min(cap * 3 // 4, 96 << 20))
    return tile_tokens, vmem_limit


def _build_expanded_params(wq, wk, wv, wp, bp, num_heads, head_dim, pack, scale):
    """Fold scale into Wq, pre-expand Wq/Wk/Wv for the shuffle-free per-token
    head attention, and block-diagonalise everything so P tokens share one
    128-lane row.  Packed column layouts (per packed row of P tokens):

      q/k lanes: [d, g, t, h]   width Dh*P*H*H   (g broadcast for Q, h for K)
      v   lanes: [g, t, h, e]   width P*H*H*Dh
      scores   : [g, t, h]      width P*H*H      (softmax over g)
      y        : [t, h, e]      width P*dim      (== packed token layout)

    so the score computation is a VPU multiply + tree sum over d, the softmax
    reduce/broadcast over g is a stride-(P*H) roll butterfly that never mixes
    tokens t, and attn@v is a multiply + tree sum over g.
    """
    H, Dh, P = num_heads, head_dim, pack
    dim = H * Dh
    wq = np.asarray(wq, np.float32) * np.float32(scale)
    wk = np.asarray(wk, np.float32)
    wv = np.asarray(wv, np.float32)
    wp = np.asarray(wp, np.float32)
    bp = np.asarray(bp, np.float32).reshape(dim)

    wq3 = wq.reshape(dim, H, Dh)      # [c, h, d]
    wk3 = wk.reshape(dim, H, Dh)      # [c, g, d]
    wv3 = wv.reshape(dim, H, Dh)      # [c, g, e]
    eye_p = np.eye(P, dtype=np.float32)
    eye_h = np.eye(H, dtype=np.float32)

    # Per-token expansions.
    q_tok = np.broadcast_to(wq3.transpose(0, 2, 1)[:, :, None, :],
                            (dim, Dh, H, H))          # [c,d,g,h] = s*Wq[c,h*Dh+d]
    k_tok = np.broadcast_to(wk3.transpose(0, 2, 1)[:, :, :, None],
                            (dim, Dh, H, H))          # [c,d,g,h] =   Wk[c,g*Dh+d]
    v_tok = np.broadcast_to(wv3[:, :, None, :],
                            (dim, H, H, Dh))          # [c,g,h,e] =   Wv[c,g*Dh+e]

    # Block-diagonal packing over the token slot t (rows [t', c], cols as above).
    wq_pk = np.einsum('st,cdgh->scdgth', eye_p, q_tok).reshape(P * dim, Dh * P * H * H)
    wk_pk = np.einsum('st,cdgh->scdgth', eye_p, k_tok).reshape(P * dim, Dh * P * H * H)
    wv_pk = np.einsum('st,cghe->scgthe', eye_p, v_tok).reshape(P * dim, P * H * H * Dh)
    w_fused = np.concatenate([wq_pk, wk_pk, wv_pk], axis=1)

    # Attention broadcast matrix: score lane (g,t,h) -> v lane (g,t,h,e).
    a_exp = np.einsum('gG,tT,hH,e->gthGTHe', eye_h, eye_p, eye_h,
                      np.ones((Dh,), np.float32)).reshape(P * H * H, P * H * H * Dh)

    # Block-diagonal output projection and packed bias.
    wp_pk = np.einsum('st,co->scto', eye_p, wp).reshape(P * dim, P * dim)
    bp_pk = np.tile(bp, P).reshape(1, P * dim)
    return w_fused, a_exp, wp_pk, bp_pk


def _sum_chunks(x, chunk_width):
    """Sum a lane-dense slab over its leading equal-width contiguous chunks
    (power-of-two chunk count) using only static lane slices."""
    w = x.shape[-1]
    n = w // chunk_width
    assert w % chunk_width == 0 and n & (n - 1) == 0
    while w > chunk_width:
        w //= 2
        x = x[:, :w] + x[:, w:]
    return x


def _block_reduce_bcast(x, stride, op):
    """All-reduce with `op` over the stride-`stride` lane cosets of the last
    axis and broadcast the result back to every coset member, via an XLU roll
    butterfly (the rolls hide under MXU/VPU work).  Every shift is a multiple
    of `stride`, so lanes only combine within their own coset — here the g
    axis of the [g, t, h] score layout, never across packed tokens t or query
    heads h.  Requires (width // stride) to be a power of two."""
    n = x.shape[-1]
    ncoset = n // stride
    assert n % stride == 0 and ncoset & (ncoset - 1) == 0
    shift = n // 2
    while shift >= stride:
        x = op(x, pltpu.roll(x, shift, axis=1))
        shift //= 2
    return x


def _self_attention_kernel(x_ref, wf_ref, ae_ref, wp_ref, bp_ref, o_ref, *,
                           num_heads, head_dim, pack):
    H, Dh, P = num_heads, head_dim, pack
    hh = P * H * H            # score lanes per packed row: [g, t, h]
    nqk = Dh * hh             # q/k expanded width:         [d, g, t, h]
    dim_p = P * H * Dh        # packed token width:         [t, h, e]

    # Single fused (block-diagonal, pre-expanded) QKV projection on the MXU:
    # bf16 inputs, f32 accumulation, big slab stored bf16 (cast on store).
    x = x_ref[...].astype(jnp.bfloat16)
    qkv = jnp.dot(x, wf_ref[...],
                  preferred_element_type=jnp.float32).astype(jnp.bfloat16)

    q_exp = qkv[:, :nqk].astype(jnp.float32)
    k_exp = qkv[:, nqk:2 * nqk].astype(jnp.float32)
    v_exp = qkv[:, 2 * nqk:].astype(jnp.float32)

    # Scores s[:, g*(P*H) + t*H + h] = scale * sum_d q_t[h,d]*k_t[g,d]
    # (scale pre-folded into the Q weights): lane-dense VPU multiply plus a
    # static-slice tree sum over the Dh leading chunks.  f32 throughout.
    s = _sum_chunks(q_exp * k_exp, hh)

    # Numerically stable softmax over g (the attended head axis) in f32;
    # max / denominator reduced+broadcast with stride-(P*H) roll butterflies.
    s_max = _block_reduce_bcast(s, P * H, jnp.maximum)
    p = jnp.exp(s - s_max)
    denom = _block_reduce_bcast(p, P * H, jnp.add)
    attn = p * pl.reciprocal(denom, approx=True)

    # attn @ v: broadcast attn over e with a tiny 0/1 matmul (stored bf16),
    # then elementwise multiply + tree sum over the H leading chunks (g).
    attn_exp = jnp.dot(attn.astype(jnp.bfloat16), ae_ref[...],
                       preferred_element_type=jnp.float32).astype(jnp.bfloat16)
    y = _sum_chunks(attn_exp.astype(jnp.float32) * v_exp, dim_p)

    # Block-diagonal output projection (with bias); store in output dtype.
    out = jnp.dot(y.astype(jnp.bfloat16), wp_ref[...],
                  preferred_element_type=jnp.float32) + bp_ref[...]
    o_ref[...] = out.astype(o_ref.dtype)


def self_attention(x, wq, wk, wv, wp, bp, *, num_heads, qk_scale=None,
                   tile_m=None):
    """Pallas forward of SelfAttention.  Weights stored as (in, out): y = x@W+b."""
    B, N, T, dim = x.shape
    H = num_heads
    assert dim % H == 0, "dim must be divisible by num_heads"
    Dh = dim // H
    assert H & (H - 1) == 0 and Dh & (Dh - 1) == 0, \
        "num_heads and head_dim must be powers of two"
    scale = float(qk_scale) if qk_scale is not None else Dh ** (-0.5)
    M = B * N * T

    # Pack P tokens per 128-lane row when dim < 128 (lane-dense I/O + softmax).
    P = 128 // dim if (dim < 128 and 128 % dim == 0) else 1

    default_tile, vmem_limit = _chip_defaults()
    if tile_m is None:
        # Aim for >= 8 grid steps (>= 3-4 per v7x TensorCore) when M allows.
        tile = min(default_tile, _round_up(pl.cdiv(M, 8), 8 * P))
    else:
        tile = int(tile_m)
    tile = max(_round_up(tile, 8 * P), 8 * P)
    m_pad = _round_up(M, tile)

    # One-time host-side parameter preprocessing (cached in a real model).
    w_fused, a_exp, wp_pk, bp_pk = _build_expanded_params(
        wq, wk, wv, wp, bp, H, Dh, P, scale)
    w_fused = jnp.asarray(w_fused, jnp.bfloat16)
    a_exp = jnp.asarray(a_exp, jnp.bfloat16)
    wp_pk = jnp.asarray(wp_pk, jnp.bfloat16)
    bp_pk = jnp.asarray(bp_pk, jnp.float32)

    # Native dtype in/out (cast to bf16 happens in-kernel); pad & pack tokens.
    x2d = x.reshape(M, dim)
    if m_pad != M:
        x2d = jnp.pad(x2d, ((0, m_pad - M), (0, 0)))
    xp = x2d.reshape(m_pad // P, P * dim)

    rows_tile = tile // P
    dim_p = P * dim
    nqk_p = Dh * P * H * H
    nv_p = P * H * H * Dh
    nf_p = 2 * nqk_p + nv_p
    rows = m_pad // P

    kernel = functools.partial(_self_attention_kernel,
                               num_heads=H, head_dim=Dh, pack=P)

    flops = (2 * rows * dim_p * nf_p            # fused expanded QKV matmul
             + 2 * rows * (P * H * H) * nv_p    # attention expansion matmul
             + 2 * rows * dim_p * dim_p         # output projection
             + 6 * rows * nv_p)                 # elementwise attention math
    bytes_accessed = (rows * dim_p * int(jnp.dtype(x.dtype).itemsize) * 2
                      + (w_fused.size + a_exp.size + wp_pk.size) * 2
                      + dim_p * 4)
    cost = pl.CostEstimate(flops=int(flops),
                           transcendentals=int(rows * P * H * H),
                           bytes_accessed=int(bytes_accessed))

    out_p = pl.pallas_call(
        kernel,
        out_shape=jax.ShapeDtypeStruct((rows, dim_p), x.dtype),
        grid_spec=pltpu.PrefetchScalarGridSpec(
            num_scalar_prefetch=0,
            grid=(m_pad // tile,),
            in_specs=[
                pl.BlockSpec((rows_tile, dim_p), lambda i: (i, 0)),   # packed x tile
                pl.BlockSpec((dim_p, nf_p), lambda i: (0, 0)),        # fused QKV weights (bf16)
                pl.BlockSpec((P * H * H, nv_p), lambda i: (0, 0)),    # attn expansion (bf16)
                pl.BlockSpec((dim_p, dim_p), lambda i: (0, 0)),       # Wproj block-diag (bf16)
                pl.BlockSpec((1, dim_p), lambda i: (0, 0)),           # bproj packed (f32)
            ],
            out_specs=pl.BlockSpec((rows_tile, dim_p), lambda i: (i, 0)),
        ),
        compiler_params=pltpu.CompilerParams(
            dimension_semantics=("parallel",),
            vmem_limit_bytes=vmem_limit),
        cost_estimate=cost,
    )(xp, w_fused, a_exp, wp_pk, bp_pk)

    return out_p.reshape(m_pad, dim)[:M].reshape(B, N, T, dim)


def self_attention_reference(x, wq, wk, wv, wp, bp, *, num_heads, qk_scale=None):
    """Pure-JAX f32 mirror of the PyTorch forward (eval mode, no dropout)."""
    B, N, T, dim = x.shape
    H = num_heads
    Dh = dim // H
    scale = qk_scale if qk_scale is not None else Dh ** (-0.5)
    xf = x.astype(jnp.float32)
    q = (xf @ wq).reshape(B * N, T, H, Dh)
    k = (xf @ wk).reshape(B * N, T, H, Dh)
    v3 = (xf @ wv).reshape(B * N, T, H, Dh)
    attn = jnp.einsum('bthd,btgd->bthg', q, k) * scale
    attn = jax.nn.softmax(attn, axis=-1)
    y = jnp.einsum('bthg,btgd->bthd', attn, v3).reshape(B, N, T, dim)
    return y @ wp + bp.reshape(1, 1, 1, dim)


if __name__ == "__main__":
    # Shapes consistent with the module: dim == out_dim, divisible by heads.
    # M = B*N*T = 1024 tokens -> 8 grid steps of 128 tokens (64 packed rows).
    B, N, T, dim = 2, 4, 128, 64
    num_heads = 8

    key = jax.random.PRNGKey(0)
    kx, kq, kk, kv, kp, kb = jax.random.split(key, 6)

    x = jax.random.normal(kx, (B, N, T, dim), dtype=jnp.float32)

    # Deterministic synthetic parameters (stored as (in, out); y = x @ W + b).
    wq = 0.05 * jax.random.normal(kq, (dim, dim), dtype=jnp.float32)
    wk = 0.05 * jax.random.normal(kk, (dim, dim), dtype=jnp.float32)
    wv = 0.05 * jax.random.normal(kv, (dim, dim), dtype=jnp.float32)
    wp = 0.05 * jax.random.normal(kp, (dim, dim), dtype=jnp.float32)
    bp = 0.05 * jax.random.normal(kb, (1, dim), dtype=jnp.float32)

    out = self_attention(x, wq, wk, wv, wp, bp, num_heads=num_heads)
    out = jax.block_until_ready(out)

    ref = self_attention_reference(x, wq, wk, wv, wp, bp, num_heads=num_heads)
    # bf16 matmuls / bf16 intermediate slabs (f32 accumulation + f32 softmax)
    # and the approx EUP reciprocal -> loosened tolerance.
    np.testing.assert_allclose(np.asarray(out), np.asarray(ref),
                               rtol=2e-2, atol=2e-2)

    print("KERNEL_OK")
</pallas_src>

<mosaic_0001>
module attributes {stable_mosaic.version = 11 : i64} {
  func.func @_self_attention_kernel(%arg0: i32, %arg1: memref<64x128xf32, #tpu.memory_space<vmem>>, %arg2: memref<128x3072xbf16, #tpu.memory_space<vmem>>, %arg3: memref<128x1024xbf16, #tpu.memory_space<vmem>>, %arg4: memref<128x128xbf16, #tpu.memory_space<vmem>>, %arg5: memref<1x128xf32, #tpu.memory_space<vmem>>, %arg6: memref<64x128xf32, #tpu.memory_space<vmem>>) attributes {dimension_semantics = [#tpu.dimension_semantics<parallel>], iteration_bounds = array<i64: 8>, scalar_prefetch = 0 : i64, scratch_operands = 0 : i64, tpu.core_type = #tpu.core_type<tc>, window_params = [{transform_indices = @transform_0, window_bounds = array<i64: 64, 128>}, {pipeline_mode = #tpu.pipeline_mode<synchronous>, transform_indices = @transform_1, window_bounds = array<i64: 128, 3072>}, {pipeline_mode = #tpu.pipeline_mode<synchronous>, transform_indices = @transform_2, window_bounds = array<i64: 128, 1024>}, {pipeline_mode = #tpu.pipeline_mode<synchronous>, transform_indices = @transform_3, window_bounds = array<i64: 128, 128>}, {pipeline_mode = #tpu.pipeline_mode<synchronous>, transform_indices = @transform_4, window_bounds = array<i64: 1, 128>}, {transform_indices = @transform_5, window_bounds = array<i64: 64, 128>}]} {
    %c0 = arith.constant 0 : index
    %c0_0 = arith.constant 0 : index
    %0 = vector.load %arg1[%c0, %c0_0] : memref<64x128xf32, #tpu.memory_space<vmem>>, vector<64x128xf32>
    %1 = arith.truncf %0 : vector<64x128xf32> to vector<64x128xbf16>
    %c0_1 = arith.constant 0 : index
    %c0_2 = arith.constant 0 : index
    %2 = vector.load %arg2[%c0_1, %c0_2] : memref<128x3072xbf16, #tpu.memory_space<vmem>>, vector<128x3072xbf16>
    %cst = arith.constant dense<0.000000e+00> : vector<64x3072xf32>
    %3 = tpu.matmul %1, %2, %cst {dimension_numbers = #tpu.dot_dimension_numbers<[1], [0], [0], [1], [0, 0, 1, 1], [], []>} : vector<64x128xbf16>, vector<128x3072xbf16>, vector<64x3072xf32> -> vector<64x3072xf32>
    %4 = arith.truncf %3 : vector<64x3072xf32> to vector<64x3072xbf16>
    %5 = vector.extract_strided_slice %4 {offsets = [0, 0], sizes = [64, 1024], strides = [1, 1]} : vector<64x3072xbf16> to vector<64x1024xbf16>
    %6 = arith.extf %5 : vector<64x1024xbf16> to vector<64x1024xf32>
    %7 = vector.extract_strided_slice %4 {offsets = [0, 1024], sizes = [64, 1024], strides = [1, 1]} : vector<64x3072xbf16> to vector<64x1024xbf16>
    %8 = arith.extf %7 : vector<64x1024xbf16> to vector<64x1024xf32>
    %9 = vector.extract_strided_slice %4 {offsets = [0, 2048], sizes = [64, 1024], strides = [1, 1]} : vector<64x3072xbf16> to vector<64x1024xbf16>
    %10 = arith.extf %9 : vector<64x1024xbf16> to vector<64x1024xf32>
    %11 = arith.mulf %6, %8 : vector<64x1024xf32>
    %12 = vector.extract_strided_slice %11 {offsets = [0, 0], sizes = [64, 512], strides = [1, 1]} : vector<64x1024xf32> to vector<64x512xf32>
    %13 = vector.extract_strided_slice %11 {offsets = [0, 512], sizes = [64, 512], strides = [1, 1]} : vector<64x1024xf32> to vector<64x512xf32>
    %14 = arith.addf %12, %13 : vector<64x512xf32>
    %15 = vector.extract_strided_slice %14 {offsets = [0, 0], sizes = [64, 256], strides = [1, 1]} : vector<64x512xf32> to vector<64x256xf32>
    %16 = vector.extract_strided_slice %14 {offsets = [0, 256], sizes = [64, 256], strides = [1, 1]} : vector<64x512xf32> to vector<64x256xf32>
    %17 = arith.addf %15, %16 : vector<64x256xf32>
    %18 = vector.extract_strided_slice %17 {offsets = [0, 0], sizes = [64, 128], strides = [1, 1]} : vector<64x256xf32> to vector<64x128xf32>
    %19 = vector.extract_strided_slice %17 {offsets = [0, 128], sizes = [64, 128], strides = [1, 1]} : vector<64x256xf32> to vector<64x128xf32>
    %20 = arith.addf %18, %19 : vector<64x128xf32>
    %c64_i32 = arith.constant 64 : i32
    %21 = tpu.dynamic_rotate %20 by %c64_i32 dim 1 : vector<64x128xf32>, i32 -> vector<64x128xf32>
    %22 = arith.maximumf %20, %21 : vector<64x128xf32>
    %c32_i32 = arith.constant 32 : i32
    %23 = tpu.dynamic_rotate %22 by %c32_i32 dim 1 : vector<64x128xf32>, i32 -> vector<64x128xf32>
    %24 = arith.maximumf %22, %23 : vector<64x128xf32>
    %c16_i32 = arith.constant 16 : i32
    %25 = tpu.dynamic_rotate %24 by %c16_i32 dim 1 : vector<64x128xf32>, i32 -> vector<64x128xf32>
    %26 = arith.maximumf %24, %25 : vector<64x128xf32>
    %27 = arith.subf %20, %26 : vector<64x128xf32>
    %28 = math.exp %27 : vector<64x128xf32>
    %c64_i32_3 = arith.constant 64 : i32
    %29 = tpu.dynamic_rotate %28 by %c64_i32_3 dim 1 : vector<64x128xf32>, i32 -> vector<64x128xf32>
    %30 = arith.addf %28, %29 : vector<64x128xf32>
    %c32_i32_4 = arith.constant 32 : i32
    %31 = tpu.dynamic_rotate %30 by %c32_i32_4 dim 1 : vector<64x128xf32>, i32 -> vector<64x128xf32>
    %32 = arith.addf %30, %31 : vector<64x128xf32>
    %c16_i32_5 = arith.constant 16 : i32
    %33 = tpu.dynamic_rotate %32 by %c16_i32_5 dim 1 : vector<64x128xf32>, i32 -> vector<64x128xf32>
    %34 = arith.addf %32, %33 : vector<64x128xf32>
    %35 = tpu.reciprocal %34 {approx = true} : vector<64x128xf32> -> vector<64x128xf32>
    %36 = arith.mulf %28, %35 : vector<64x128xf32>
    %37 = arith.truncf %36 : vector<64x128xf32> to vector<64x128xbf16>
    %c0_6 = arith.constant 0 : index
    %c0_7 = arith.constant 0 : index
    %38 = vector.load %arg3[%c0_6, %c0_7] : memref<128x1024xbf16, #tpu.memory_space<vmem>>, vector<128x1024xbf16>
    %cst_8 = arith.constant dense<0.000000e+00> : vector<64x1024xf32>
    %39 = tpu.matmul %37, %38, %cst_8 {dimension_numbers = #tpu.dot_dimension_numbers<[1], [0], [0], [1], [0, 0, 1, 1], [], []>} : vector<64x128xbf16>, vector<128x1024xbf16>, vector<64x1024xf32> -> vector<64x1024xf32>
    %40 = arith.truncf %39 : vector<64x1024xf32> to vector<64x1024xbf16>
    %41 = arith.extf %40 : vector<64x1024xbf16> to vector<64x1024xf32>
    %42 = arith.mulf %41, %10 : vector<64x1024xf32>
    %43 = vector.extract_strided_slice %42 {offsets = [0, 0], sizes = [64, 512], strides = [1, 1]} : vector<64x1024xf32> to vector<64x512xf32>
    %44 = vector.extract_strided_slice %42 {offsets = [0, 512], sizes = [64, 512], strides = [1, 1]} : vector<64x1024xf32> to vector<64x512xf32>
    %45 = arith.addf %43, %44 : vector<64x512xf32>
    %46 = vector.extract_strided_slice %45 {offsets = [0, 0], sizes = [64, 256], strides = [1, 1]} : vector<64x512xf32> to vector<64x256xf32>
    %47 = vector.extract_strided_slice %45 {offsets = [0, 256], sizes = [64, 256], strides = [1, 1]} : vector<64x512xf32> to vector<64x256xf32>
    %48 = arith.addf %46, %47 : vector<64x256xf32>
    %49 = vector.extract_strided_slice %48 {offsets = [0, 0], sizes = [64, 128], strides = [1, 1]} : vector<64x256xf32> to vector<64x128xf32>
    %50 = vector.extract_strided_slice %48 {offsets = [0, 128], sizes = [64, 128], strides = [1, 1]} : vector<64x256xf32> to vector<64x128xf32>
    %51 = arith.addf %49, %50 : vector<64x128xf32>
    %52 = arith.truncf %51 : vector<64x128xf32> to vector<64x128xbf16>
    %c0_9 = arith.constant 0 : index
    %c0_10 = arith.constant 0 : index
    %53 = vector.load %arg4[%c0_9, %c0_10] : memref<128x128xbf16, #tpu.memory_space<vmem>>, vector<128x128xbf16>
    %cst_11 = arith.constant dense<0.000000e+00> : vector<64x128xf32>
    %54 = tpu.matmul %52, %53, %cst_11 {dimension_numbers = #tpu.dot_dimension_numbers<[1], [0], [0], [1], [0, 0, 1, 1], [], []>} : vector<64x128xbf16>, vector<128x128xbf16>, vector<64x128xf32> -> vector<64x128xf32>
    %c0_12 = arith.constant 0 : index
    %c0_13 = arith.constant 0 : index
    %55 = vector.load %arg5[%c0_12, %c0_13] : memref<1x128xf32, #tpu.memory_space<vmem>>, vector<1x128xf32>
    %56 = vector.broadcast %55 : vector<1x128xf32> to vector<64x128xf32>
    %57 = arith.addf %54, %56 : vector<64x128xf32>
    %c0_14 = arith.constant 0 : index
    %c0_15 = arith.constant 0 : index
    %58 = vector.load %arg6[%c0_14, %c0_15] : memref<64x128xf32, #tpu.memory_space<vmem>>, vector<64x128xf32>
    tpu.vector_store %arg6[%c0_14, %c0_15], %57 {strides = array<i32>} : memref<64x128xf32, #tpu.memory_space<vmem>>, vector<64x128xf32>,
    return
  }
  func.func @transform_0(%arg0: i32) -> (i32, i32) {
    %c0_i32 = arith.constant 0 : i32
    %c0_i32_0 = arith.constant 0 : i32
    return %arg0, %c0_i32 : i32, i32
  }
  func.func @transform_1(%arg0: i32) -> (i32, i32) {
    %c0_i32 = arith.constant 0 : i32
    %c0_i32_0 = arith.constant 0 : i32
    %c0_i32_1 = arith.constant 0 : i32
    return %c0_i32, %c0_i32_0 : i32, i32
  }
  func.func @transform_2(%arg0: i32) -> (i32, i32) {
    %c0_i32 = arith.constant 0 : i32
    %c0_i32_0 = arith.constant 0 : i32
    %c0_i32_1 = arith.constant 0 : i32
    return %c0_i32, %c0_i32_0 : i32, i32
  }
  func.func @transform_3(%arg0: i32) -> (i32, i32) {
    %c0_i32 = arith.constant 0 : i32
    %c0_i32_0 = arith.constant 0 : i32
    %c0_i32_1 = arith.constant 0 : i32
    return %c0_i32, %c0_i32_0 : i32, i32
  }
  func.func @transform_4(%arg0: i32) -> (i32, i32) {
    %c0_i32 = arith.constant 0 : i32
    %c0_i32_0 = arith.constant 0 : i32
    %c0_i32_1 = arith.constant 0 : i32
    return %c0_i32, %c0_i32_0 : i32, i32
  }
  func.func @transform_5(%arg0: i32) -> (i32, i32) {
    %c0_i32 = arith.constant 0 : i32
    %c0_i32_0 = arith.constant 0 : i32
    return %arg0, %c0_i32 : i32, i32
  }
}

</mosaic_0001>

<llo_original>
// kernel: tpu_custom_call.1
$region0: #{tpu_custom_call.1}
  #allocation0 [shape = 'u32[]', space=smem, size = 0x4, offset = 0x4, fixed_abs, tag = 'smem constant byte address 0x4 - core index']
  #allocation1 [shape = 'u32[144,128]{1,0:T(1,128)}', space=vmem, size = 0x12000, scoped, tag = 'internal scratch']
  %s0 = inlined_call_operand.hbm [shape: f32[512,128], index: 0, kind: input, shape index: {}]
  %s1 = inlined_call_operand.hbm [shape: bf16[128,3072], index: 1, kind: input, shape index: {}]
  %s2 = inlined_call_operand.hbm [shape: bf16[128,1024], index: 2, kind: input, shape index: {}]
  %s3 = inlined_call_operand.hbm [shape: bf16[128,128], index: 3, kind: input, shape index: {}]
  %s4 = inlined_call_operand.vmem [shape: f32[1,128], index: 4, kind: input, shape index: {}]
  %s5 = inlined_call_operand.hbm [shape: f32[512,128], index: 5, kind: output, shape index: {}]
  %s6 = sld [smem:[#allocation0]]
  $region69: #{tpu_custom_call.1} parent=0
    _
  %s8 = ssub.s32 1, %s6
  %s9 = scalar_select 0, %s8, %s6
  $region1: #{tpu_custom_call.1} parent=0
    #allocation2 [shape = 'u8[65536]{0}', space=vmem, size = 0x10000, scoped, tag = 'input window, operand 0']
    #allocation3 [shape = 's32[2]{0}', space=sflag, size = 0x8, scoped, tag = 'scoped memory for tpu_custom_call.1']
    #allocation4 [shape = 's32[2]{0}', space=sflag, size = 0x8, scoped, tag = 'scoped memory for tpu_custom_call.1']
    #allocation5 [shape = 'u8[786432]{0}', space=vmem, size = 0xc0000, scoped, tag = 'input window, operand 1, single buffered']
    #allocation6 [shape = 's32[1]{0}', space=sflag, size = 0x4, scoped, tag = 'scoped memory for tpu_custom_call.1']
    #allocation7 [shape = 'u8[262144]{0}', space=vmem, size = 0x40000, scoped, tag = 'input window, operand 2, single buffered']
    #allocation8 [shape = 'u8[32768]{0}', space=vmem, size = 0x8000, scoped, tag = 'input window, operand 3, single buffered']
    #allocation9 [shape = 's32[1]{0}', space=sflag, size = 0x4, scoped, tag = 'scoped memory for tpu_custom_call.1']
    #allocation10 [shape = 'u8[65536]{0}', space=vmem, size = 0x10000, scoped, tag = 'output window, operand 0']
    %10 = vsyncpa [#allocation3], 0
    %s11 = scalar_lea.sflag [#allocation3], 1
    %12 = vsyncpa %s11, 0
    %13 = vsyncpa [#allocation6], 0
    %14 = vsyncpa [#allocation9], 0
    %15 = vsyncpa [#allocation4], 0
    %s16 = scalar_lea.sflag [#allocation4], 1
    %17 = vsyncpa %s16, 0
    loop: start=0, step=1, limit=10
    $region2: #{tpu_custom_call.1} parent=1 // loop_pre_header
      _
    $region3: #{tpu_custom_call.1} parent=1 // loop_header
      %s19 = sphi 0, %s23
      %p20 = scmp.ge.s32.totalorder %s19, 10
      %s29 = sphi 0, %s31
      %s32 = sphi 0, %s29
      %s33 = sphi 0, %s32
      %s49 = sphi 0, %s33
      %s53 = sphi 0, %s53
      %s55 = sphi 0, %s53
      %s56 = sphi 0, %s55
      %s70 = sphi 0, %s56
      %s74 = sphi 0, %s74
      %s76 = sphi 0, %s74
      %s77 = sphi 0, %s76
      %s91 = sphi 0, %s77
      %s95 = sphi 0, %s95
      %s97 = sphi 0, %s95
      %s98 = sphi 0, %s97
      %s112 = sphi 0, %s98
      %s116 = sphi 0, %s116
      %s118 = sphi 0, %s116
      %s119 = sphi 0, %s118
      %s133 = sphi 0, %s119
      %s139 = sphi 0, %s141
      %s142 = sphi 0, %s139
      %s143 = sphi 0, %s142
      %s159 = sphi 0, %s143
    $region4: #{tpu_custom_call.1} parent=1 // loop_header_branch
      %22 = sbr.rel (%p20) target = $region8
    $region5: #{tpu_custom_call.1} parent=1 // loop_body
      %s24 = ssub.s32 %s19, 1
      %s25 = ssub.s32 %s19, 2
      %s26 = sadd.s32 %s19, 1
      %s27 = ssub.s32 %s19, %s26
      %p28 = scmp.eq.s32.totalorder %s27, 0
      %s30 = sadd.s32 %s29, 1
      %s31 = scalar_select %p28, %s29, %s30
      %p34 = pneg %p28
      %p35 = scmp.eq.s32.totalorder %s19, 7
      %p36 = por %p34, %p35
      %p37 = scmp.ne.s32.totalorder %s29, %s32
      %p38 = scmp.eq.s32.totalorder %s19, 0
      %p39 = por %p37, %p38
      %p40 = scmp.ne.s32.totalorder %s29, %s32
      %p41 = scmp.eq.s32.totalorder %s24, 7
      %p42 = por %p40, %p41
      %p43 = scmp.ne.s32.totalorder %s32, %s33
      %p44 = scmp.eq.s32.totalorder %s24, 0
      %p45 = por %p43, %p44
      %p46 = scmp.ne.s32.totalorder %s32, %s33
      %p47 = scmp.eq.s32.totalorder %s25, 7
      %p48 = por %p46, %p47
      %p50 = scmp.ne.s32.totalorder %s33, %s49
      %p51 = scmp.eq.s32.totalorder %s25, 0
      %p52 = por %p50, %p51
      %s54 = sadd.s32 %s53, 1
      %p57 = scmp.eq.s32.totalorder %s19, 7
      %p58 = scmp.ne.s32.totalorder %s53, %s55
      %p59 = scmp.eq.s32.totalorder %s19, 0
      %p60 = por %p58, %p59
      %p61 = scmp.ne.s32.totalorder %s53, %s55
      %p62 = scmp.eq.s32.totalorder %s24, 7
      %p63 = por %p61, %p62
      %p64 = scmp.ne.s32.totalorder %s55, %s56
      %p65 = scmp.eq.s32.totalorder %s24, 0
      %p66 = por %p64, %p65
      %p67 = scmp.ne.s32.totalorder %s55, %s56
      %p68 = scmp.eq.s32.totalorder %s25, 7
      %p69 = por %p67, %p68
      %p71 = scmp.ne.s32.totalorder %s56, %s70
      %p72 = scmp.eq.s32.totalorder %s25, 0
      %p73 = por %p71, %p72
      %s75 = sadd.s32 %s74, 1
      %p78 = scmp.eq.s32.totalorder %s19, 7
      %p79 = scmp.ne.s32.totalorder %s74, %s76
      %p80 = scmp.eq.s32.totalorder %s19, 0
      %p81 = por %p79, %p80
      %p82 = scmp.ne.s32.totalorder %s74, %s76
      %p83 = scmp.eq.s32.totalorder %s24, 7
      %p84 = por %p82, %p83
      %p85 = scmp.ne.s32.totalorder %s76, %s77
      %p86 = scmp.eq.s32.totalorder %s24, 0
      %p87 = por %p85, %p86
      %p88 = scmp.ne.s32.totalorder %s76, %s77
      %p89 = scmp.eq.s32.totalorder %s25, 7
      %p90 = por %p88, %p89
      %p92 = scmp.ne.s32.totalorder %s77, %s91
      %p93 = scmp.eq.s32.totalorder %s25, 0
      %p94 = por %p92, %p93
      %s96 = sadd.s32 %s95, 1
      %p99 = scmp.eq.s32.totalorder %s19, 7
      %p100 = scmp.ne.s32.totalorder %s95, %s97
      %p101 = scmp.eq.s32.totalorder %s19, 0
      %p102 = por %p100, %p101
      %p103 = scmp.ne.s32.totalorder %s95, %s97
      %p104 = scmp.eq.s32.totalorder %s24, 7
      %p105 = por %p103, %p104
      %p106 = scmp.ne.s32.totalorder %s97, %s98
      %p107 = scmp.eq.s32.totalorder %s24, 0
      %p108 = por %p106, %p107
      %p109 = scmp.ne.s32.totalorder %s97, %s98
      %p110 = scmp.eq.s32.totalorder %s25, 7
      %p111 = por %p109, %p110
      %p113 = scmp.ne.s32.totalorder %s98, %s112
      %p114 = scmp.eq.s32.totalorder %s25, 0
      %p115 = por %p113, %p114
      %s117 = sadd.s32 %s116, 1
      %p120 = scmp.eq.s32.totalorder %s19, 7
      %p121 = scmp.ne.s32.totalorder %s116, %s118
      %p122 = scmp.eq.s32.totalorder %s19, 0
      %p123 = por %p121, %p122
      %p124 = scmp.ne.s32.totalorder %s116, %s118
      %p125 = scmp.eq.s32.totalorder %s24, 7
      %p126 = por %p124, %p125
      %p127 = scmp.ne.s32.totalorder %s118, %s119
      %p128 = scmp.eq.s32.totalorder %s24, 0
      %p129 = por %p127, %p128
      %p130 = scmp.ne.s32.totalorder %s118, %s119
      %p131 = scmp.eq.s32.totalorder %s25, 7
      %p132 = por %p130, %p131
      %p134 = scmp.ne.s32.totalorder %s119, %s133
      %p135 = scmp.eq.s32.totalorder %s25, 0
      %p136 = por %p134, %p135
      %s137 = ssub.s32 %s19, %s26
      %p138 = scmp.eq.s32.totalorder %s137, 0
      %s140 = sadd.s32 %s139, 1
      %s141 = scalar_select %p138, %s139, %s140
      %p144 = pneg %p138
      %p145 = scmp.eq.s32.totalorder %s19, 7
      %p146 = por %p144, %p145
      %p147 = scmp.ne.s32.totalorder %s139, %s142
      %p148 = scmp.eq.s32.totalorder %s19, 0
      %p149 = por %p147, %p148
      %p150 = scmp.ne.s32.totalorder %s139, %s142
      %p151 = scmp.eq.s32.totalorder %s24, 7
      %p152 = por %p150, %p151
      %p153 = scmp.ne.s32.totalorder %s142, %s143
      %p154 = scmp.eq.s32.totalorder %s24, 0
      %p155 = por %p153, %p154
      %p156 = scmp.ne.s32.totalorder %s142, %s143
      %p157 = scmp.eq.s32.totalorder %s25, 7
      %p158 = por %p156, %p157
      %p160 = scmp.ne.s32.totalorder %s143, %s159
      %p161 = scmp.eq.s32.totalorder %s25, 0
      %p162 = por %p160, %p161
      %p163 = scmp.le.s32.totalorder 1, %s19
      %p164 = scmp.lt.s32.totalorder %s19, 9
      %p165 = pnand %p163, %p164
      %p166 = pneg %p165
      // Predicated region
      $region9: #{tpu_custom_call.1} parent=5 // pred_check
        _
      $region10: #{tpu_custom_call.1} parent=5 // pred_check_branch
        %168 = sbr.rel (%p165) target = $region12
      $region11: #{tpu_custom_call.1} parent=5 // pred_region
        %s169 = ssub.s32 %s19, 1
        // Predicated region
        $region13: #{tpu_custom_call.1} parent=11 // pred_check
          %p170 = pneg %p66
        $region14: #{tpu_custom_call.1} parent=11 // pred_check_branch
          %172 = sbr.rel (%p170) target = $region16
        $region15: #{tpu_custom_call.1} parent=11 // pred_region
          %s174 = ssub.s32 24576, 24576
          %175 = vsyncadd [#allocation6], %s174
          %s176 = sshll.u32 [#allocation5], 4
          %s177 = int_to_ptr.vmem [resolvable:$true] %s176
          %182 = dma.hbm_to_vmem [thread:$0]  %s1, 24576, %s177, [#allocation6], 1536, 1536, 96
        $region16: #{tpu_custom_call.1} parent=11 // pred_fallthru
          _
        // Predicated region
        $region17: #{tpu_custom_call.1} parent=11 // pred_check
          %p183 = pneg %p87
        $region18: #{tpu_custom_call.1} parent=11 // pred_check_branch
          %185 = sbr.rel (%p183) target = $region20
        $region19: #{tpu_custom_call.1} parent=11 // pred_region
          %s187 = ssub.s32 8192, 8192
          %188 = vsyncadd [#allocation6], %s187
          %s189 = sshll.u32 [#allocation7], 4
          %s190 = int_to_ptr.vmem [resolvable:$true] %s189
          %195 = dma.hbm_to_vmem [thread:$0]  %s2, 8192, %s190, [#allocation6], 512, 512, 32
        $region20: #{tpu_custom_call.1} parent=11 // pred_fallthru
          _
        // Predicated region
        $region21: #{tpu_custom_call.1} parent=11 // pred_check
          %p196 = pneg %p108
        $region22: #{tpu_custom_call.1} parent=11 // pred_check_branch
          %198 = sbr.rel (%p196) target = $region24
        $region23: #{tpu_custom_call.1} parent=11 // pred_region
          %s200 = ssub.s32 1024, 1024
          %201 = vsyncadd [#allocation9], %s200
          %s202 = sshll.u32 [#allocation8], 4
          %s203 = int_to_ptr.vmem [resolvable:$true] %s202
          %208 = dma.hbm_to_vmem [thread:$0]  %s3, 1024, %s203, [#allocation9], 64, 64, 4
        $region24: #{tpu_custom_call.1} parent=11 // pred_fallthru
          _
        // Predicated region
        $region25: #{tpu_custom_call.1} parent=11 // pred_check
          %p209 = pneg %p129
        $region26: #{tpu_custom_call.1} parent=11 // pred_check_branch
          %211 = sbr.rel (%p209) target = $region28
        $region27: #{tpu_custom_call.1} parent=11 // pred_region
          _
        $region28: #{tpu_custom_call.1} parent=11 // pred_fallthru
          _
      $region12: #{tpu_custom_call.1} parent=5 // pred_fallthru
        _
      %p212 = scmp.lt.s32.totalorder %s19, 8
      // Predicated region
      $region29: #{tpu_custom_call.1} parent=5 // pred_check
        %p213 = pneg %p212
      $region30: #{tpu_custom_call.1} parent=5 // pred_check_branch
        %215 = sbr.rel (%p213) target = $region32
      $region31: #{tpu_custom_call.1} parent=5 // pred_region
        // Predicated region
        $region33: #{tpu_custom_call.1} parent=31 // pred_check
          %p216 = pneg %p39
        $region34: #{tpu_custom_call.1} parent=31 // pred_check_branch
          %218 = sbr.rel (%p216) target = $region36
        $region35: #{tpu_custom_call.1} parent=31 // pred_region
          %s219 = sand.u32 %s29, 1
          %s220 = scalar_lea.sflag [#allocation3], %s219
          %s221 = sand.u32 %s29, 1
          %s222 = smul.addr %s221, 64
          %s223 = scalar_lea.vmem [#allocation2], %s222
          %s224 = smul.u32 8, %s19
          %s226 = ssub.s32 1024, 1024
          %227 = vsyncadd %s220, %s226
          %s228 = smul.addr %s224, 128
          %s229 = scalar_lea.hbm %s0, %s228
          %s230 = sshll.u32 %s223, 4
          %s231 = int_to_ptr.vmem [resolvable:$true] %s230
          %236 = dma.hbm_to_vmem [thread:$0]  %s229, 1024, %s231, %s220, 128, 128, 8
        $region36: #{tpu_custom_call.1} parent=31 // pred_fallthru
          _
      $region32: #{tpu_custom_call.1} parent=5 // pred_fallthru
        _
      %p237 = scmp.le.s32.totalorder 1, %s19
      %p238 = scmp.lt.s32.totalorder %s19, 9
      %p239 = pnand %p237, %p238
      %p240 = pneg %p239
      // Predicated region
      $region37: #{tpu_custom_call.1} parent=5 // pred_check
        _
      $region38: #{tpu_custom_call.1} parent=5 // pred_check_branch
        %242 = sbr.rel (%p239) target = $region40
      $region39: #{tpu_custom_call.1} parent=5 // pred_region
        %s243 = ssub.s32 %s19, 1
        %s244 = sand.u32 %s32, 1
        %s245 = scalar_lea.sflag [#allocation3], %s244
        %s246 = sand.u32 %s32, 1
        %s247 = smul.addr %s246, 64
        %s248 = scalar_lea.vmem [#allocation2], %s247
        // Predicated region
        $region41: #{tpu_custom_call.1} parent=39 // pred_check
          %p249 = pneg %p45
        $region42: #{tpu_custom_call.1} parent=39 // pred_check_branch
          %251 = sbr.rel (%p249) target = $region44
        $region43: #{tpu_custom_call.1} parent=39 // pred_region
          %252 = dma.done %s245, 1024
        $region44: #{tpu_custom_call.1} parent=39 // pred_fallthru
          _
        // Predicated region
        $region45: #{tpu_custom_call.1} parent=39 // pred_check
          %p253 = pneg %p66
        $region46: #{tpu_custom_call.1} parent=39 // pred_check_branch
          %255 = sbr.rel (%p253) target = $region48
        $region47: #{tpu_custom_call.1} parent=39 // pred_region
          %256 = dma.done [#allocation6], 24576
        $region48: #{tpu_custom_call.1} parent=39 // pred_fallthru
          _
        // Predicated region
        $region49: #{tpu_custom_call.1} parent=39 // pred_check
          %p257 = pneg %p87
        $region50: #{tpu_custom_call.1} parent=39 // pred_check_branch
          %259 = sbr.rel (%p257) target = $region52
        $region51: #{tpu_custom_call.1} parent=39 // pred_region
          %260 = dma.done [#allocation6], 8192
        $region52: #{tpu_custom_call.1} parent=39 // pred_fallthru
          _
        // Predicated region
        $region53: #{tpu_custom_call.1} parent=39 // pred_check
          %p261 = pneg %p108
        $region54: #{tpu_custom_call.1} parent=39 // pred_check_branch
          %263 = sbr.rel (%p261) target = $region56
        $region55: #{tpu_custom_call.1} parent=39 // pred_region
          %264 = dma.done [#allocation9], 1024
        $region56: #{tpu_custom_call.1} parent=39 // pred_fallthru
          _
        %s265 = sand.u32 %s32, 1
        %s266 = scalar_lea.sflag [#allocation3], %s265
        %s267 = sand.u32 %s32, 1
        %s268 = smul.addr %s267, 64
        %s269 = scalar_lea.vmem [#allocation2], %s268
        %p270 = pneg %p45
        %p271 = pneg %p42
        %p272 = pneg %p66
        %p273 = pneg %p63
        %p274 = pneg %p87
        %p275 = pneg %p84
        %p276 = pneg %p108
        %p277 = pneg %p105
        %p278 = pneg %p129
        %p279 = pneg %p126
        %p280 = pneg %p155
        %p281 = pneg %p152
        %s282 = sand.u32 %s142, 1
        %s283 = scalar_lea.sflag [#allocation4], %s282
        %s284 = sand.u32 %s142, 1
        %s285 = smul.addr %s284, 64
        %s286 = scalar_lea.vmem [#allocation10], %s285
        %s287 = smul.u32 8, %s24
        %s288 = smul.u32 8, %s24
        %v290 = vld [vmem:[%s248] sm:$0xff]
        %v291 = vld [vmem:[%s248 + $0x8] sm:$0xff]
        %v292 = vld [vmem:[%s248 + $0x10] sm:$0xff]
        %v293 = vld [vmem:[%s248 + $0x18] sm:$0xff]
        %v294 = vld [vmem:[%s248 + $0x20] sm:$0xff]
        %v295 = vld [vmem:[%s248 + $0x28] sm:$0xff]
        %v296 = vld [vmem:[%s248 + $0x30] sm:$0xff]
        %v297 = vld [vmem:[%s248 + $0x38] sm:$0xff]
        %v298 = vpack.c.bf16 %v291, %v290
        %v299 = vpack.c.bf16 %v293, %v292
        %v300 = vpack.c.bf16 %v295, %v294
        %v301 = vpack.c.bf16 %v297, %v296
        %v302 = vld [vmem:[#allocation5] sm:$0xff]
        %v303 = vld [vmem:[#allocation5 + $0x8] sm:$0xff]
        %v304 = vld [vmem:[#allocation5 + $0x10] sm:$0xff]
        %v305 = vld [vmem:[#allocation5 + $0x18] sm:$0xff]
        %v306 = vld [vmem:[#allocation5 + $0x20] sm:$0xff]
        %v307 = vld [vmem:[#allocation5 + $0x28] sm:$0xff]
        %v308 = vld [vmem:[#allocation5 + $0x30] sm:$0xff]
        %v309 = vld [vmem:[#allocation5 + $0x38] sm:$0xff]
        %v310 = vld [vmem:[#allocation5 + $0x40] sm:$0xff]
        %v311 = vld [vmem:[#allocation5 + $0x48] sm:$0xff]
        %v312 = vld [vmem:[#allocation5 + $0x50] sm:$0xff]
        %v313 = vld [vmem:[#allocation5 + $0x58] sm:$0xff]
        %v314 = vld [vmem:[#allocation5 + $0x60] sm:$0xff]
        %v315 = vld [vmem:[#allocation5 + $0x68] sm:$0xff]
        %v316 = vld [vmem:[#allocation5 + $0x70] sm:$0xff]
        %v317 = vld [vmem:[#allocation5 + $0x78] sm:$0xff]
        %v318 = vld [vmem:[#allocation5 + $0x80] sm:$0xff]
        %v319 = vld [vmem:[#allocation5 + $0x88] sm:$0xff]
        %v320 = vld [vmem:[#allocation5 + $0x90] sm:$0xff]
        %v321 = vld [vmem:[#allocation5 + $0x98] sm:$0xff]
        %v322 = vld [vmem:[#allocation5 + $0xa0] sm:$0xff]
        %v323 = vld [vmem:[#allocation5 + $0xa8] sm:$0xff]
        %v324 = vld [vmem:[#allocation5 + $0xb0] sm:$0xff]
        %v325 = vld [vmem:[#allocation5 + $0xb8] sm:$0xff]
        %v326 = vld [vmem:[#allocation5 + $0xc0] sm:$0xff]
        %v327 = vld [vmem:[#allocation5 + $0xc8] sm:$0xff]
        %v328 = vld [vmem:[#allocation5 + $0xd0] sm:$0xff]
        %v329 = vld [vmem:[#allocation5 + $0xd8] sm:$0xff]
        %v330 = vld [vmem:[#allocation5 + $0xe0] sm:$0xff]
        %v331 = vld [vmem:[#allocation5 + $0xe8] sm:$0xff]
        %v332 = vld [vmem:[#allocation5 + $0xf0] sm:$0xff]
        %v333 = vld [vmem:[#allocation5 + $0xf8] sm:$0xff]
        %v334 = vld [vmem:[#allocation5 + $0x100] sm:$0xff]
        %v335 = vld [vmem:[#allocation5 + $0x108] sm:$0xff]
        %v336 = vld [vmem:[#allocation5 + $0x110] sm:$0xff]
        %v337 = vld [vmem:[#allocation5 + $0x118] sm:$0xff]
        %v338 = vld [vmem:[#allocation5 + $0x120] sm:$0xff]
        %v339 = vld [vmem:[#allocation5 + $0x128] sm:$0xff]
        %v340 = vld [vmem:[#allocation5 + $0x130] sm:$0xff]
        %v341 = vld [vmem:[#allocation5 + $0x138] sm:$0xff]
        %v342 = vld [vmem:[#allocation5 + $0x140] sm:$0xff]
        %v343 = vld [vmem:[#allocation5 + $0x148] sm:$0xff]
        %v344 = vld [vmem:[#allocation5 + $0x150] sm:$0xff]
        %v345 = vld [vmem:[#allocation5 + $0x158] sm:$0xff]
        %v346 = vld [vmem:[#allocation5 + $0x160] sm:$0xff]
        %v347 = vld [vmem:[#allocation5 + $0x168] sm:$0xff]
        %v348 = vld [vmem:[#allocation5 + $0x170] sm:$0xff]
        %v349 = vld [vmem:[#allocation5 + $0x178] sm:$0xff]
        %v350 = vld [vmem:[#allocation5 + $0x180] sm:$0xff]
        %v351 = vld [vmem:[#allocation5 + $0x188] sm:$0xff]
        %v352 = vld [vmem:[#allocation5 + $0x190] sm:$0xff]
        %v353 = vld [vmem:[#allocation5 + $0x198] sm:$0xff]
        %v354 = vld [vmem:[#allocation5 + $0x1a0] sm:$0xff]
        %v355 = vld [vmem:[#allocation5 + $0x1a8] sm:$0xff]
        %v356 = vld [vmem:[#allocation5 + $0x1b0] sm:$0xff]
        %v357 = vld [vmem:[#allocation5 + $0x1b8] sm:$0xff]
        %v358 = vld [vmem:[#allocation5 + $0x1c0] sm:$0xff]
        %v359 = vld [vmem:[#allocation5 + $0x1c8] sm:$0xff]
        %v360 = vld [vmem:[#allocation5 + $0x1d0] sm:$0xff]
        %v361 = vld [vmem:[#allocation5 + $0x1d8] sm:$0xff]
        %v362 = vld [vmem:[#allocation5 + $0x1e0] sm:$0xff]
        %v363 = vld [vmem:[#allocation5 + $0x1e8] sm:$0xff]
        %v364 = vld [vmem:[#allocation5 + $0x1f0] sm:$0xff]
        %v365 = vld [vmem:[#allocation5 + $0x1f8] sm:$0xff]
        %v366 = vld [vmem:[#allocation5 + $0x200] sm:$0xff]
        %v367 = vld [vmem:[#allocation5 + $0x208] sm:$0xff]
        %v368 = vld [vmem:[#allocation5 + $0x210] sm:$0xff]
        %v369 = vld [vmem:[#allocation5 + $0x218] sm:$0xff]
        %v370 = vld [vmem:[#allocation5 + $0x220] sm:$0xff]
        %v371 = vld [vmem:[#allocation5 + $0x228] sm:$0xff]
        %v372 = vld [vmem:[#allocation5 + $0x230] sm:$0xff]
        %v373 = vld [vmem:[#allocation5 + $0x238] sm:$0xff]
        %v374 = vld [vmem:[#allocation5 + $0x240] sm:$0xff]
        %v375 = vld [vmem:[#allocation5 + $0x248] sm:$0xff]
        %v376 = vld [vmem:[#allocation5 + $0x250] sm:$0xff]
        %v377 = vld [vmem:[#allocation5 + $0x258] sm:$0xff]
        %v378 = vld [vmem:[#allocation5 + $0x260] sm:$0xff]
        %v379 = vld [vmem:[#allocation5 + $0x268] sm:$0xff]
        %v380 = vld [vmem:[#allocation5 + $0x270] sm:$0xff]
        %v381 = vld [vmem:[#allocation5 + $0x278] sm:$0xff]
        %v382 = vld [vmem:[#allocation5 + $0x280] sm:$0xff]
        %v383 = vld [vmem:[#allocation5 + $0x288] sm:$0xff]
        %v384 = vld [vmem:[#allocation5 + $0x290] sm:$0xff]
        %v385 = vld [vmem:[#allocation5 + $0x298] sm:$0xff]
        %v386 = vld [vmem:[#allocation5 + $0x2a0] sm:$0xff]
        %v387 = vld [vmem:[#allocation5 + $0x2a8] sm:$0xff]
        %v388 = vld [vmem:[#allocation5 + $0x2b0] sm:$0xff]
        %v389 = vld [vmem:[#allocation5 + $0x2b8] sm:$0xff]
        %v390 = vld [vmem:[#allocation5 + $0x2c0] sm:$0xff]
        %v391 = vld [vmem:[#allocation5 + $0x2c8] sm:$0xff]
        %v392 = vld [vmem:[#allocation5 + $0x2d0] sm:$0xff]
        %v393 = vld [vmem:[#allocation5 + $0x2d8] sm:$0xff]
        %v394 = vld [vmem:[#allocation5 + $0x2e0] sm:$0xff]
        %v395 = vld [vmem:[#allocation5 + $0x2e8] sm:$0xff]
        %v396 = vld [vmem:[#allocation5 + $0x2f0] sm:$0xff]
        %v397 = vld [vmem:[#allocation5 + $0x2f8] sm:$0xff]
        %v398 = vld [vmem:[#allocation5 + $0x300] sm:$0xff]
        %v399 = vld [vmem:[#allocation5 + $0x308] sm:$0xff]
        %v400 = vld [vmem:[#allocation5 + $0x310] sm:$0xff]
        %v401 = vld [vmem:[#allocation5 + $0x318] sm:$0xff]
        %v402 = vld [vmem:[#allocation5 + $0x320] sm:$0xff]
        %v403 = vld [vmem:[#allocation5 + $0x328] sm:$0xff]
        %v404 = vld [vmem:[#allocation5 + $0x330] sm:$0xff]
        %v405 = vld [vmem:[#allocation5 + $0x338] sm:$0xff]
        %v406 = vld [vmem:[#allocation5 + $0x340] sm:$0xff]
        %v407 = vld [vmem:[#allocation5 + $0x348] sm:$0xff]
        %v408 = vld [vmem:[#allocation5 + $0x350] sm:$0xff]
        %v409 = vld [vmem:[#allocation5 + $0x358] sm:$0xff]
        %v410 = vld [vmem:[#allocation5 + $0x360] sm:$0xff]
        %v411 = vld [vmem:[#allocation5 + $0x368] sm:$0xff]
        %v412 = vld [vmem:[#allocation5 + $0x370] sm:$0xff]
        %v413 = vld [vmem:[#allocation5 + $0x378] sm:$0xff]
        %v414 = vld [vmem:[#allocation5 + $0x380] sm:$0xff]
        %v415 = vld [vmem:[#allocation5 + $0x388] sm:$0xff]
        %v416 = vld [vmem:[#allocation5 + $0x390] sm:$0xff]
        %v417 = vld [vmem:[#allocation5 + $0x398] sm:$0xff]
        %v418 = vld [vmem:[#allocation5 + $0x3a0] sm:$0xff]
        %v419 = vld [vmem:[#allocation5 + $0x3a8] sm:$0xff]
        %v420 = vld [vmem:[#allocation5 + $0x3b0] sm:$0xff]
        %v421 = vld [vmem:[#allocation5 + $0x3b8] sm:$0xff]
        %v422 = vld [vmem:[#allocation5 + $0x3c0] sm:$0xff]
        %v423 = vld [vmem:[#allocation5 + $0x3c8] sm:$0xff]
        %v424 = vld [vmem:[#allocation5 + $0x3d0] sm:$0xff]
        %v425 = vld [vmem:[#allocation5 + $0x3d8] sm:$0xff]
        %v426 = vld [vmem:[#allocation5 + $0x3e0] sm:$0xff]
        %v427 = vld [vmem:[#allocation5 + $0x3e8] sm:$0xff]
        %v428 = vld [vmem:[#allocation5 + $0x3f0] sm:$0xff]
        %v429 = vld [vmem:[#allocation5 + $0x3f8] sm:$0xff]
        %v430 = vld [vmem:[#allocation5 + $0x400] sm:$0xff]
        %v431 = vld [vmem:[#allocation5 + $0x408] sm:$0xff]
        %v432 = vld [vmem:[#allocation5 + $0x410] sm:$0xff]
        %v433 = vld [vmem:[#allocation5 + $0x418] sm:$0xff]
        %v434 = vld [vmem:[#allocation5 + $0x420] sm:$0xff]
        %v435 = vld [vmem:[#allocation5 + $0x428] sm:$0xff]
        %v436 = vld [vmem:[#allocation5 + $0x430] sm:$0xff]
        %v437 = vld [vmem:[#allocation5 + $0x438] sm:$0xff]
        %v438 = vld [vmem:[#allocation5 + $0x440] sm:$0xff]
        %v439 = vld [vmem:[#allocation5 + $0x448] sm:$0xff]
        %v440 = vld [vmem:[#allocation5 + $0x450] sm:$0xff]
        %v441 = vld [vmem:[#allocation5 + $0x458] sm:$0xff]
        %v442 = vld [vmem:[#allocation5 + $0x460] sm:$0xff]
        %v443 = vld [vmem:[#allocation5 + $0x468] sm:$0xff]
        %v444 = vld [vmem:[#allocation5 + $0x470] sm:$0xff]
        %v445 = vld [vmem:[#allocation5 + $0x478] sm:$0xff]
        %v446 = vld [vmem:[#allocation5 + $0x480] sm:$0xff]
        %v447 = vld [vmem:[#allocation5 + $0x488] sm:$0xff]
        %v448 = vld [vmem:[#allocation5 + $0x490] sm:$0xff]
        %v449 = vld [vmem:[#allocation5 + $0x498] sm:$0xff]
        %v450 = vld [vmem:[#allocation5 + $0x4a0] sm:$0xff]
        %v451 = vld [vmem:[#allocation5 + $0x4a8] sm:$0xff]
        %v452 = vld [vmem:[#allocation5 + $0x4b0] sm:$0xff]
        %v453 = vld [vmem:[#allocation5 + $0x4b8] sm:$0xff]
        %v454 = vld [vmem:[#allocation5 + $0x4c0] sm:$0xff]
        %v455 = vld [vmem:[#allocation5 + $0x4c8] sm:$0xff]
        %v456 = vld [vmem:[#allocation5 + $0x4d0] sm:$0xff]
        %v457 = vld [vmem:[#allocation5 + $0x4d8] sm:$0xff]
        %v458 = vld [vmem:[#allocation5 + $0x4e0] sm:$0xff]
        %v459 = vld [vmem:[#allocation5 + $0x4e8] sm:$0xff]
        %v460 = vld [vmem:[#allocation5 + $0x4f0] sm:$0xff]
        %v461 = vld [vmem:[#allocation5 + $0x4f8] sm:$0xff]
        %v462 = vld [vmem:[#allocation5 + $0x500] sm:$0xff]
        %v463 = vld [vmem:[#allocation5 + $0x508] sm:$0xff]
        %v464 = vld [vmem:[#allocation5 + $0x510] sm:$0xff]
        %v465 = vld [vmem:[#allocation5 + $0x518] sm:$0xff]
        %v466 = vld [vmem:[#allocation5 + $0x520] sm:$0xff]
        %v467 = vld [vmem:[#allocation5 + $0x528] sm:$0xff]
        %v468 = vld [vmem:[#allocation5 + $0x530] sm:$0xff]
        %v469 = vld [vmem:[#allocation5 + $0x538] sm:$0xff]
        %v470 = vld [vmem:[#allocation5 + $0x540] sm:$0xff]
        %v471 = vld [vmem:[#allocation5 + $0x548] sm:$0xff]
        %v472 = vld [vmem:[#allocation5 + $0x550] sm:$0xff]
        %v473 = vld [vmem:[#allocation5 + $0x558] sm:$0xff]
        %v474 = vld [vmem:[#allocation5 + $0x560] sm:$0xff]
        %v475 = vld [vmem:[#allocation5 + $0x568] sm:$0xff]
        %v476 = vld [vmem:[#allocation5 + $0x570] sm:$0xff]
        %v477 = vld [vmem:[#allocation5 + $0x578] sm:$0xff]
        %v478 = vld [vmem:[#allocation5 + $0x580] sm:$0xff]
        %v479 = vld [vmem:[#allocation5 + $0x588] sm:$0xff]
        %v480 = vld [vmem:[#allocation5 + $0x590] sm:$0xff]
        %v481 = vld [vmem:[#allocation5 + $0x598] sm:$0xff]
        %v482 = vld [vmem:[#allocation5 + $0x5a0] sm:$0xff]
        %v483 = vld [vmem:[#allocation5 + $0x5a8] sm:$0xff]
        %v484 = vld [vmem:[#allocation5 + $0x5b0] sm:$0xff]
        %v485 = vld [vmem:[#allocation5 + $0x5b8] sm:$0xff]
        %v486 = vld [vmem:[#allocation5 + $0x5c0] sm:$0xff]
        %v487 = vld [vmem:[#allocation5 + $0x5c8] sm:$0xff]
        %v488 = vld [vmem:[#allocation5 + $0x5d0] sm:$0xff]
        %v489 = vld [vmem:[#allocation5 + $0x5d8] sm:$0xff]
        %v490 = vld [vmem:[#allocation5 + $0x5e0] sm:$0xff]
        %v491 = vld [vmem:[#allocation5 + $0x5e8] sm:$0xff]
        %v492 = vld [vmem:[#allocation5 + $0x5f0] sm:$0xff]
        %v493 = vld [vmem:[#allocation5 + $0x5f8] sm:$0xff]
        %v686 = vunpack.c.l.b16 %v302
        %v687 = vunpack.c.h.b16 %v302
        %v688 = vunpack.c.l.b16 %v303
        %v689 = vunpack.c.h.b16 %v303
        %v690 = vunpack.c.l.b16 %v304
        %v691 = vunpack.c.h.b16 %v304
        %v692 = vunpack.c.l.b16 %v305
        %v693 = vunpack.c.h.b16 %v305
        %v694 = vunpack.c.l.b16 %v306
        %v695 = vunpack.c.h.b16 %v306
        %v696 = vunpack.c.l.b16 %v307
        %v697 = vunpack.c.h.b16 %v307
        %v698 = vunpack.c.l.b16 %v308
        %v699 = vunpack.c.h.b16 %v308
        %v700 = vunpack.c.l.b16 %v309
        %v701 = vunpack.c.h.b16 %v309
        %v702 = vunpack.c.l.b16 %v310
        %v703 = vunpack.c.h.b16 %v310
        %v704 = vunpack.c.l.b16 %v311
        %v705 = vunpack.c.h.b16 %v311
        %v706 = vunpack.c.l.b16 %v312
        %v707 = vunpack.c.h.b16 %v312
        %v708 = vunpack.c.l.b16 %v313
        %v709 = vunpack.c.h.b16 %v313
        %v710 = vunpack.c.l.b16 %v314
        %v711 = vunpack.c.h.b16 %v314
        %v712 = vunpack.c.l.b16 %v315
        %v713 = vunpack.c.h.b16 %v315
        %v714 = vunpack.c.l.b16 %v316
        %v715 = vunpack.c.h.b16 %v316
        %v716 = vunpack.c.l.b16 %v317
        %v717 = vunpack.c.h.b16 %v317
        %v718 = vunpack.c.l.b16 %v318
        %v719 = vunpack.c.h.b16 %v318
        %v720 = vunpack.c.l.b16 %v319
        %v721 = vunpack.c.h.b16 %v319
        %v722 = vunpack.c.l.b16 %v320
        %v723 = vunpack.c.h.b16 %v320
        %v724 = vunpack.c.l.b16 %v321
        %v725 = vunpack.c.h.b16 %v321
        %v726 = vunpack.c.l.b16 %v322
        %v727 = vunpack.c.h.b16 %v322
        %v728 = vunpack.c.l.b16 %v323
        %v729 = vunpack.c.h.b16 %v323
        %v730 = vunpack.c.l.b16 %v324
        %v731 = vunpack.c.h.b16 %v324
        %v732 = vunpack.c.l.b16 %v325
        %v733 = vunpack.c.h.b16 %v325
        %v734 = vunpack.c.l.b16 %v326
        %v735 = vunpack.c.h.b16 %v326
        %v736 = vunpack.c.l.b16 %v327
        %v737 = vunpack.c.h.b16 %v327
        %v738 = vunpack.c.l.b16 %v328
        %v739 = vunpack.c.h.b16 %v328
        %v740 = vunpack.c.l.b16 %v329
        %v741 = vunpack.c.h.b16 %v329
        %v742 = vunpack.c.l.b16 %v330
        %v743 = vunpack.c.h.b16 %v330
        %v744 = vunpack.c.l.b16 %v331
        %v745 = vunpack.c.h.b16 %v331
        %v746 = vunpack.c.l.b16 %v332
        %v747 = vunpack.c.h.b16 %v332
        %v748 = vunpack.c.l.b16 %v333
        %v749 = vunpack.c.h.b16 %v333
        %v750 = vunpack.c.l.b16 %v334
        %v751 = vunpack.c.h.b16 %v334
        %v752 = vunpack.c.l.b16 %v335
        %v753 = vunpack.c.h.b16 %v335
        %v754 = vunpack.c.l.b16 %v336
        %v755 = vunpack.c.h.b16 %v336
        %v756 = vunpack.c.l.b16 %v337
        %v757 = vunpack.c.h.b16 %v337
        %v758 = vunpack.c.l.b16 %v338
        %v759 = vunpack.c.h.b16 %v338
        %v760 = vunpack.c.l.b16 %v339
        %v761 = vunpack.c.h.b16 %v339
        %v762 = vunpack.c.l.b16 %v340
        %v763 = vunpack.c.h.b16 %v340
        %v764 = vunpack.c.l.b16 %v341
        %v765 = vunpack.c.h.b16 %v341
        %v766 = vunpack.c.l.b16 %v342
        %v767 = vunpack.c.h.b16 %v342
        %v768 = vunpack.c.l.b16 %v343
        %v769 = vunpack.c.h.b16 %v343
        %v770 = vunpack.c.l.b16 %v344
        %v771 = vunpack.c.h.b16 %v344
        %v772 = vunpack.c.l.b16 %v345
        %v773 = vunpack.c.h.b16 %v345
        %v774 = vunpack.c.l.b16 %v346
        %v775 = vunpack.c.h.b16 %v346
        %v776 = vunpack.c.l.b16 %v347
        %v777 = vunpack.c.h.b16 %v347
        %v778 = vunpack.c.l.b16 %v348
        %v779 = vunpack.c.h.b16 %v348
        %v780 = vunpack.c.l.b16 %v349
        %v781 = vunpack.c.h.b16 %v349
        %v782 = vunpack.c.l.b16 %v350
        %v783 = vunpack.c.h.b16 %v350
        %v784 = vunpack.c.l.b16 %v351
        %v785 = vunpack.c.h.b16 %v351
        %v786 = vunpack.c.l.b16 %v352
        %v787 = vunpack.c.h.b16 %v352
        %v788 = vunpack.c.l.b16 %v353
        %v789 = vunpack.c.h.b16 %v353
        %v790 = vunpack.c.l.b16 %v354
        %v791 = vunpack.c.h.b16 %v354
        %v792 = vunpack.c.l.b16 %v355
        %v793 = vunpack.c.h.b16 %v355
        %v794 = vunpack.c.l.b16 %v356
        %v795 = vunpack.c.h.b16 %v356
        %v796 = vunpack.c.l.b16 %v357
        %v797 = vunpack.c.h.b16 %v357
        %v798 = vunpack.c.l.b16 %v358
        %v799 = vunpack.c.h.b16 %v358
        %v800 = vunpack.c.l.b16 %v359
        %v801 = vunpack.c.h.b16 %v359
        %v802 = vunpack.c.l.b16 %v360
        %v803 = vunpack.c.h.b16 %v360
        %v804 = vunpack.c.l.b16 %v361
        %v805 = vunpack.c.h.b16 %v361
        %v806 = vunpack.c.l.b16 %v362
        %v807 = vunpack.c.h.b16 %v362
        %v808 = vunpack.c.l.b16 %v363
        %v809 = vunpack.c.h.b16 %v363
        %v810 = vunpack.c.l.b16 %v364
        %v811 = vunpack.c.h.b16 %v364
        %v812 = vunpack.c.l.b16 %v365
        %v813 = vunpack.c.h.b16 %v365
        %v814 = vunpack.c.l.b16 %v366
        %v815 = vunpack.c.h.b16 %v366
        %v816 = vunpack.c.l.b16 %v367
        %v817 = vunpack.c.h.b16 %v367
        %v818 = vunpack.c.l.b16 %v368
        %v819 = vunpack.c.h.b16 %v368
        %v820 = vunpack.c.l.b16 %v369
        %v821 = vunpack.c.h.b16 %v369
        %v822 = vunpack.c.l.b16 %v370
        %v823 = vunpack.c.h.b16 %v370
        %v824 = vunpack.c.l.b16 %v371
        %v825 = vunpack.c.h.b16 %v371
        %v826 = vunpack.c.l.b16 %v372
        %v827 = vunpack.c.h.b16 %v372
        %v828 = vunpack.c.l.b16 %v373
        %v829 = vunpack.c.h.b16 %v373
        %v830 = vunpack.c.l.b16 %v374
        %v831 = vunpack.c.h.b16 %v374
        %v832 = vunpack.c.l.b16 %v375
        %v833 = vunpack.c.h.b16 %v375
        %v834 = vunpack.c.l.b16 %v376
        %v835 = vunpack.c.h.b16 %v376
        %v836 = vunpack.c.l.b16 %v377
        %v837 = vunpack.c.h.b16 %v377
        %v838 = vunpack.c.l.b16 %v378
        %v839 = vunpack.c.h.b16 %v378
        %v840 = vunpack.c.l.b16 %v379
        %v841 = vunpack.c.h.b16 %v379
        %v842 = vunpack.c.l.b16 %v380
        %v843 = vunpack.c.h.b16 %v380
        %v844 = vunpack.c.l.b16 %v381
        %v845 = vunpack.c.h.b16 %v381
        %v846 = vunpack.c.l.b16 %v382
        %v847 = vunpack.c.h.b16 %v382
        %v848 = vunpack.c.l.b16 %v383
        %v849 = vunpack.c.h.b16 %v383
        %v850 = vunpack.c.l.b16 %v384
        %v851 = vunpack.c.h.b16 %v384
        %v852 = vunpack.c.l.b16 %v385
        %v853 = vunpack.c.h.b16 %v385
        %v854 = vunpack.c.l.b16 %v386
        %v855 = vunpack.c.h.b16 %v386
        %v856 = vunpack.c.l.b16 %v387
        %v857 = vunpack.c.h.b16 %v387
        %v858 = vunpack.c.l.b16 %v388
        %v859 = vunpack.c.h.b16 %v388
        %v860 = vunpack.c.l.b16 %v389
        %v861 = vunpack.c.h.b16 %v389
        %v862 = vunpack.c.l.b16 %v390
        %v863 = vunpack.c.h.b16 %v390
        %v864 = vunpack.c.l.b16 %v391
        %v865 = vunpack.c.h.b16 %v391
        %v866 = vunpack.c.l.b16 %v392
        %v867 = vunpack.c.h.b16 %v392
        %v868 = vunpack.c.l.b16 %v393
        %v869 = vunpack.c.h.b16 %v393
        %v870 = vunpack.c.l.b16 %v394
        %v871 = vunpack.c.h.b16 %v394
        %v872 = vunpack.c.l.b16 %v395
        %v873 = vunpack.c.h.b16 %v395
        %v874 = vunpack.c.l.b16 %v396
        %v875 = vunpack.c.h.b16 %v396
        %v876 = vunpack.c.l.b16 %v397
        %v877 = vunpack.c.h.b16 %v397
        %v878 = vunpack.c.l.b16 %v398
        %v879 = vunpack.c.h.b16 %v398
        %v880 = vunpack.c.l.b16 %v399
        %v881 = vunpack.c.h.b16 %v399
        %v882 = vunpack.c.l.b16 %v400
        %v883 = vunpack.c.h.b16 %v400
        %v884 = vunpack.c.l.b16 %v401
        %v885 = vunpack.c.h.b16 %v401
        %v886 = vunpack.c.l.b16 %v402
        %v887 = vunpack.c.h.b16 %v402
        %v888 = vunpack.c.l.b16 %v403
        %v889 = vunpack.c.h.b16 %v403
        %v890 = vunpack.c.l.b16 %v404
        %v891 = vunpack.c.h.b16 %v404
        %v892 = vunpack.c.l.b16 %v405
        %v893 = vunpack.c.h.b16 %v405
        %v894 = vunpack.c.l.b16 %v406
        %v895 = vunpack.c.h.b16 %v406
        %v896 = vunpack.c.l.b16 %v407
        %v897 = vunpack.c.h.b16 %v407
        %v898 = vunpack.c.l.b16 %v408
        %v899 = vunpack.c.h.b16 %v408
        %v900 = vunpack.c.l.b16 %v409
        %v901 = vunpack.c.h.b16 %v409
        %v902 = vunpack.c.l.b16 %v410
        %v903 = vunpack.c.h.b16 %v410
        %v904 = vunpack.c.l.b16 %v411
        %v905 = vunpack.c.h.b16 %v411
        %v906 = vunpack.c.l.b16 %v412
        %v907 = vunpack.c.h.b16 %v412
        %v908 = vunpack.c.l.b16 %v413
        %v909 = vunpack.c.h.b16 %v413
        %v910 = vunpack.c.l.b16 %v414
        %v911 = vunpack.c.h.b16 %v414
        %v912 = vunpack.c.l.b16 %v415
        %v913 = vunpack.c.h.b16 %v415
        %v914 = vunpack.c.l.b16 %v416
        %v915 = vunpack.c.h.b16 %v416
        %v916 = vunpack.c.l.b16 %v417
        %v917 = vunpack.c.h.b16 %v417
        %v918 = vunpack.c.l.b16 %v418
        %v919 = vunpack.c.h.b16 %v418
        %v920 = vunpack.c.l.b16 %v419
        %v921 = vunpack.c.h.b16 %v419
        %v922 = vunpack.c.l.b16 %v420
        %v923 = vunpack.c.h.b16 %v420
        %v924 = vunpack.c.l.b16 %v421
        %v925 = vunpack.c.h.b16 %v421
        %v926 = vunpack.c.l.b16 %v422
        %v927 = vunpack.c.h.b16 %v422
        %v928 = vunpack.c.l.b16 %v423
        %v929 = vunpack.c.h.b16 %v423
        %v930 = vunpack.c.l.b16 %v424
        %v931 = vunpack.c.h.b16 %v424
        %v932 = vunpack.c.l.b16 %v425
        %v933 = vunpack.c.h.b16 %v425
        %v934 = vunpack.c.l.b16 %v426
        %v935 = vunpack.c.h.b16 %v426
        %v936 = vunpack.c.l.b16 %v427
        %v937 = vunpack.c.h.b16 %v427
        %v938 = vunpack.c.l.b16 %v428
        %v939 = vunpack.c.h.b16 %v428
        %v940 = vunpack.c.l.b16 %v429
        %v941 = vunpack.c.h.b16 %v429
        %v942 = vunpack.c.l.b16 %v430
        %v943 = vunpack.c.h.b16 %v430
        %v944 = vunpack.c.l.b16 %v431
        %v945 = vunpack.c.h.b16 %v431
        %v946 = vunpack.c.l.b16 %v432
        %v947 = vunpack.c.h.b16 %v432
        %v948 = vunpack.c.l.b16 %v433
        %v949 = vunpack.c.h.b16 %v433
        %v950 = vunpack.c.l.b16 %v434
        %v951 = vunpack.c.h.b16 %v434
        %v952 = vunpack.c.l.b16 %v435
        %v953 = vunpack.c.h.b16 %v435
        %v954 = vunpack.c.l.b16 %v436
        %v955 = vunpack.c.h.b16 %v436
        %v956 = vunpack.c.l.b16 %v437
        %v957 = vunpack.c.h.b16 %v437
        %v958 = vunpack.c.l.b16 %v438
        %v959 = vunpack.c.h.b16 %v438
        %v960 = vunpack.c.l.b16 %v439
        %v961 = vunpack.c.h.b16 %v439
        %v962 = vunpack.c.l.b16 %v440
        %v963 = vunpack.c.h.b16 %v440
        %v964 = vunpack.c.l.b16 %v441
        %v965 = vunpack.c.h.b16 %v441
        %v966 = vunpack.c.l.b16 %v442
        %v967 = vunpack.c.h.b16 %v442
        %v968 = vunpack.c.l.b16 %v443
        %v969 = vunpack.c.h.b16 %v443
        %v970 = vunpack.c.l.b16 %v444
        %v971 = vunpack.c.h.b16 %v444
        %v972 = vunpack.c.l.b16 %v445
        %v973 = vunpack.c.h.b16 %v445
        %v974 = vunpack.c.l.b16 %v446
        %v975 = vunpack.c.h.b16 %v446
        %v976 = vunpack.c.l.b16 %v447
        %v977 = vunpack.c.h.b16 %v447
        %v978 = vunpack.c.l.b16 %v448
        %v979 = vunpack.c.h.b16 %v448
        %v980 = vunpack.c.l.b16 %v449
        %v981 = vunpack.c.h.b16 %v449
        %v982 = vunpack.c.l.b16 %v450
        %v983 = vunpack.c.h.b16 %v450
        %v984 = vunpack.c.l.b16 %v451
        %v985 = vunpack.c.h.b16 %v451
        %v986 = vunpack.c.l.b16 %v452
        %v987 = vunpack.c.h.b16 %v452
        %v988 = vunpack.c.l.b16 %v453
        %v989 = vunpack.c.h.b16 %v453
        %v990 = vunpack.c.l.b16 %v454
        %v991 = vunpack.c.h.b16 %v454
        %v992 = vunpack.c.l.b16 %v455
        %v993 = vunpack.c.h.b16 %v455
        %v994 = vunpack.c.l.b16 %v456
        %v995 = vunpack.c.h.b16 %v456
        %v996 = vunpack.c.l.b16 %v457
        %v997 = vunpack.c.h.b16 %v457
        %v998 = vunpack.c.l.b16 %v458
        %v999 = vunpack.c.h.b16 %v458
        %v1000 = vunpack.c.l.b16 %v459
        %v1001 = vunpack.c.h.b16 %v459
        %v1002 = vunpack.c.l.b16 %v460
        %v1003 = vunpack.c.h.b16 %v460
        %v1004 = vunpack.c.l.b16 %v461
        %v1005 = vunpack.c.h.b16 %v461
        %v1006 = vunpack.c.l.b16 %v462
        %v1007 = vunpack.c.h.b16 %v462
        %v1008 = vunpack.c.l.b16 %v463
        %v1009 = vunpack.c.h.b16 %v463
        %v1010 = vunpack.c.l.b16 %v464
        %v1011 = vunpack.c.h.b16 %v464
        %v1012 = vunpack.c.l.b16 %v465
        %v1013 = vunpack.c.h.b16 %v465
        %v1014 = vunpack.c.l.b16 %v466
        %v1015 = vunpack.c.h.b16 %v466
        %v1016 = vunpack.c.l.b16 %v467
        %v1017 = vunpack.c.h.b16 %v467
        %v1018 = vunpack.c.l.b16 %v468
        %v1019 = vunpack.c.h.b16 %v468
        %v1020 = vunpack.c.l.b16 %v469
        %v1021 = vunpack.c.h.b16 %v469
        %v1022 = vunpack.c.l.b16 %v470
        %v1023 = vunpack.c.h.b16 %v470
        %v1024 = vunpack.c.l.b16 %v471
        %v1025 = vunpack.c.h.b16 %v471
        %v1026 = vunpack.c.l.b16 %v472
        %v1027 = vunpack.c.h.b16 %v472
        %v1028 = vunpack.c.l.b16 %v473
        %v1029 = vunpack.c.h.b16 %v473
        %v1030 = vunpack.c.l.b16 %v474
        %v1031 = vunpack.c.h.b16 %v474
        %v1032 = vunpack.c.l.b16 %v475
        %v1033 = vunpack.c.h.b16 %v475
        %v1034 = vunpack.c.l.b16 %v476
        %v1035 = vunpack.c.h.b16 %v476
        %v1036 = vunpack.c.l.b16 %v477
        %v1037 = vunpack.c.h.b16 %v477
        %v1038 = vunpack.c.l.b16 %v478
        %v1039 = vunpack.c.h.b16 %v478
        %v1040 = vunpack.c.l.b16 %v479
        %v1041 = vunpack.c.h.b16 %v479
        %v1042 = vunpack.c.l.b16 %v480
        %v1043 = vunpack.c.h.b16 %v480
        %v1044 = vunpack.c.l.b16 %v481
        %v1045 = vunpack.c.h.b16 %v481
        %v1046 = vunpack.c.l.b16 %v482
        %v1047 = vunpack.c.h.b16 %v482
        %v1048 = vunpack.c.l.b16 %v483
        %v1049 = vunpack.c.h.b16 %v483
        %v1050 = vunpack.c.l.b16 %v484
        %v1051 = vunpack.c.h.b16 %v484
        %v1052 = vunpack.c.l.b16 %v485
        %v1053 = vunpack.c.h.b16 %v485
        %v1054 = vunpack.c.l.b16 %v486
        %v1055 = vunpack.c.h.b16 %v486
        %v1056 = vunpack.c.l.b16 %v487
        %v1057 = vunpack.c.h.b16 %v487
        %v1058 = vunpack.c.l.b16 %v488
        %v1059 = vunpack.c.h.b16 %v488
        %v1060 = vunpack.c.l.b16 %v489
        %v1061 = vunpack.c.h.b16 %v489
        %v1062 = vunpack.c.l.b16 %v490
        %v1063 = vunpack.c.h.b16 %v490
        %v1064 = vunpack.c.l.b16 %v491
        %v1065 = vunpack.c.h.b16 %v491
        %v1066 = vunpack.c.l.b16 %v492
        %v1067 = vunpack.c.h.b16 %v492
        %v1068 = vunpack.c.l.b16 %v493
        %v1069 = vunpack.c.h.b16 %v493
        %v1070 = vpack.c.b16 %v710, %v686
        %v1071 = vpack.c.b16 %v711, %v687
        %v1072 = vpack.c.b16 %v712, %v688
        %v1073 = vpack.c.b16 %v713, %v689
        %v1074 = vpack.c.b16 %v714, %v690
        %v1075 = vpack.c.b16 %v715, %v691
        %v1076 = vpack.c.b16 %v716, %v692
        %v1077 = vpack.c.b16 %v717, %v693
        %v1078 = vpack.c.b16 %v718, %v694
        %v1079 = vpack.c.b16 %v719, %v695
        %v1080 = vpack.c.b16 %v720, %v696
        %v1081 = vpack.c.b16 %v721, %v697
        %v1082 = vpack.c.b16 %v722, %v698
        %v1083 = vpack.c.b16 %v723, %v699
        %v1084 = vpack.c.b16 %v724, %v700
        %v1085 = vpack.c.b16 %v725, %v701
        %v1086 = vpack.c.b16 %v726, %v702
        %v1087 = vpack.c.b16 %v727, %v703
        %v1088 = vpack.c.b16 %v728, %v704
        %v1089 = vpack.c.b16 %v729, %v705
        %v1090 = vpack.c.b16 %v730, %v706
        %v1091 = vpack.c.b16 %v731, %v707
        %v1092 = vpack.c.b16 %v732, %v708
        %v1093 = vpack.c.b16 %v733, %v709
        %v1094 = vpack.c.b16 %v758, %v734
        %v1095 = vpack.c.b16 %v759, %v735
        %v1096 = vpack.c.b16 %v760, %v736
        %v1097 = vpack.c.b16 %v761, %v737
        %v1098 = vpack.c.b16 %v762, %v738
        %v1099 = vpack.c.b16 %v763, %v739
        %v1100 = vpack.c.b16 %v764, %v740
        %v1101 = vpack.c.b16 %v765, %v741
        %v1102 = vpack.c.b16 %v766, %v742
        %v1103 = vpack.c.b16 %v767, %v743
        %v1104 = vpack.c.b16 %v768, %v744
        %v1105 = vpack.c.b16 %v769, %v745
        %v1106 = vpack.c.b16 %v770, %v746
        %v1107 = vpack.c.b16 %v771, %v747
        %v1108 = vpack.c.b16 %v772, %v748
        %v1109 = vpack.c.b16 %v773, %v749
        %v1110 = vpack.c.b16 %v774, %v750
        %v1111 = vpack.c.b16 %v775, %v751
        %v1112 = vpack.c.b16 %v776, %v752
        %v1113 = vpack.c.b16 %v777, %v753
        %v1114 = vpack.c.b16 %v778, %v754
        %v1115 = vpack.c.b16 %v779, %v755
        %v1116 = vpack.c.b16 %v780, %v756
        %v1117 = vpack.c.b16 %v781, %v757
        %v1118 = vpack.c.b16 %v806, %v782
        %v1119 = vpack.c.b16 %v807, %v783
        %v1120 = vpack.c.b16 %v808, %v784
        %v1121 = vpack.c.b16 %v809, %v785
        %v1122 = vpack.c.b16 %v810, %v786
        %v1123 = vpack.c.b16 %v811, %v787
        %v1124 = vpack.c.b16 %v812, %v788
        %v1125 = vpack.c.b16 %v813, %v789
        %v1126 = vpack.c.b16 %v814, %v790
        %v1127 = vpack.c.b16 %v815, %v791
        %v1128 = vpack.c.b16 %v816, %v792
        %v1129 = vpack.c.b16 %v817, %v793
        %v1130 = vpack.c.b16 %v818, %v794
        %v1131 = vpack.c.b16 %v819, %v795
        %v1132 = vpack.c.b16 %v820, %v796
        %v1133 = vpack.c.b16 %v821, %v797
        %v1134 = vpack.c.b16 %v822, %v798
        %v1135 = vpack.c.b16 %v823, %v799
        %v1136 = vpack.c.b16 %v824, %v800
        %v1137 = vpack.c.b16 %v825, %v801
        %v1138 = vpack.c.b16 %v826, %v802
        %v1139 = vpack.c.b16 %v827, %v803
        %v1140 = vpack.c.b16 %v828, %v804
        %v1141 = vpack.c.b16 %v829, %v805
        %v1142 = vpack.c.b16 %v854, %v830
        %v1143 = vpack.c.b16 %v855, %v831
        %v1144 = vpack.c.b16 %v856, %v832
        %v1145 = vpack.c.b16 %v857, %v833
        %v1146 = vpack.c.b16 %v858, %v834
        %v1147 = vpack.c.b16 %v859, %v835
        %v1148 = vpack.c.b16 %v860, %v836
        %v1149 = vpack.c.b16 %v861, %v837
        %v1150 = vpack.c.b16 %v862, %v838
        %v1151 = vpack.c.b16 %v863, %v839
        %v1152 = vpack.c.b16 %v864, %v840
        %v1153 = vpack.c.b16 %v865, %v841
        %v1154 = vpack.c.b16 %v866, %v842
        %v1155 = vpack.c.b16 %v867, %v843
        %v1156 = vpack.c.b16 %v868, %v844
        %v1157 = vpack.c.b16 %v869, %v845
        %v1158 = vpack.c.b16 %v870, %v846
        %v1159 = vpack.c.b16 %v871, %v847
        %v1160 = vpack.c.b16 %v872, %v848
        %v1161 = vpack.c.b16 %v873, %v849
        %v1162 = vpack.c.b16 %v874, %v850
        %v1163 = vpack.c.b16 %v875, %v851
        %v1164 = vpack.c.b16 %v876, %v852
        %v1165 = vpack.c.b16 %v877, %v853
        %v1166 = vpack.c.b16 %v902, %v878
        %v1167 = vpack.c.b16 %v903, %v879
        %v1168 = vpack.c.b16 %v904, %v880
        %v1169 = vpack.c.b16 %v905, %v881
        %v1170 = vpack.c.b16 %v906, %v882
        %v1171 = vpack.c.b16 %v907, %v883
        %v1172 = vpack.c.b16 %v908, %v884
        %v1173 = vpack.c.b16 %v909, %v885
        %v1174 = vpack.c.b16 %v910, %v886
        %v1175 = vpack.c.b16 %v911, %v887
        %v1176 = vpack.c.b16 %v912, %v888
        %v1177 = vpack.c.b16 %v913, %v889
        %v1178 = vpack.c.b16 %v914, %v890
        %v1179 = vpack.c.b16 %v915, %v891
        %v1180 = vpack.c.b16 %v916, %v892
        %v1181 = vpack.c.b16 %v917, %v893
        %v1182 = vpack.c.b16 %v918, %v894
        %v1183 = vpack.c.b16 %v919, %v895
        %v1184 = vpack.c.b16 %v920, %v896
        %v1185 = vpack.c.b16 %v921, %v897
        %v1186 = vpack.c.b16 %v922, %v898
        %v1187 = vpack.c.b16 %v923, %v899
        %v1188 = vpack.c.b16 %v924, %v900
        %v1189 = vpack.c.b16 %v925, %v901
        %v1190 = vpack.c.b16 %v950, %v926
        %v1191 = vpack.c.b16 %v951, %v927
        %v1192 = vpack.c.b16 %v952, %v928
        %v1193 = vpack.c.b16 %v953, %v929
        %v1194 = vpack.c.b16 %v954, %v930
        %v1195 = vpack.c.b16 %v955, %v931
        %v1196 = vpack.c.b16 %v956, %v932
        %v1197 = vpack.c.b16 %v957, %v933
        %v1198 = vpack.c.b16 %v958, %v934
        %v1199 = vpack.c.b16 %v959, %v935
        %v1200 = vpack.c.b16 %v960, %v936
        %v1201 = vpack.c.b16 %v961, %v937
        %v1202 = vpack.c.b16 %v962, %v938
        %v1203 = vpack.c.b16 %v963, %v939
        %v1204 = vpack.c.b16 %v964, %v940
        %v1205 = vpack.c.b16 %v965, %v941
        %v1206 = vpack.c.b16 %v966, %v942
        %v1207 = vpack.c.b16 %v967, %v943
        %v1208 = vpack.c.b16 %v968, %v944
        %v1209 = vpack.c.b16 %v969, %v945
        %v1210 = vpack.c.b16 %v970, %v946
        %v1211 = vpack.c.b16 %v971, %v947
        %v1212 = vpack.c.b16 %v972, %v948
        %v1213 = vpack.c.b16 %v973, %v949
        %v1214 = vpack.c.b16 %v998, %v974
        %v1215 = vpack.c.b16 %v999, %v975
        %v1216 = vpack.c.b16 %v1000, %v976
        %v1217 = vpack.c.b16 %v1001, %v977
        %v1218 = vpack.c.b16 %v1002, %v978
        %v1219 = vpack.c.b16 %v1003, %v979
        %v1220 = vpack.c.b16 %v1004, %v980
        %v1221 = vpack.c.b16 %v1005, %v981
        %v1222 = vpack.c.b16 %v1006, %v982
        %v1223 = vpack.c.b16 %v1007, %v983
        %v1224 = vpack.c.b16 %v1008, %v984
        %v1225 = vpack.c.b16 %v1009, %v985
        %v1226 = vpack.c.b16 %v1010, %v986
        %v1227 = vpack.c.b16 %v1011, %v987
        %v1228 = vpack.c.b16 %v1012, %v988
        %v1229 = vpack.c.b16 %v1013, %v989
        %v1230 = vpack.c.b16 %v1014, %v990
        %v1231 = vpack.c.b16 %v1015, %v991
        %v1232 = vpack.c.b16 %v1016, %v992
        %v1233 = vpack.c.b16 %v1017, %v993
        %v1234 = vpack.c.b16 %v1018, %v994
        %v1235 = vpack.c.b16 %v1019, %v995
        %v1236 = vpack.c.b16 %v1020, %v996
        %v1237 = vpack.c.b16 %v1021, %v997
        %v1238 = vpack.c.b16 %v1046, %v1022
        %v1239 = vpack.c.b16 %v1047, %v1023
        %v1240 = vpack.c.b16 %v1048, %v1024
        %v1241 = vpack.c.b16 %v1049, %v1025
        %v1242 = vpack.c.b16 %v1050, %v1026
        %v1243 = vpack.c.b16 %v1051, %v1027
        %v1244 = vpack.c.b16 %v1052, %v1028
        %v1245 = vpack.c.b16 %v1053, %v1029
        %v1246 = vpack.c.b16 %v1054, %v1030
        %v1247 = vpack.c.b16 %v1055, %v1031
        %v1248 = vpack.c.b16 %v1056, %v1032
        %v1249 = vpack.c.b16 %v1057, %v1033
        %v1250 = vpack.c.b16 %v1058, %v1034
        %v1251 = vpack.c.b16 %v1059, %v1035
        %v1252 = vpack.c.b16 %v1060, %v1036
        %v1253 = vpack.c.b16 %v1061, %v1037
        %v1254 = vpack.c.b16 %v1062, %v1038
        %v1255 = vpack.c.b16 %v1063, %v1039
        %v1256 = vpack.c.b16 %v1064, %v1040
        %v1257 = vpack.c.b16 %v1065, %v1041
        %v1258 = vpack.c.b16 %v1066, %v1042
        %v1259 = vpack.c.b16 %v1067, %v1043
        %v1260 = vpack.c.b16 %v1068, %v1044
        %v1261 = vpack.c.b16 %v1069, %v1045
        %1454 = vmatprep.subr.bf16.mxu0 %v1071
        %1455 = vmatpush1.bf16.msra.mxu0 %v1070
        %1456 = vmatprep.subr.bf16.mxu0 %v1095
        %1457 = vmatpush1.bf16.msra.mxu0 %v1094
        %1458 = vmatprep.subr.bf16.mxu0 %v1119
        %1459 = vmatpush1.bf16.msra.mxu0 %v1118
        %1460 = vmatprep.subr.bf16.mxu0 %v1143
        %1461 = vmatpush1.bf16.msra.mxu0 %v1142
        %1462 = vmatprep.subr.bf16.mxu0 %v1167
        %1463 = vmatpush1.bf16.msra.mxu0 %v1166
        %1464 = vmatprep.subr.bf16.mxu0 %v1191
        %1465 = vmatpush1.bf16.msra.mxu0 %v1190
        %1466 = vmatprep.subr.bf16.mxu0 %v1215
        %1467 = vmatpush1.bf16.msra.mxu0 %v1214
        %1468 = vmatprep.subr.bf16.mxu0 %v1239
        %1469 = vmatpush1.bf16.msra.mxu0 %v1238
        %1470 = vmatprep.subr.bf16.mxu0 0
        %1471 = vmatpush1.bf16.msra.mxu0 0
        %1472 = vmatprep.subr.bf16.mxu0 0
        %1473 = vmatpush1.bf16.msra.mxu0 0
        %1474 = vmatprep.subr.bf16.mxu0 0
        %1475 = vmatpush1.bf16.msra.mxu0 0
        %1476 = vmatprep.subr.bf16.mxu0 0
        %1477 = vmatpush1.bf16.msra.mxu0 0
        %1478 = vmatprep.subr.bf16.mxu0 0
        %1479 = vmatpush1.bf16.msra.mxu0 0
        %1480 = vmatprep.subr.bf16.mxu0 0
        %1481 = vmatpush1.bf16.msra.mxu0 0
        %1482 = vmatprep.subr.bf16.mxu0 0
        %1483 = vmatpush1.bf16.msra.mxu0 0
        %1484 = vmatprep.subr.bf16.mxu0 0
        %1485 = vmatpush1.bf16.msra.mxu0 0
        %1486 = vmatprep.mubr.bf16.mxu0 0
        %1487 = vmatmul.mubr.bf16.gmra.mrb[0].mxu0 %v298
        %v1488 = vpop.f32.mrb[0].mxu0
        %v1489 = vadd.f32 0.0, %v1488
        %v1490 = vpop.f32.mrb[0].mxu0
        %v1491 = vadd.f32 0.0, %v1490
        %v1492 = vpop.f32.mrb[0].mxu0
        %v1493 = vadd.f32 0.0, %v1492
        %v1494 = vpop.f32.mrb[0].mxu0
        %v1495 = vadd.f32 0.0, %v1494
        %1496 = vmatprep.mubr.bf16.mxu0 0
        %1497 = vmatmul.mubr.bf16.gmra.mrb[0].mxu0 %v299
        %v1498 = vpop.f32.mrb[0].mxu0
        %v1499 = vadd.f32 0.0, %v1498
        %v1500 = vpop.f32.mrb[0].mxu0
        %v1501 = vadd.f32 0.0, %v1500
        %v1502 = vpop.f32.mrb[0].mxu0
        %v1503 = vadd.f32 0.0, %v1502
        %v1504 = vpop.f32.mrb[0].mxu0
        %v1505 = vadd.f32 0.0, %v1504
        %1506 = vmatprep.mubr.bf16.mxu0 0
        %1507 = vmatmul.mubr.bf16.gmra.mrb[0].mxu0 %v300
        %v1508 = vpop.f32.mrb[0].mxu0
        %v1509 = vadd.f32 0.0, %v1508
        %v1510 = vpop.f32.mrb[0].mxu0
        %v1511 = vadd.f32 0.0, %v1510
        %v1512 = vpop.f32.mrb[0].mxu0
        %v1513 = vadd.f32 0.0, %v1512
        %v1514 = vpop.f32.mrb[0].mxu0
        %v1515 = vadd.f32 0.0, %v1514
        %1516 = vmatprep.mubr.bf16.mxu0 0
        %1517 = vmatmul.mubr.bf16.gmra.mrb[0].mxu0 %v301
        %v1518 = vpop.f32.mrb[0].mxu0
        %v1519 = vadd.f32 0.0, %v1518
        %v1520 = vpop.f32.mrb[0].mxu0
        %v1521 = vadd.f32 0.0, %v1520
        %v1522 = vpop.f32.mrb[0].mxu0
        %v1523 = vadd.f32 0.0, %v1522
        %v1524 = vpop.f32.mrb[0].mxu0
        %v1525 = vadd.f32 0.0, %v1524
        %1526 = vdwg.mxu0
        %1527 = vmatprep.subr.bf16.mxu0 %v1073
        %1528 = vmatpush1.bf16.msra.mxu0 %v1072
        %1529 = vmatprep.subr.bf16.mxu0 %v1097
        %1530 = vmatpush1.bf16.msra.mxu0 %v1096
        %1531 = vmatprep.subr.bf16.mxu0 %v1121
        %1532 = vmatpush1.bf16.msra.mxu0 %v1120
        %1533 = vmatprep.subr.bf16.mxu0 %v1145
        %1534 = vmatpush1.bf16.msra.mxu0 %v1144
        %1535 = vmatprep.subr.bf16.mxu0 %v1169
        %1536 = vmatpush1.bf16.msra.mxu0 %v1168
        %1537 = vmatprep.subr.bf16.mxu0 %v1193
        %1538 = vmatpush1.bf16.msra.mxu0 %v1192
        %1539 = vmatprep.subr.bf16.mxu0 %v1217
        %1540 = vmatpush1.bf16.msra.mxu0 %v1216
        %1541 = vmatprep.subr.bf16.mxu0 %v1241
        %1542 = vmatpush1.bf16.msra.mxu0 %v1240
        %1543 = vmatprep.subr.bf16.mxu0 0
        %1544 = vmatpush1.bf16.msra.mxu0 0
        %1545 = vmatprep.subr.bf16.mxu0 0
        %1546 = vmatpush1.bf16.msra.mxu0 0
        %1547 = vmatprep.subr.bf16.mxu0 0
        %1548 = vmatpush1.bf16.msra.mxu0 0
        %1549 = vmatprep.subr.bf16.mxu0 0
        %1550 = vmatpush1.bf16.msra.mxu0 0
        %1551 = vmatprep.subr.bf16.mxu0 0
        %1552 = vmatpush1.bf16.msra.mxu0 0
        %1553 = vmatprep.subr.bf16.mxu0 0
        %1554 = vmatpush1.bf16.msra.mxu0 0
        %1555 = vmatprep.subr.bf16.mxu0 0
        %1556 = vmatpush1.bf16.msra.mxu0 0
        %1557 = vmatprep.subr.bf16.mxu0 0
        %1558 = vmatpush1.bf16.msra.mxu0 0
        %1559 = vmatprep.mubr.bf16.mxu0 0
        %1560 = vmatmul.mubr.bf16.gmra.mrb[0].mxu0 %v298
        %v1561 = vpop.f32.mrb[0].mxu0
        %v1562 = vadd.f32 0.0, %v1561
        %v1563 = vpop.f32.mrb[0].mxu0
        %v1564 = vadd.f32 0.0, %v1563
        %v1565 = vpop.f32.mrb[0].mxu0
        %v1566 = vadd.f32 0.0, %v1565
        %v1567 = vpop.f32.mrb[0].mxu0
        %v1568 = vadd.f32 0.0, %v1567
        %1569 = vmatprep.mubr.bf16.mxu0 0
        %1570 = vmatmul.mubr.bf16.gmra.mrb[0].mxu0 %v299
        %v1571 = vpop.f32.mrb[0].mxu0
        %v1572 = vadd.f32 0.0, %v1571
        %v1573 = vpop.f32.mrb[0].mxu0
        %v1574 = vadd.f32 0.0, %v1573
        %v1575 = vpop.f32.mrb[0].mxu0
        %v1576 = vadd.f32 0.0, %v1575
        %v1577 = vpop.f32.mrb[0].mxu0
        %v1578 = vadd.f32 0.0, %v1577
        %1579 = vmatprep.mubr.bf16.mxu0 0
        %1580 = vmatmul.mubr.bf16.gmra.mrb[0].mxu0 %v300
        %v1581 = vpop.f32.mrb[0].mxu0
        %v1582 = vadd.f32 0.0, %v1581
        %v1583 = vpop.f32.mrb[0].mxu0
        %v1584 = vadd.f32 0.0, %v1583
        %v1585 = vpop.f32.mrb[0].mxu0
        %v1586 = vadd.f32 0.0, %v1585
        %v1587 = vpop.f32.mrb[0].mxu0
        %v1588 = vadd.f32 0.0, %v1587
        %1589 = vmatprep.mubr.bf16.mxu0 0
        %1590 = vmatmul.mubr.bf16.gmra.mrb[0].mxu0 %v301
        %v1591 = vpop.f32.mrb[0].mxu0
        %v1592 = vadd.f32 0.0, %v1591
        %v1593 = vpop.f32.mrb[0].mxu0
        %v1594 = vadd.f32 0.0, %v1593
        %v1595 = vpop.f32.mrb[0].mxu0
        %v1596 = vadd.f32 0.0, %v1595
        %v1597 = vpop.f32.mrb[0].mxu0
        %v1598 = vadd.f32 0.0, %v1597
        %1599 = vdwg.mxu0
        %1600 = vmatprep.subr.bf16.mxu0 %v1075
        %1601 = vmatpush1.bf16.msra.mxu0 %v1074
        %1602 = vmatprep.subr.bf16.mxu0 %v1099
        %1603 = vmatpush1.bf16.msra.mxu0 %v1098
        %1604 = vmatprep.subr.bf16.mxu0 %v1123
        %1605 = vmatpush1.bf16.msra.mxu0 %v1122
        %1606 = vmatprep.subr.bf16.mxu0 %v1147
        %1607 = vmatpush1.bf16.msra.mxu0 %v1146
        %1608 = vmatprep.subr.bf16.mxu0 %v1171
        %1609 = vmatpush1.bf16.msra.mxu0 %v1170
        %1610 = vmatprep.subr.bf16.mxu0 %v1195
        %1611 = vmatpush1.bf16.msra.mxu0 %v1194
        %1612 = vmatprep.subr.bf16.mxu0 %v1219
        %1613 = vmatpush1.bf16.msra.mxu0 %v1218
        %1614 = vmatprep.subr.bf16.mxu0 %v1243
        %1615 = vmatpush1.bf16.msra.mxu0 %v1242
        %1616 = vmatprep.subr.bf16.mxu0 0
        %1617 = vmatpush1.bf16.msra.mxu0 0
        %1618 = vmatprep.subr.bf16.mxu0 0
        %1619 = vmatpush1.bf16.msra.mxu0 0
        %1620 = vmatprep.subr.bf16.mxu0 0
        %1621 = vmatpush1.bf16.msra.mxu0 0
        %1622 = vmatprep.subr.bf16.mxu0 0
        %1623 = vmatpush1.bf16.msra.mxu0 0
        %1624 = vmatprep.subr.bf16.mxu0 0
        %1625 = vmatpush1.bf16.msra.mxu0 0
        %1626 = vmatprep.subr.bf16.mxu0 0
        %1627 = vmatpush1.bf16.msra.mxu0 0
        %1628 = vmatprep.subr.bf16.mxu0 0
        %1629 = vmatpush1.bf16.msra.mxu0 0
        %1630 = vmatprep.subr.bf16.mxu0 0
        %1631 = vmatpush1.bf16.msra.mxu0 0
        %1632 = vmatprep.mubr.bf16.mxu0 0
        %1633 = vmatmul.mubr.bf16.gmra.mrb[0].mxu0 %v298
        %v1634 = vpop.f32.mrb[0].mxu0
        %v1635 = vadd.f32 0.0, %v1634
        %v1636 = vpop.f32.mrb[0].mxu0
        %v1637 = vadd.f32 0.0, %v1636
        %v1638 = vpop.f32.mrb[0].mxu0
        %v1639 = vadd.f32 0.0, %v1638
        %v1640 = vpop.f32.mrb[0].mxu0
        %v1641 = vadd.f32 0.0, %v1640
        %1642 = vmatprep.mubr.bf16.mxu0 0
        %1643 = vmatmul.mubr.bf16.gmra.mrb[0].mxu0 %v299
        %v1644 = vpop.f32.mrb[0].mxu0
        %v1645 = vadd.f32 0.0, %v1644
        %v1646 = vpop.f32.mrb[0].mxu0
        %v1647 = vadd.f32 0.0, %v1646
        %v1648 = vpop.f32.mrb[0].mxu0
        %v1649 = vadd.f32 0.0, %v1648
        %v1650 = vpop.f32.mrb[0].mxu0
        %v1651 = vadd.f32 0.0, %v1650
        %1652 = vmatprep.mubr.bf16.mxu0 0
        %1653 = vmatmul.mubr.bf16.gmra.mrb[0].mxu0 %v300
        %v1654 = vpop.f32.mrb[0].mxu0
        %v1655 = vadd.f32 0.0, %v1654
        %v1656 = vpop.f32.mrb[0].mxu0
        %v1657 = vadd.f32 0.0, %v1656
        %v1658 = vpop.f32.mrb[0].mxu0
        %v1659 = vadd.f32 0.0, %v1658
        %v1660 = vpop.f32.mrb[0].mxu0
        %v1661 = vadd.f32 0.0, %v1660
        %1662 = vmatprep.mubr.bf16.mxu0 0
        %1663 = vmatmul.mubr.bf16.gmra.mrb[0].mxu0 %v301
        %v1664 = vpop.f32.mrb[0].mxu0
        %v1665 = vadd.f32 0.0, %v1664
        %v1666 = vpop.f32.mrb[0].mxu0
        %v1667 = vadd.f32 0.0, %v1666
        %v1668 = vpop.f32.mrb[0].mxu0
        %v1669 = vadd.f32 0.0, %v1668
        %v1670 = vpop.f32.mrb[0].mxu0
        %v1671 = vadd.f32 0.0, %v1670
        %1672 = vdwg.mxu0
        %1673 = vmatprep.subr.bf16.mxu0 %v1077
        %1674 = vmatpush1.bf16.msra.mxu0 %v1076
        %1675 = vmatprep.subr.bf16.mxu0 %v1101
        %1676 = vmatpush1.bf16.msra.mxu0 %v1100
        %1677 = vmatprep.subr.bf16.mxu0 %v1125
        %1678 = vmatpush1.bf16.msra.mxu0 %v1124
        %1679 = vmatprep.subr.bf16.mxu0 %v1149
        %1680 = vmatpush1.bf16.msra.mxu0 %v1148
        %1681 = vmatprep.subr.bf16.mxu0 %v1173
        %1682 = vmatpush1.bf16.msra.mxu0 %v1172
        %1683 = vmatprep.subr.bf16.mxu0 %v1197
        %1684 = vmatpush1.bf16.msra.mxu0 %v1196
        %1685 = vmatprep.subr.bf16.mxu0 %v1221
        %1686 = vmatpush1.bf16.msra.mxu0 %v1220
        %1687 = vmatprep.subr.bf16.mxu0 %v1245
        %1688 = vmatpush1.bf16.msra.mxu0 %v1244
        %1689 = vmatprep.subr.bf16.mxu0 0
        %1690 = vmatpush1.bf16.msra.mxu0 0
        %1691 = vmatprep.subr.bf16.mxu0 0
        %1692 = vmatpush1.bf16.msra.mxu0 0
        %1693 = vmatprep.subr.bf16.mxu0 0
        %1694 = vmatpush1.bf16.msra.mxu0 0
        %1695 = vmatprep.subr.bf16.mxu0 0
        %1696 = vmatpush1.bf16.msra.mxu0 0
        %1697 = vmatprep.subr.bf16.mxu0 0
        %1698 = vmatpush1.bf16.msra.mxu0 0
        %1699 = vmatprep.subr.bf16.mxu0 0
        %1700 = vmatpush1.bf16.msra.mxu0 0
        %1701 = vmatprep.subr.bf16.mxu0 0
        %1702 = vmatpush1.bf16.msra.mxu0 0
        %1703 = vmatprep.subr.bf16.mxu0 0
        %1704 = vmatpush1.bf16.msra.mxu0 0
        %1705 = vmatprep.mubr.bf16.mxu0 0
        %1706 = vmatmul.mubr.bf16.gmra.mrb[0].mxu0 %v298
        %v1707 = vpop.f32.mrb[0].mxu0
        %v1708 = vadd.f32 0.0, %v1707
        %v1709 = vpop.f32.mrb[0].mxu0
        %v1710 = vadd.f32 0.0, %v1709
        %v1711 = vpop.f32.mrb[0].mxu0
        %v1712 = vadd.f32 0.0, %v1711
        %v1713 = vpop.f32.mrb[0].mxu0
        %v1714 = vadd.f32 0.0, %v1713
        %1715 = vmatprep.mubr.bf16.mxu0 0
        %1716 = vmatmul.mubr.bf16.gmra.mrb[0].mxu0 %v299
        %v1717 = vpop.f32.mrb[0].mxu0
        %v1718 = vadd.f32 0.0, %v1717
        %v1719 = vpop.f32.mrb[0].mxu0
        %v1720 = vadd.f32 0.0, %v1719
        %v1721 = vpop.f32.mrb[0].mxu0
        %v1722 = vadd.f32 0.0, %v1721
        %v1723 = vpop.f32.mrb[0].mxu0
        %v1724 = vadd.f32 0.0, %v1723
        %1725 = vmatprep.mubr.bf16.mxu0 0
        %1726 = vmatmul.mubr.bf16.gmra.mrb[0].mxu0 %v300
        %v1727 = vpop.f32.mrb[0].mxu0
        %v1728 = vadd.f32 0.0, %v1727
        %v1729 = vpop.f32.mrb[0].mxu0
        %v1730 = vadd.f32 0.0, %v1729
        %v1731 = vpop.f32.mrb[0].mxu0
        %v1732 = vadd.f32 0.0, %v1731
        %v1733 = vpop.f32.mrb[0].mxu0
        %v1734 = vadd.f32 0.0, %v1733
        %1735 = vmatprep.mubr.bf16.mxu0 0
        %1736 = vmatmul.mubr.bf16.gmra.mrb[0].mxu0 %v301
        %v1737 = vpop.f32.mrb[0].mxu0
        %v1738 = vadd.f32 0.0, %v1737
        %v1739 = vpop.f32.mrb[0].mxu0
        %v1740 = vadd.f32 0.0, %v1739
        %v1741 = vpop.f32.mrb[0].mxu0
        %v1742 = vadd.f32 0.0, %v1741
        %v1743 = vpop.f32.mrb[0].mxu0
        %v1744 = vadd.f32 0.0, %v1743
        %1745 = vdwg.mxu0
        %1746 = vmatprep.subr.bf16.mxu0 %v1079
        %1747 = vmatpush1.bf16.msra.mxu0 %v1078
        %1748 = vmatprep.subr.bf16.mxu0 %v1103
        %1749 = vmatpush1.bf16.msra.mxu0 %v1102
        %1750 = vmatprep.subr.bf16.mxu0 %v1127
        %1751 = vmatpush1.bf16.msra.mxu0 %v1126
        %1752 = vmatprep.subr.bf16.mxu0 %v1151
        %1753 = vmatpush1.bf16.msra.mxu0 %v1150
        %1754 = vmatprep.subr.bf16.mxu0 %v1175
        %1755 = vmatpush1.bf16.msra.mxu0 %v1174
        %1756 = vmatprep.subr.bf16.mxu0 %v1199
        %1757 = vmatpush1.bf16.msra.mxu0 %v1198
        %1758 = vmatprep.subr.bf16.mxu0 %v1223
        %1759 = vmatpush1.bf16.msra.mxu0 %v1222
        %1760 = vmatprep.subr.bf16.mxu0 %v1247
        %1761 = vmatpush1.bf16.msra.mxu0 %v1246
        %1762 = vmatprep.subr.bf16.mxu0 0
        %1763 = vmatpush1.bf16.msra.mxu0 0
        %1764 = vmatprep.subr.bf16.mxu0 0
        %1765 = vmatpush1.bf16.msra.mxu0 0
        %1766 = vmatprep.subr.bf16.mxu0 0
        %1767 = vmatpush1.bf16.msra.mxu0 0
        %1768 = vmatprep.subr.bf16.mxu0 0
        %1769 = vmatpush1.bf16.msra.mxu0 0
        %1770 = vmatprep.subr.bf16.mxu0 0
        %1771 = vmatpush1.bf16.msra.mxu0 0
        %1772 = vmatprep.subr.bf16.mxu0 0
        %1773 = vmatpush1.bf16.msra.mxu0 0
        %1774 = vmatprep.subr.bf16.mxu0 0
        %1775 = vmatpush1.bf16.msra.mxu0 0
        %1776 = vmatprep.subr.bf16.mxu0 0
        %1777 = vmatpush1.bf16.msra.mxu0 0
        %1778 = vmatprep.mubr.bf16.mxu0 0
        %1779 = vmatmul.mubr.bf16.gmra.mrb[0].mxu0 %v298
        %v1780 = vpop.f32.mrb[0].mxu0
        %v1781 = vadd.f32 0.0, %v1780
        %v1782 = vpop.f32.mrb[0].mxu0
        %v1783 = vadd.f32 0.0, %v1782
        %v1784 = vpop.f32.mrb[0].mxu0
        %v1785 = vadd.f32 0.0, %v1784
        %v1786 = vpop.f32.mrb[0].mxu0
        %v1787 = vadd.f32 0.0, %v1786
        %1788 = vmatprep.mubr.bf16.mxu0 0
        %1789 = vmatmul.mubr.bf16.gmra.mrb[0].mxu0 %v299
        %v1790 = vpop.f32.mrb[0].mxu0
        %v1791 = vadd.f32 0.0, %v1790
        %v1792 = vpop.f32.mrb[0].mxu0
        %v1793 = vadd.f32 0.0, %v1792
        %v1794 = vpop.f32.mrb[0].mxu0
        %v1795 = vadd.f32 0.0, %v1794
        %v1796 = vpop.f32.mrb[0].mxu0
        %v1797 = vadd.f32 0.0, %v1796
        %1798 = vmatprep.mubr.bf16.mxu0 0
        %1799 = vmatmul.mubr.bf16.gmra.mrb[0].mxu0 %v300
        %v1800 = vpop.f32.mrb[0].mxu0
        %v1801 = vadd.f32 0.0, %v1800
        %v1802 = vpop.f32.mrb[0].mxu0
        %v1803 = vadd.f32 0.0, %v1802
        %v1804 = vpop.f32.mrb[0].mxu0
        %v1805 = vadd.f32 0.0, %v1804
        %v1806 = vpop.f32.mrb[0].mxu0
        %v1807 = vadd.f32 0.0, %v1806
        %1808 = vmatprep.mubr.bf16.mxu0 0
        %1809 = vmatmul.mubr.bf16.gmra.mrb[0].mxu0 %v301
        %v1810 = vpop.f32.mrb[0].mxu0
        %v1811 = vadd.f32 0.0, %v1810
        %v1812 = vpop.f32.mrb[0].mxu0
        %v1813 = vadd.f32 0.0, %v1812
        %v1814 = vpop.f32.mrb[0].mxu0
        %v1815 = vadd.f32 0.0, %v1814
        %v1816 = vpop.f32.mrb[0].mxu0
        %v1817 = vadd.f32 0.0, %v1816
        %1818 = vdwg.mxu0
        %1819 = vmatprep.subr.bf16.mxu0 %v1081
        %1820 = vmatpush1.bf16.msra.mxu0 %v1080
        %1821 = vmatprep.subr.bf16.mxu0 %v1105
        %1822 = vmatpush1.bf16.msra.mxu0 %v1104
        %1823 = vmatprep.subr.bf16.mxu0 %v1129
        %1824 = vmatpush1.bf16.msra.mxu0 %v1128
        %1825 = vmatprep.subr.bf16.mxu0 %v1153
        %1826 = vmatpush1.bf16.msra.mxu0 %v1152
        %1827 = vmatprep.subr.bf16.mxu0 %v1177
        %1828 = vmatpush1.bf16.msra.mxu0 %v1176
        %1829 = vmatprep.subr.bf16.mxu0 %v1201
        %1830 = vmatpush1.bf16.msra.mxu0 %v1200
        %1831 = vmatprep.subr.bf16.mxu0 %v1225
        %1832 = vmatpush1.bf16.msra.mxu0 %v1224
        %1833 = vmatprep.subr.bf16.mxu0 %v1249
        %1834 = vmatpush1.bf16.msra.mxu0 %v1248
        %1835 = vmatprep.subr.bf16.mxu0 0
        %1836 = vmatpush1.bf16.msra.mxu0 0
        %1837 = vmatprep.subr.bf16.mxu0 0
        %1838 = vmatpush1.bf16.msra.mxu0 0
        %1839 = vmatprep.subr.bf16.mxu0 0
        %1840 = vmatpush1.bf16.msra.mxu0 0
        %1841 = vmatprep.subr.bf16.mxu0 0
        %1842 = vmatpush1.bf16.msra.mxu0 0
        %1843 = vmatprep.subr.bf16.mxu0 0
        %1844 = vmatpush1.bf16.msra.mxu0 0
        %1845 = vmatprep.subr.bf16.mxu0 0
        %1846 = vmatpush1.bf16.msra.mxu0 0
        %1847 = vmatprep.subr.bf16.mxu0 0
        %1848 = vmatpush1.bf16.msra.mxu0 0
        %1849 = vmatprep.subr.bf16.mxu0 0
        %1850 = vmatpush1.bf16.msra.mxu0 0
        %1851 = vmatprep.mubr.bf16.mxu0 0
        %1852 = vmatmul.mubr.bf16.gmra.mrb[0].mxu0 %v298
        %v1853 = vpop.f32.mrb[0].mxu0
        %v1854 = vadd.f32 0.0, %v1853
        %v1855 = vpop.f32.mrb[0].mxu0
        %v1856 = vadd.f32 0.0, %v1855
        %v1857 = vpop.f32.mrb[0].mxu0
        %v1858 = vadd.f32 0.0, %v1857
        %v1859 = vpop.f32.mrb[0].mxu0
        %v1860 = vadd.f32 0.0, %v1859
        %1861 = vmatprep.mubr.bf16.mxu0 0
        %1862 = vmatmul.mubr.bf16.gmra.mrb[0].mxu0 %v299
        %v1863 = vpop.f32.mrb[0].mxu0
        %v1864 = vadd.f32 0.0, %v1863
        %v1865 = vpop.f32.mrb[0].mxu0
        %v1866 = vadd.f32 0.0, %v1865
        %v1867 = vpop.f32.mrb[0].mxu0
        %v1868 = vadd.f32 0.0, %v1867
        %v1869 = vpop.f32.mrb[0].mxu0
        %v1870 = vadd.f32 0.0, %v1869
        %1871 = vmatprep.mubr.bf16.mxu0 0
        %1872 = vmatmul.mubr.bf16.gmra.mrb[0].mxu0 %v300
        %v1873 = vpop.f32.mrb[0].mxu0
        %v1874 = vadd.f32 0.0, %v1873
        %v1875 = vpop.f32.mrb[0].mxu0
        %v1876 = vadd.f32 0.0, %v1875
        %v1877 = vpop.f32.mrb[0].mxu0
        %v1878 = vadd.f32 0.0, %v1877
        %v1879 = vpop.f32.mrb[0].mxu0
        %v1880 = vadd.f32 0.0, %v1879
        %1881 = vmatprep.mubr.bf16.mxu0 0
        %1882 = vmatmul.mubr.bf16.gmra.mrb[0].mxu0 %v301
        %v1883 = vpop.f32.mrb[0].mxu0
        %v1884 = vadd.f32 0.0, %v1883
        %v1885 = vpop.f32.mrb[0].mxu0
        %v1886 = vadd.f32 0.0, %v1885
        %v1887 = vpop.f32.mrb[0].mxu0
        %v1888 = vadd.f32 0.0, %v1887
        %v1889 = vpop.f32.mrb[0].mxu0
        %v1890 = vadd.f32 0.0, %v1889
        %1891 = vdwg.mxu0
        %1892 = vmatprep.subr.bf16.mxu0 %v1083
        %1893 = vmatpush1.bf16.msra.mxu0 %v1082
        %1894 = vmatprep.subr.bf16.mxu0 %v1107
        %1895 = vmatpush1.bf16.msra.mxu0 %v1106
        %1896 = vmatprep.subr.bf16.mxu0 %v1131
        %1897 = vmatpush1.bf16.msra.mxu0 %v1130
        %1898 = vmatprep.subr.bf16.mxu0 %v1155
        %1899 = vmatpush1.bf16.msra.mxu0 %v1154
        %1900 = vmatprep.subr.bf16.mxu0 %v1179
        %1901 = vmatpush1.bf16.msra.mxu0 %v1178
        %1902 = vmatprep.subr.bf16.mxu0 %v1203
        %1903 = vmatpush1.bf16.msra.mxu0 %v1202
        %1904 = vmatprep.subr.bf16.mxu0 %v1227
        %1905 = vmatpush1.bf16.msra.mxu0 %v1226
        %1906 = vmatprep.subr.bf16.mxu0 %v1251
        %1907 = vmatpush1.bf16.msra.mxu0 %v1250
        %1908 = vmatprep.subr.bf16.mxu0 0
        %1909 = vmatpush1.bf16.msra.mxu0 0
        %1910 = vmatprep.subr.bf16.mxu0 0
        %1911 = vmatpush1.bf16.msra.mxu0 0
        %1912 = vmatprep.subr.bf16.mxu0 0
        %1913 = vmatpush1.bf16.msra.mxu0 0
        %1914 = vmatprep.subr.bf16.mxu0 0
        %1915 = vmatpush1.bf16.msra.mxu0 0
        %1916 = vmatprep.subr.bf16.mxu0 0
        %1917 = vmatpush1.bf16.msra.mxu0 0
        %1918 = vmatprep.subr.bf16.mxu0 0
        %1919 = vmatpush1.bf16.msra.mxu0 0
        %1920 = vmatprep.subr.bf16.mxu0 0
        %1921 = vmatpush1.bf16.msra.mxu0 0
        %1922 = vmatprep.subr.bf16.mxu0 0
        %1923 = vmatpush1.bf16.msra.mxu0 0
        %1924 = vmatprep.mubr.bf16.mxu0 0
        %1925 = vmatmul.mubr.bf16.gmra.mrb[0].mxu0 %v298
        %v1926 = vpop.f32.mrb[0].mxu0
        %v1927 = vadd.f32 0.0, %v1926
        %v1928 = vpop.f32.mrb[0].mxu0
        %v1929 = vadd.f32 0.0, %v1928
        %v1930 = vpop.f32.mrb[0].mxu0
        %v1931 = vadd.f32 0.0, %v1930
        %v1932 = vpop.f32.mrb[0].mxu0
        %v1933 = vadd.f32 0.0, %v1932
        %1934 = vmatprep.mubr.bf16.mxu0 0
        %1935 = vmatmul.mubr.bf16.gmra.mrb[0].mxu0 %v299
        %v1936 = vpop.f32.mrb[0].mxu0
        %v1937 = vadd.f32 0.0, %v1936
        %v1938 = vpop.f32.mrb[0].mxu0
        %v1939 = vadd.f32 0.0, %v1938
        %v1940 = vpop.f32.mrb[0].mxu0
        %v1941 = vadd.f32 0.0, %v1940
        %v1942 = vpop.f32.mrb[0].mxu0
        %v1943 = vadd.f32 0.0, %v1942
        %1944 = vmatprep.mubr.bf16.mxu0 0
        %1945 = vmatmul.mubr.bf16.gmra.mrb[0].mxu0 %v300
        %v1946 = vpop.f32.mrb[0].mxu0
        %v1947 = vadd.f32 0.0, %v1946
        %v1948 = vpop.f32.mrb[0].mxu0
        %v1949 = vadd.f32 0.0, %v1948
        %v1950 = vpop.f32.mrb[0].mxu0
        %v1951 = vadd.f32 0.0, %v1950
        %v1952 = vpop.f32.mrb[0].mxu0
        %v1953 = vadd.f32 0.0, %v1952
        %1954 = vmatprep.mubr.bf16.mxu0 0
        %1955 = vmatmul.mubr.bf16.gmra.mrb[0].mxu0 %v301
        %v1956 = vpop.f32.mrb[0].mxu0
        %v1957 = vadd.f32 0.0, %v1956
        %v1958 = vpop.f32.mrb[0].mxu0
        %v1959 = vadd.f32 0.0, %v1958
        %v1960 = vpop.f32.mrb[0].mxu0
        %v1961 = vadd.f32 0.0, %v1960
        %v1962 = vpop.f32.mrb[0].mxu0
        %v1963 = vadd.f32 0.0, %v1962
        %1964 = vdwg.mxu0
        %1965 = vmatprep.subr.bf16.mxu0 %v1085
        %1966 = vmatpush1.bf16.msra.mxu0 %v1084
        %1967 = vmatprep.subr.bf16.mxu0 %v1109
        %1968 = vmatpush1.bf16.msra.mxu0 %v1108
        %1969 = vmatprep.subr.bf16.mxu0 %v1133
        %1970 = vmatpush1.bf16.msra.mxu0 %v1132
        %1971 = vmatprep.subr.bf16.mxu0 %v1157
        %1972 = vmatpush1.bf16.msra.mxu0 %v1156
        %1973 = vmatprep.subr.bf16.mxu0 %v1181
        %1974 = vmatpush1.bf16.msra.mxu0 %v1180
        %1975 = vmatprep.subr.bf16.mxu0 %v1205
        %1976 = vmatpush1.bf16.msra.mxu0 %v1204
        %1977 = vmatprep.subr.bf16.mxu0 %v1229
        %1978 = vmatpush1.bf16.msra.mxu0 %v1228
        %1979 = vmatprep.subr.bf16.mxu0 %v1253
        %1980 = vmatpush1.bf16.msra.mxu0 %v1252
        %1981 = vmatprep.subr.bf16.mxu0 0
        %1982 = vmatpush1.bf16.msra.mxu0 0
        %1983 = vmatprep.subr.bf16.mxu0 0
        %1984 = vmatpush1.bf16.msra.mxu0 0
        %1985 = vmatprep.subr.bf16.mxu0 0
        %1986 = vmatpush1.bf16.msra.mxu0 0
        %1987 = vmatprep.subr.bf16.mxu0 0
        %1988 = vmatpush1.bf16.msra.mxu0 0
        %1989 = vmatprep.subr.bf16.mxu0 0
        %1990 = vmatpush1.bf16.msra.mxu0 0
        %1991 = vmatprep.subr.bf16.mxu0 0
        %1992 = vmatpush1.bf16.msra.mxu0 0
        %1993 = vmatprep.subr.bf16.mxu0 0
        %1994 = vmatpush1.bf16.msra.mxu0 0
        %1995 = vmatprep.subr.bf16.mxu0 0
        %1996 = vmatpush1.bf16.msra.mxu0 0
        %1997 = vmatprep.mubr.bf16.mxu0 0
        %1998 = vmatmul.mubr.bf16.gmra.mrb[0].mxu0 %v298
        %v1999 = vpop.f32.mrb[0].mxu0
        %v2000 = vadd.f32 0.0, %v1999
        %v2001 = vpop.f32.mrb[0].mxu0
        %v2002 = vadd.f32 0.0, %v2001
        %v2003 = vpop.f32.mrb[0].mxu0
        %v2004 = vadd.f32 0.0, %v2003
        %v2005 = vpop.f32.mrb[0].mxu0
        %v2006 = vadd.f32 0.0, %v2005
        %2007 = vmatprep.mubr.bf16.mxu0 0
        %2008 = vmatmul.mubr.bf16.gmra.mrb[0].mxu0 %v299
        %v2009 = vpop.f32.mrb[0].mxu0
        %v2010 = vadd.f32 0.0, %v2009
        %v2011 = vpop.f32.mrb[0].mxu0
        %v2012 = vadd.f32 0.0, %v2011
        %v2013 = vpop.f32.mrb[0].mxu0
        %v2014 = vadd.f32 0.0, %v2013
        %v2015 = vpop.f32.mrb[0].mxu0
        %v2016 = vadd.f32 0.0, %v2015
        %2017 = vmatprep.mubr.bf16.mxu0 0
        %2018 = vmatmul.mubr.bf16.gmra.mrb[0].mxu0 %v300
        %v2019 = vpop.f32.mrb[0].mxu0
        %v2020 = vadd.f32 0.0, %v2019
        %v2021 = vpop.f32.mrb[0].mxu0
        %v2022 = vadd.f32 0.0, %v2021
        %v2023 = vpop.f32.mrb[0].mxu0
        %v2024 = vadd.f32 0.0, %v2023
        %v2025 = vpop.f32.mrb[0].mxu0
        %v2026 = vadd.f32 0.0, %v2025
        %2027 = vmatprep.mubr.bf16.mxu0 0
        %2028 = vmatmul.mubr.bf16.gmra.mrb[0].mxu0 %v301
        %v2029 = vpop.f32.mrb[0].mxu0
        %v2030 = vadd.f32 0.0, %v2029
        %v2031 = vpop.f32.mrb[0].mxu0
        %v2032 = vadd.f32 0.0, %v2031
        %v2033 = vpop.f32.mrb[0].mxu0
        %v2034 = vadd.f32 0.0, %v2033
        %v2035 = vpop.f32.mrb[0].mxu0
        %v2036 = vadd.f32 0.0, %v2035
        %2037 = vdwg.mxu0
        %2038 = vmatprep.subr.bf16.mxu0 %v1087
        %2039 = vmatpush1.bf16.msra.mxu0 %v1086
        %2040 = vmatprep.subr.bf16.mxu0 %v1111
        %2041 = vmatpush1.bf16.msra.mxu0 %v1110
        %2042 = vmatprep.subr.bf16.mxu0 %v1135
        %2043 = vmatpush1.bf16.msra.mxu0 %v1134
        %2044 = vmatprep.subr.bf16.mxu0 %v1159
        %2045 = vmatpush1.bf16.msra.mxu0 %v1158
        %2046 = vmatprep.subr.bf16.mxu0 %v1183
        %2047 = vmatpush1.bf16.msra.mxu0 %v1182
        %2048 = vmatprep.subr.bf16.mxu0 %v1207
        %2049 = vmatpush1.bf16.msra.mxu0 %v1206
        %2050 = vmatprep.subr.bf16.mxu0 %v1231
        %2051 = vmatpush1.bf16.msra.mxu0 %v1230
        %2052 = vmatprep.subr.bf16.mxu0 %v1255
        %2053 = vmatpush1.bf16.msra.mxu0 %v1254
        %2054 = vmatprep.subr.bf16.mxu0 0
        %2055 = vmatpush1.bf16.msra.mxu0 0
        %2056 = vmatprep.subr.bf16.mxu0 0
        %2057 = vmatpush1.bf16.msra.mxu0 0
        %2058 = vmatprep.subr.bf16.mxu0 0
        %2059 = vmatpush1.bf16.msra.mxu0 0
        %2060 = vmatprep.subr.bf16.mxu0 0
        %2061 = vmatpush1.bf16.msra.mxu0 0
        %2062 = vmatprep.subr.bf16.mxu0 0
        %2063 = vmatpush1.bf16.msra.mxu0 0
        %2064 = vmatprep.subr.bf16.mxu0 0
        %2065 = vmatpush1.bf16.msra.mxu0 0
        %2066 = vmatprep.subr.bf16.mxu0 0
        %2067 = vmatpush1.bf16.msra.mxu0 0
        %2068 = vmatprep.subr.bf16.mxu0 0
        %2069 = vmatpush1.bf16.msra.mxu0 0
        %2070 = vmatprep.mubr.bf16.mxu0 0
        %2071 = vmatmul.mubr.bf16.gmra.mrb[0].mxu0 %v298
        %v2072 = vpop.f32.mrb[0].mxu0
        %v2073 = vadd.f32 0.0, %v2072
        %v2074 = vpop.f32.mrb[0].mxu0
        %v2075 = vadd.f32 0.0, %v2074
        %v2076 = vpop.f32.mrb[0].mxu0
        %v2077 = vadd.f32 0.0, %v2076
        %v2078 = vpop.f32.mrb[0].mxu0
        %v2079 = vadd.f32 0.0, %v2078
        %2080 = vmatprep.mubr.bf16.mxu0 0
        %2081 = vmatmul.mubr.bf16.gmra.mrb[0].mxu0 %v299
        %v2082 = vpop.f32.mrb[0].mxu0
        %v2083 = vadd.f32 0.0, %v2082
        %v2084 = vpop.f32.mrb[0].mxu0
        %v2085 = vadd.f32 0.0, %v2084
        %v2086 = vpop.f32.mrb[0].mxu0
        %v2087 = vadd.f32 0.0, %v2086
        %v2088 = vpop.f32.mrb[0].mxu0
        %v2089 = vadd.f32 0.0, %v2088
        %2090 = vmatprep.mubr.bf16.mxu0 0
        %2091 = vmatmul.mubr.bf16.gmra.mrb[0].mxu0 %v300
        %v2092 = vpop.f32.mrb[0].mxu0
        %v2093 = vadd.f32 0.0, %v2092
        %v2094 = vpop.f32.mrb[0].mxu0
        %v2095 = vadd.f32 0.0, %v2094
        %v2096 = vpop.f32.mrb[0].mxu0
        %v2097 = vadd.f32 0.0, %v2096
        %v2098 = vpop.f32.mrb[0].mxu0
        %v2099 = vadd.f32 0.0, %v2098
        %2100 = vmatprep.mubr.bf16.mxu0 0
        %2101 = vmatmul.mubr.bf16.gmra.mrb[0].mxu0 %v301
        %v2102 = vpop.f32.mrb[0].mxu0
        %v2103 = vadd.f32 0.0, %v2102
        %v2104 = vpop.f32.mrb[0].mxu0
        %v2105 = vadd.f32 0.0, %v2104
        %v2106 = vpop.f32.mrb[0].mxu0
        %v2107 = vadd.f32 0.0, %v2106
        %v2108 = vpop.f32.mrb[0].mxu0
        %v2109 = vadd.f32 0.0, %v2108
        %2110 = vdwg.mxu0
        %2111 = vmatprep.subr.bf16.mxu0 %v1089
        %2112 = vmatpush1.bf16.msra.mxu0 %v1088
        %2113 = vmatprep.subr.bf16.mxu0 %v1113
        %2114 = vmatpush1.bf16.msra.mxu0 %v1112
        %2115 = vmatprep.subr.bf16.mxu0 %v1137
        %2116 = vmatpush1.bf16.msra.mxu0 %v1136
        %2117 = vmatprep.subr.bf16.mxu0 %v1161
        %2118 = vmatpush1.bf16.msra.mxu0 %v1160
        %2119 = vmatprep.subr.bf16.mxu0 %v1185
        %2120 = vmatpush1.bf16.msra.mxu0 %v1184
        %2121 = vmatprep.subr.bf16.mxu0 %v1209
        %2122 = vmatpush1.bf16.msra.mxu0 %v1208
        %2123 = vmatprep.subr.bf16.mxu0 %v1233
        %2124 = vmatpush1.bf16.msra.mxu0 %v1232
        %2125 = vmatprep.subr.bf16.mxu0 %v1257
        %2126 = vmatpush1.bf16.msra.mxu0 %v1256
        %2127 = vmatprep.subr.bf16.mxu0 0
        %2128 = vmatpush1.bf16.msra.mxu0 0
        %2129 = vmatprep.subr.bf16.mxu0 0
        %2130 = vmatpush1.bf16.msra.mxu0 0
        %2131 = vmatprep.subr.bf16.mxu0 0
        %2132 = vmatpush1.bf16.msra.mxu0 0
        %2133 = vmatprep.subr.bf16.mxu0 0
        %2134 = vmatpush1.bf16.msra.mxu0 0
        %2135 = vmatprep.subr.bf16.mxu0 0
        %2136 = vmatpush1.bf16.msra.mxu0 0
        %2137 = vmatprep.subr.bf16.mxu0 0
        %2138 = vmatpush1.bf16.msra.mxu0 0
        %2139 = vmatprep.subr.bf16.mxu0 0
        %2140 = vmatpush1.bf16.msra.mxu0 0
        %2141 = vmatprep.subr.bf16.mxu0 0
        %2142 = vmatpush1.bf16.msra.mxu0 0
        %2143 = vmatprep.mubr.bf16.mxu0 0
        %2144 = vmatmul.mubr.bf16.gmra.mrb[0].mxu0 %v298
        %v2145 = vpop.f32.mrb[0].mxu0
        %v2146 = vadd.f32 0.0, %v2145
        %v2147 = vpop.f32.mrb[0].mxu0
        %v2148 = vadd.f32 0.0, %v2147
        %v2149 = vpop.f32.mrb[0].mxu0
        %v2150 = vadd.f32 0.0, %v2149
        %v2151 = vpop.f32.mrb[0].mxu0
        %v2152 = vadd.f32 0.0, %v2151
        %2153 = vmatprep.mubr.bf16.mxu0 0
        %2154 = vmatmul.mubr.bf16.gmra.mrb[0].mxu0 %v299
        %v2155 = vpop.f32.mrb[0].mxu0
        %v2156 = vadd.f32 0.0, %v2155
        %v2157 = vpop.f32.mrb[0].mxu0
        %v2158 = vadd.f32 0.0, %v2157
        %v2159 = vpop.f32.mrb[0].mxu0
        %v2160 = vadd.f32 0.0, %v2159
        %v2161 = vpop.f32.mrb[0].mxu0
        %v2162 = vadd.f32 0.0, %v2161
        %2163 = vmatprep.mubr.bf16.mxu0 0
        %2164 = vmatmul.mubr.bf16.gmra.mrb[0].mxu0 %v300
        %v2165 = vpop.f32.mrb[0].mxu0
        %v2166 = vadd.f32 0.0, %v2165
        %v2167 = vpop.f32.mrb[0].mxu0
        %v2168 = vadd.f32 0.0, %v2167
        %v2169 = vpop.f32.mrb[0].mxu0
        %v2170 = vadd.f32 0.0, %v2169
        %v2171 = vpop.f32.mrb[0].mxu0
        %v2172 = vadd.f32 0.0, %v2171
        %2173 = vmatprep.mubr.bf16.mxu0 0
        %2174 = vmatmul.mubr.bf16.gmra.mrb[0].mxu0 %v301
        %v2175 = vpop.f32.mrb[0].mxu0
        %v2176 = vadd.f32 0.0, %v2175
        %v2177 = vpop.f32.mrb[0].mxu0
        %v2178 = vadd.f32 0.0, %v2177
        %v2179 = vpop.f32.mrb[0].mxu0
        %v2180 = vadd.f32 0.0, %v2179
        %v2181 = vpop.f32.mrb[0].mxu0
        %v2182 = vadd.f32 0.0, %v2181
        %2183 = vdwg.mxu0
        %2184 = vmatprep.subr.bf16.mxu0 %v1091
        %2185 = vmatpush1.bf16.msra.mxu0 %v1090
        %2186 = vmatprep.subr.bf16.mxu0 %v1115
        %2187 = vmatpush1.bf16.msra.mxu0 %v1114
        %2188 = vmatprep.subr.bf16.mxu0 %v1139
        %2189 = vmatpush1.bf16.msra.mxu0 %v1138
        %2190 = vmatprep.subr.bf16.mxu0 %v1163
        %2191 = vmatpush1.bf16.msra.mxu0 %v1162
        %2192 = vmatprep.subr.bf16.mxu0 %v1187
        %2193 = vmatpush1.bf16.msra.mxu0 %v1186
        %2194 = vmatprep.subr.bf16.mxu0 %v1211
        %2195 = vmatpush1.bf16.msra.mxu0 %v1210
        %2196 = vmatprep.subr.bf16.mxu0 %v1235
        %2197 = vmatpush1.bf16.msra.mxu0 %v1234
        %2198 = vmatprep.subr.bf16.mxu0 %v1259
        %2199 = vmatpush1.bf16.msra.mxu0 %v1258
        %2200 = vmatprep.subr.bf16.mxu0 0
        %2201 = vmatpush1.bf16.msra.mxu0 0
        %2202 = vmatprep.subr.bf16.mxu0 0
        %2203 = vmatpush1.bf16.msra.mxu0 0
        %2204 = vmatprep.subr.bf16.mxu0 0
        %2205 = vmatpush1.bf16.msra.mxu0 0
        %2206 = vmatprep.subr.bf16.mxu0 0
        %2207 = vmatpush1.bf16.msra.mxu0 0
        %2208 = vmatprep.subr.bf16.mxu0 0
        %2209 = vmatpush1.bf16.msra.mxu0 0
        %2210 = vmatprep.subr.bf16.mxu0 0
        %2211 = vmatpush1.bf16.msra.mxu0 0
        %2212 = vmatprep.subr.bf16.mxu0 0
        %2213 = vmatpush1.bf16.msra.mxu0 0
        %2214 = vmatprep.subr.bf16.mxu0 0
        %2215 = vmatpush1.bf16.msra.mxu0 0
        %2216 = vmatprep.mubr.bf16.mxu0 0
        %2217 = vmatmul.mubr.bf16.gmra.mrb[0].mxu0 %v298
        %v2218 = vpop.f32.mrb[0].mxu0
        %v2219 = vadd.f32 0.0, %v2218
        %v2220 = vpop.f32.mrb[0].mxu0
        %v2221 = vadd.f32 0.0, %v2220
        %v2222 = vpop.f32.mrb[0].mxu0
        %v2223 = vadd.f32 0.0, %v2222
        %v2224 = vpop.f32.mrb[0].mxu0
        %v2225 = vadd.f32 0.0, %v2224
        %2226 = vmatprep.mubr.bf16.mxu0 0
        %2227 = vmatmul.mubr.bf16.gmra.mrb[0].mxu0 %v299
        %v2228 = vpop.f32.mrb[0].mxu0
        %v2229 = vadd.f32 0.0, %v2228
        %v2230 = vpop.f32.mrb[0].mxu0
        %v2231 = vadd.f32 0.0, %v2230
        %v2232 = vpop.f32.mrb[0].mxu0
        %v2233 = vadd.f32 0.0, %v2232
        %v2234 = vpop.f32.mrb[0].mxu0
        %v2235 = vadd.f32 0.0, %v2234
        %2236 = vmatprep.mubr.bf16.mxu0 0
        %2237 = vmatmul.mubr.bf16.gmra.mrb[0].mxu0 %v300
        %v2238 = vpop.f32.mrb[0].mxu0
        %v2239 = vadd.f32 0.0, %v2238
        %v2240 = vpop.f32.mrb[0].mxu0
        %v2241 = vadd.f32 0.0, %v2240
        %v2242 = vpop.f32.mrb[0].mxu0
        %v2243 = vadd.f32 0.0, %v2242
        %v2244 = vpop.f32.mrb[0].mxu0
        %v2245 = vadd.f32 0.0, %v2244
        %2246 = vmatprep.mubr.bf16.mxu0 0
        %2247 = vmatmul.mubr.bf16.gmra.mrb[0].mxu0 %v301
        %v2248 = vpop.f32.mrb[0].mxu0
        %v2249 = vadd.f32 0.0, %v2248
        %v2250 = vpop.f32.mrb[0].mxu0
        %v2251 = vadd.f32 0.0, %v2250
        %v2252 = vpop.f32.mrb[0].mxu0
        %v2253 = vadd.f32 0.0, %v2252
        %v2254 = vpop.f32.mrb[0].mxu0
        %v2255 = vadd.f32 0.0, %v2254
        %2256 = vdwg.mxu0
        %2257 = vmatprep.subr.bf16.mxu0 %v1093
        %2258 = vmatpush1.bf16.msra.mxu0 %v1092
        %2259 = vmatprep.subr.bf16.mxu0 %v1117
        %2260 = vmatpush1.bf16.msra.mxu0 %v1116
        %2261 = vmatprep.subr.bf16.mxu0 %v1141
        %2262 = vmatpush1.bf16.msra.mxu0 %v1140
        %2263 = vmatprep.subr.bf16.mxu0 %v1165
        %2264 = vmatpush1.bf16.msra.mxu0 %v1164
        %2265 = vmatprep.subr.bf16.mxu0 %v1189
        %2266 = vmatpush1.bf16.msra.mxu0 %v1188
        %2267 = vmatprep.subr.bf16.mxu0 %v1213
        %2268 = vmatpush1.bf16.msra.mxu0 %v1212
        %2269 = vmatprep.subr.bf16.mxu0 %v1237
        %2270 = vmatpush1.bf16.msra.mxu0 %v1236
        %2271 = vmatprep.subr.bf16.mxu0 %v1261
        %2272 = vmatpush1.bf16.msra.mxu0 %v1260
        %2273 = vmatprep.subr.bf16.mxu0 0
        %2274 = vmatpush1.bf16.msra.mxu0 0
        %2275 = vmatprep.subr.bf16.mxu0 0
        %2276 = vmatpush1.bf16.msra.mxu0 0
        %2277 = vmatprep.subr.bf16.mxu0 0
        %2278 = vmatpush1.bf16.msra.mxu0 0
        %2279 = vmatprep.subr.bf16.mxu0 0
        %2280 = vmatpush1.bf16.msra.mxu0 0
        %2281 = vmatprep.subr.bf16.mxu0 0
        %2282 = vmatpush1.bf16.msra.mxu0 0
        %2283 = vmatprep.subr.bf16.mxu0 0
        %2284 = vmatpush1.bf16.msra.mxu0 0
        %2285 = vmatprep.subr.bf16.mxu0 0
        %2286 = vmatpush1.bf16.msra.mxu0 0
        %2287 = vmatprep.subr.bf16.mxu0 0
        %2288 = vmatpush1.bf16.msra.mxu0 0
        %2289 = vmatprep.mubr.bf16.mxu0 0
        %2290 = vmatmul.mubr.bf16.gmra.mrb[0].mxu0 %v298
        %v2291 = vpop.f32.mrb[0].mxu0
        %v2292 = vadd.f32 0.0, %v2291
        %v2293 = vpop.f32.mrb[0].mxu0
        %v2294 = vadd.f32 0.0, %v2293
        %v2295 = vpop.f32.mrb[0].mxu0
        %v2296 = vadd.f32 0.0, %v2295
        %v2297 = vpop.f32.mrb[0].mxu0
        %v2298 = vadd.f32 0.0, %v2297
        %2299 = vmatprep.mubr.bf16.mxu0 0
        %2300 = vmatmul.mubr.bf16.gmra.mrb[0].mxu0 %v299
        %v2301 = vpop.f32.mrb[0].mxu0
        %v2302 = vadd.f32 0.0, %v2301
        %v2303 = vpop.f32.mrb[0].mxu0
        %v2304 = vadd.f32 0.0, %v2303
        %v2305 = vpop.f32.mrb[0].mxu0
        %v2306 = vadd.f32 0.0, %v2305
        %v2307 = vpop.f32.mrb[0].mxu0
        %v2308 = vadd.f32 0.0, %v2307
        %2309 = vmatprep.mubr.bf16.mxu0 0
        %2310 = vmatmul.mubr.bf16.gmra.mrb[0].mxu0 %v300
        %v2311 = vpop.f32.mrb[0].mxu0
        %v2312 = vadd.f32 0.0, %v2311
        %v2313 = vpop.f32.mrb[0].mxu0
        %v2314 = vadd.f32 0.0, %v2313
        %v2315 = vpop.f32.mrb[0].mxu0
        %v2316 = vadd.f32 0.0, %v2315
        %v2317 = vpop.f32.mrb[0].mxu0
        %v2318 = vadd.f32 0.0, %v2317
        %2319 = vmatprep.mubr.bf16.mxu0 0
        %2320 = vmatmul.mubr.bf16.gmra.mrb[0].mxu0 %v301
        %v2321 = vpop.f32.mrb[0].mxu0
        %v2322 = vadd.f32 0.0, %v2321
        %v2323 = vpop.f32.mrb[0].mxu0
        %v2324 = vadd.f32 0.0, %v2323
        %v2325 = vpop.f32.mrb[0].mxu0
        %v2326 = vadd.f32 0.0, %v2325
        %v2327 = vpop.f32.mrb[0].mxu0
        %v2328 = vadd.f32 0.0, %v2327
        %2329 = vdwg.mxu0
        %v2330 = vpack.c.bf16 %v1493, %v1489
        %v2331 = vpack.c.bf16 %v1495, %v1491
        %v2332 = vpack.c.bf16 %v1566, %v1562
        %v2333 = vpack.c.bf16 %v1568, %v1564
        %v2334 = vpack.c.bf16 %v1639, %v1635
        %v2335 = vpack.c.bf16 %v1641, %v1637
        %v2336 = vpack.c.bf16 %v1712, %v1708
        %v2337 = vpack.c.bf16 %v1714, %v1710
        %v2338 = vpack.c.bf16 %v1785, %v1781
        %v2339 = vpack.c.bf16 %v1787, %v1783
        %v2340 = vpack.c.bf16 %v1858, %v1854
        %v2341 = vpack.c.bf16 %v1860, %v1856
        %v2342 = vpack.c.bf16 %v1931, %v1927
        %v2343 = vpack.c.bf16 %v1933, %v1929
        %v2344 = vpack.c.bf16 %v2004, %v2000
        %v2345 = vpack.c.bf16 %v2006, %v2002
        %v2346 = vpack.c.bf16 %v2077, %v2073
        %v2347 = vpack.c.bf16 %v2079, %v2075
        %v2348 = vpack.c.bf16 %v2150, %v2146
        %v2349 = vpack.c.bf16 %v2152, %v2148
        %v2350 = vpack.c.bf16 %v2223, %v2219
        %v2351 = vpack.c.bf16 %v2225, %v2221
        %v2352 = vpack.c.bf16 %v2296, %v2292
        %v2353 = vpack.c.bf16 %v2298, %v2294
        %v2354 = vpack.c.bf16 %v1503, %v1499
        %v2355 = vpack.c.bf16 %v1505, %v1501
        %v2356 = vpack.c.bf16 %v1576, %v1572
        %v2357 = vpack.c.bf16 %v1578, %v1574
        %v2358 = vpack.c.bf16 %v1649, %v1645
        %v2359 = vpack.c.bf16 %v1651, %v1647
        %v2360 = vpack.c.bf16 %v1722, %v1718
        %v2361 = vpack.c.bf16 %v1724, %v1720
        %v2362 = vpack.c.bf16 %v1795, %v1791
        %v2363 = vpack.c.bf16 %v1797, %v1793
        %v2364 = vpack.c.bf16 %v1868, %v1864
        %v2365 = vpack.c.bf16 %v1870, %v1866
        %v2366 = vpack.c.bf16 %v1941, %v1937
        %v2367 = vpack.c.bf16 %v1943, %v1939
        %v2368 = vpack.c.bf16 %v2014, %v2010
        %v2369 = vpack.c.bf16 %v2016, %v2012
        %v2370 = vpack.c.bf16 %v2087, %v2083
        %v2371 = vpack.c.bf16 %v2089, %v2085
        %v2372 = vpack.c.bf16 %v2160, %v2156
        %v2373 = vpack.c.bf16 %v2162, %v2158
        %v2374 = vpack.c.bf16 %v2233, %v2229
        %v2375 = vpack.c.bf16 %v2235, %v2231
        %v2376 = vpack.c.bf16 %v2306, %v2302
        %v2377 = vpack.c.bf16 %v2308, %v2304
        %v2378 = vpack.c.bf16 %v1513, %v1509
        %v2379 = vpack.c.bf16 %v1515, %v1511
        %v2380 = vpack.c.bf16 %v1586, %v1582
        %v2381 = vpack.c.bf16 %v1588, %v1584
        %v2382 = vpack.c.bf16 %v1659, %v1655
        %v2383 = vpack.c.bf16 %v1661, %v1657
        %v2384 = vpack.c.bf16 %v1732, %v1728
        %v2385 = vpack.c.bf16 %v1734, %v1730
        %v2386 = vpack.c.bf16 %v1805, %v1801
        %v2387 = vpack.c.bf16 %v1807, %v1803
        %v2388 = vpack.c.bf16 %v1878, %v1874
        %v2389 = vpack.c.bf16 %v1880, %v1876
        %v2390 = vpack.c.bf16 %v1951, %v1947
        %v2391 = vpack.c.bf16 %v1953, %v1949
        %v2392 = vpack.c.bf16 %v2024, %v2020
        %v2393 = vpack.c.bf16 %v2026, %v2022
        %v2394 = vpack.c.bf16 %v2097, %v2093
        %v2395 = vpack.c.bf16 %v2099, %v2095
        %v2396 = vpack.c.bf16 %v2170, %v2166
        %v2397 = vpack.c.bf16 %v2172, %v2168
        %v2398 = vpack.c.bf16 %v2243, %v2239
        %v2399 = vpack.c.bf16 %v2245, %v2241
        %v2400 = vpack.c.bf16 %v2316, %v2312
        %v2401 = vpack.c.bf16 %v2318, %v2314
        %v2402 = vpack.c.bf16 %v1523, %v1519
        %v2403 = vpack.c.bf16 %v1525, %v1521
        %v2404 = vpack.c.bf16 %v1596, %v1592
        %v2405 = vpack.c.bf16 %v1598, %v1594
        %v2406 = vpack.c.bf16 %v1669, %v1665
        %v2407 = vpack.c.bf16 %v1671, %v1667
        %v2408 = vpack.c.bf16 %v1742, %v1738
        %v2409 = vpack.c.bf16 %v1744, %v1740
        %v2410 = vpack.c.bf16 %v1815, %v1811
        %v2411 = vpack.c.bf16 %v1817, %v1813
        %v2412 = vpack.c.bf16 %v1888, %v1884
        %v2413 = vpack.c.bf16 %v1890, %v1886
        %v2414 = vpack.c.bf16 %v1961, %v1957
        %v2415 = vpack.c.bf16 %v1963, %v1959
        %v2416 = vpack.c.bf16 %v2034, %v2030
        %v2417 = vpack.c.bf16 %v2036, %v2032
        %v2418 = vpack.c.bf16 %v2107, %v2103
        %v2419 = vpack.c.bf16 %v2109, %v2105
        %v2420 = vpack.c.bf16 %v2180, %v2176
        %v2421 = vpack.c.bf16 %v2182, %v2178
        %v2422 = vpack.c.bf16 %v2253, %v2249
        %v2423 = vpack.c.bf16 %v2255, %v2251
        %v2424 = vpack.c.bf16 %v2326, %v2322
        %v2425 = vpack.c.bf16 %v2328, %v2324
        %v2426 = vunpack.c.l.bf16 %v2330
        %v2427 = vunpack.c.l.bf16 %v2331
        %v2428 = vunpack.c.l.bf16 %v2332
        %v2429 = vunpack.c.l.bf16 %v2333
        %v2430 = vunpack.c.l.bf16 %v2334
        %v2431 = vunpack.c.l.bf16 %v2335
        %v2432 = vunpack.c.l.bf16 %v2336
        %v2433 = vunpack.c.l.bf16 %v2337
        %v2434 = vunpack.c.h.bf16 %v2330
        %v2435 = vunpack.c.h.bf16 %v2331
        %v2436 = vunpack.c.h.bf16 %v2332
        %v2437 = vunpack.c.h.bf16 %v2333
        %v2438 = vunpack.c.h.bf16 %v2334
        %v2439 = vunpack.c.h.bf16 %v2335
        %v2440 = vunpack.c.h.bf16 %v2336
        %v2441 = vunpack.c.h.bf16 %v2337
        %v2442 = vunpack.c.l.bf16 %v2354
        %v2443 = vunpack.c.l.bf16 %v2355
        %v2444 = vunpack.c.l.bf16 %v2356
        %v2445 = vunpack.c.l.bf16 %v2357
        %v2446 = vunpack.c.l.bf16 %v2358
        %v2447 = vunpack.c.l.bf16 %v2359
        %v2448 = vunpack.c.l.bf16 %v2360
        %v2449 = vunpack.c.l.bf16 %v2361
        %v2450 = vunpack.c.h.bf16 %v2354
        %v2451 = vunpack.c.h.bf16 %v2355
        %v2452 = vunpack.c.h.bf16 %v2356
        %v2453 = vunpack.c.h.bf16 %v2357
        %v2454 = vunpack.c.h.bf16 %v2358
        %v2455 = vunpack.c.h.bf16 %v2359
        %v2456 = vunpack.c.h.bf16 %v2360
        %v2457 = vunpack.c.h.bf16 %v2361
        %v2458 = vunpack.c.l.bf16 %v2378
        %v2459 = vunpack.c.l.bf16 %v2379
        %v2460 = vunpack.c.l.bf16 %v2380
        %v2461 = vunpack.c.l.bf16 %v2381
        %v2462 = vunpack.c.l.bf16 %v2382
        %v2463 = vunpack.c.l.bf16 %v2383
        %v2464 = vunpack.c.l.bf16 %v2384
        %v2465 = vunpack.c.l.bf16 %v2385
        %v2466 = vunpack.c.h.bf16 %v2378
        %v2467 = vunpack.c.h.bf16 %v2379
        %v2468 = vunpack.c.h.bf16 %v2380
        %v2469 = vunpack.c.h.bf16 %v2381
        %v2470 = vunpack.c.h.bf16 %v2382
        %v2471 = vunpack.c.h.bf16 %v2383
        %v2472 = vunpack.c.h.bf16 %v2384
        %v2473 = vunpack.c.h.bf16 %v2385
        %v2474 = vunpack.c.l.bf16 %v2402
        %v2475 = vunpack.c.l.bf16 %v2403
        %v2476 = vunpack.c.l.bf16 %v2404
        %v2477 = vunpack.c.l.bf16 %v2405
        %v2478 = vunpack.c.l.bf16 %v2406
        %v2479 = vunpack.c.l.bf16 %v2407
        %v2480 = vunpack.c.l.bf16 %v2408
        %v2481 = vunpack.c.l.bf16 %v2409
        %v2482 = vunpack.c.h.bf16 %v2402
        %v2483 = vunpack.c.h.bf16 %v2403
        %v2484 = vunpack.c.h.bf16 %v2404
        %v2485 = vunpack.c.h.bf16 %v2405
        %v2486 = vunpack.c.h.bf16 %v2406
        %v2487 = vunpack.c.h.bf16 %v2407
        %v2488 = vunpack.c.h.bf16 %v2408
        %v2489 = vunpack.c.h.bf16 %v2409
        %v2490 = vunpack.c.l.bf16 %v2338
        %v2491 = vunpack.c.l.bf16 %v2339
        %v2492 = vunpack.c.l.bf16 %v2340
        %v2493 = vunpack.c.l.bf16 %v2341
        %v2494 = vunpack.c.l.bf16 %v2342
        %v2495 = vunpack.c.l.bf16 %v2343
        %v2496 = vunpack.c.l.bf16 %v2344
        %v2497 = vunpack.c.l.bf16 %v2345
        %v2498 = vunpack.c.h.bf16 %v2338
        %v2499 = vunpack.c.h.bf16 %v2339
        %v2500 = vunpack.c.h.bf16 %v2340
        %v2501 = vunpack.c.h.bf16 %v2341
        %v2502 = vunpack.c.h.bf16 %v2342
        %v2503 = vunpack.c.h.bf16 %v2343
        %v2504 = vunpack.c.h.bf16 %v2344
        %v2505 = vunpack.c.h.bf16 %v2345
        %v2506 = vunpack.c.l.bf16 %v2362
        %v2507 = vunpack.c.l.bf16 %v2363
        %v2508 = vunpack.c.l.bf16 %v2364
        %v2509 = vunpack.c.l.bf16 %v2365
        %v2510 = vunpack.c.l.bf16 %v2366
        %v2511 = vunpack.c.l.bf16 %v2367
        %v2512 = vunpack.c.l.bf16 %v2368
        %v2513 = vunpack.c.l.bf16 %v2369
        %v2514 = vunpack.c.h.bf16 %v2362
        %v2515 = vunpack.c.h.bf16 %v2363
        %v2516 = vunpack.c.h.bf16 %v2364
        %v2517 = vunpack.c.h.bf16 %v2365
        %v2518 = vunpack.c.h.bf16 %v2366
        %v2519 = vunpack.c.h.bf16 %v2367
        %v2520 = vunpack.c.h.bf16 %v2368
        %v2521 = vunpack.c.h.bf16 %v2369
        %v2522 = vunpack.c.l.bf16 %v2386
        %v2523 = vunpack.c.l.bf16 %v2387
        %v2524 = vunpack.c.l.bf16 %v2388
        %v2525 = vunpack.c.l.bf16 %v2389
        %v2526 = vunpack.c.l.bf16 %v2390
        %v2527 = vunpack.c.l.bf16 %v2391
        %v2528 = vunpack.c.l.bf16 %v2392
        %v2529 = vunpack.c.l.bf16 %v2393
        %v2530 = vunpack.c.h.bf16 %v2386
        %v2531 = vunpack.c.h.bf16 %v2387
        %v2532 = vunpack.c.h.bf16 %v2388
        %v2533 = vunpack.c.h.bf16 %v2389
        %v2534 = vunpack.c.h.bf16 %v2390
        %v2535 = vunpack.c.h.bf16 %v2391
        %v2536 = vunpack.c.h.bf16 %v2392
        %v2537 = vunpack.c.h.bf16 %v2393
        %v2538 = vunpack.c.l.bf16 %v2410
        %v2539 = vunpack.c.l.bf16 %v2411
        %v2540 = vunpack.c.l.bf16 %v2412
        %v2541 = vunpack.c.l.bf16 %v2413
        %v2542 = vunpack.c.l.bf16 %v2414
        %v2543 = vunpack.c.l.bf16 %v2415
        %v2544 = vunpack.c.l.bf16 %v2416
        %v2545 = vunpack.c.l.bf16 %v2417
        %v2546 = vunpack.c.h.bf16 %v2410
        %v2547 = vunpack.c.h.bf16 %v2411
        %v2548 = vunpack.c.h.bf16 %v2412
        %v2549 = vunpack.c.h.bf16 %v2413
        %v2550 = vunpack.c.h.bf16 %v2414
        %v2551 = vunpack.c.h.bf16 %v2415
        %v2552 = vunpack.c.h.bf16 %v2416
        %v2553 = vunpack.c.h.bf16 %v2417
        %v2554 = vunpack.c.l.bf16 %v2346
        %v2555 = vunpack.c.l.bf16 %v2347
        %v2556 = vunpack.c.l.bf16 %v2348
        %v2557 = vunpack.c.l.bf16 %v2349
        %v2558 = vunpack.c.l.bf16 %v2350
        %v2559 = vunpack.c.l.bf16 %v2351
        %v2560 = vunpack.c.l.bf16 %v2352
        %v2561 = vunpack.c.l.bf16 %v2353
        %v2562 = vunpack.c.h.bf16 %v2346
        %v2563 = vunpack.c.h.bf16 %v2347
        %v2564 = vunpack.c.h.bf16 %v2348
        %v2565 = vunpack.c.h.bf16 %v2349
        %v2566 = vunpack.c.h.bf16 %v2350
        %v2567 = vunpack.c.h.bf16 %v2351
        %v2568 = vunpack.c.h.bf16 %v2352
        %v2569 = vunpack.c.h.bf16 %v2353
        %v2570 = vunpack.c.l.bf16 %v2370
        %v2571 = vunpack.c.l.bf16 %v2371
        %v2572 = vunpack.c.l.bf16 %v2372
        %v2573 = vunpack.c.l.bf16 %v2373
        %v2574 = vunpack.c.l.bf16 %v2374
        %v2575 = vunpack.c.l.bf16 %v2375
        %v2576 = vunpack.c.l.bf16 %v2376
        %v2577 = vunpack.c.l.bf16 %v2377
        %v2578 = vunpack.c.h.bf16 %v2370
        %v2579 = vunpack.c.h.bf16 %v2371
        %v2580 = vunpack.c.h.bf16 %v2372
        %v2581 = vunpack.c.h.bf16 %v2373
        %v2582 = vunpack.c.h.bf16 %v2374
        %v2583 = vunpack.c.h.bf16 %v2375
        %v2584 = vunpack.c.h.bf16 %v2376
        %v2585 = vunpack.c.h.bf16 %v2377
        %v2586 = vunpack.c.l.bf16 %v2394
        %v2587 = vunpack.c.l.bf16 %v2395
        %v2588 = vunpack.c.l.bf16 %v2396
        %v2589 = vunpack.c.l.bf16 %v2397
        %v2590 = vunpack.c.l.bf16 %v2398
        %v2591 = vunpack.c.l.bf16 %v2399
        %v2592 = vunpack.c.l.bf16 %v2400
        %v2593 = vunpack.c.l.bf16 %v2401
        %v2594 = vunpack.c.h.bf16 %v2394
        %v2595 = vunpack.c.h.bf16 %v2395
        %v2596 = vunpack.c.h.bf16 %v2396
        %v2597 = vunpack.c.h.bf16 %v2397
        %v2598 = vunpack.c.h.bf16 %v2398
        %v2599 = vunpack.c.h.bf16 %v2399
        %v2600 = vunpack.c.h.bf16 %v2400
        %v2601 = vunpack.c.h.bf16 %v2401
        %v2602 = vunpack.c.l.bf16 %v2418
        %v2603 = vunpack.c.l.bf16 %v2419
        %v2604 = vunpack.c.l.bf16 %v2420
        %v2605 = vunpack.c.l.bf16 %v2421
        %v2606 = vunpack.c.l.bf16 %v2422
        %v2607 = vunpack.c.l.bf16 %v2423
        %v2608 = vunpack.c.l.bf16 %v2424
        %v2609 = vunpack.c.l.bf16 %v2425
        %v2610 = vunpack.c.h.bf16 %v2418
        %v2611 = vunpack.c.h.bf16 %v2419
        %v2612 = vunpack.c.h.bf16 %v2420
        %v2613 = vunpack.c.h.bf16 %v2421
        %v2614 = vunpack.c.h.bf16 %v2422
        %v2615 = vunpack.c.h.bf16 %v2423
        %v2616 = vunpack.c.h.bf16 %v2424
        %v2617 = vunpack.c.h.bf16 %v2425
        %v2618 = vmul.f32 %v2426, %v2490
        %v2619 = vmul.f32 %v2427, %v2491
        %v2620 = vmul.f32 %v2428, %v2492
        %v2621 = vmul.f32 %v2429, %v2493
        %v2622 = vmul.f32 %v2430, %v2494
        %v2623 = vmul.f32 %v2431, %v2495
        %v2624 = vmul.f32 %v2432, %v2496
        %v2625 = vmul.f32 %v2433, %v2497
        %v2626 = vmul.f32 %v2434, %v2498
        %v2627 = vmul.f32 %v2435, %v2499
        %v2628 = vmul.f32 %v2436, %v2500
        %v2629 = vmul.f32 %v2437, %v2501
        %v2630 = vmul.f32 %v2438, %v2502
        %v2631 = vmul.f32 %v2439, %v2503
        %v2632 = vmul.f32 %v2440, %v2504
        %v2633 = vmul.f32 %v2441, %v2505
        %v2634 = vmul.f32 %v2442, %v2506
        %v2635 = vmul.f32 %v2443, %v2507
        %v2636 = vmul.f32 %v2444, %v2508
        %v2637 = vmul.f32 %v2445, %v2509
        %v2638 = vmul.f32 %v2446, %v2510
        %v2639 = vmul.f32 %v2447, %v2511
        %v2640 = vmul.f32 %v2448, %v2512
        %v2641 = vmul.f32 %v2449, %v2513
        %v2642 = vmul.f32 %v2450, %v2514
        %v2643 = vmul.f32 %v2451, %v2515
        %v2644 = vmul.f32 %v2452, %v2516
        %v2645 = vmul.f32 %v2453, %v2517
        %v2646 = vmul.f32 %v2454, %v2518
        %v2647 = vmul.f32 %v2455, %v2519
        %v2648 = vmul.f32 %v2456, %v2520
        %v2649 = vmul.f32 %v2457, %v2521
        %v2650 = vmul.f32 %v2458, %v2522
        %v2651 = vmul.f32 %v2459, %v2523
        %v2652 = vmul.f32 %v2460, %v2524
        %v2653 = vmul.f32 %v2461, %v2525
        %v2654 = vmul.f32 %v2462, %v2526
        %v2655 = vmul.f32 %v2463, %v2527
        %v2656 = vmul.f32 %v2464, %v2528
        %v2657 = vmul.f32 %v2465, %v2529
        %v2658 = vmul.f32 %v2466, %v2530
        %v2659 = vmul.f32 %v2467, %v2531
        %v2660 = vmul.f32 %v2468, %v2532
        %v2661 = vmul.f32 %v2469, %v2533
        %v2662 = vmul.f32 %v2470, %v2534
        %v2663 = vmul.f32 %v2471, %v2535
        %v2664 = vmul.f32 %v2472, %v2536
        %v2665 = vmul.f32 %v2473, %v2537
        %v2666 = vmul.f32 %v2474, %v2538
        %v2667 = vmul.f32 %v2475, %v2539
        %v2668 = vmul.f32 %v2476, %v2540
        %v2669 = vmul.f32 %v2477, %v2541
        %v2670 = vmul.f32 %v2478, %v2542
        %v2671 = vmul.f32 %v2479, %v2543
        %v2672 = vmul.f32 %v2480, %v2544
        %v2673 = vmul.f32 %v2481, %v2545
        %v2674 = vmul.f32 %v2482, %v2546
        %v2675 = vmul.f32 %v2483, %v2547
        %v2676 = vmul.f32 %v2484, %v2548
        %v2677 = vmul.f32 %v2485, %v2549
        %v2678 = vmul.f32 %v2486, %v2550
        %v2679 = vmul.f32 %v2487, %v2551
        %v2680 = vmul.f32 %v2488, %v2552
        %v2681 = vmul.f32 %v2489, %v2553
        %v2682 = vadd.f32 %v2618, %v2622
        %v2683 = vadd.f32 %v2619, %v2623
        %v2684 = vadd.f32 %v2620, %v2624
        %v2685 = vadd.f32 %v2621, %v2625
        %v2686 = vadd.f32 %v2626, %v2630
        %v2687 = vadd.f32 %v2627, %v2631
        %v2688 = vadd.f32 %v2628, %v2632
        %v2689 = vadd.f32 %v2629, %v2633
        %v2690 = vadd.f32 %v2634, %v2638
        %v2691 = vadd.f32 %v2635, %v2639
        %v2692 = vadd.f32 %v2636, %v2640
        %v2693 = vadd.f32 %v2637, %v2641
        %v2694 = vadd.f32 %v2642, %v2646
        %v2695 = vadd.f32 %v2643, %v2647
        %v2696 = vadd.f32 %v2644, %v2648
        %v2697 = vadd.f32 %v2645, %v2649
        %v2698 = vadd.f32 %v2650, %v2654
        %v2699 = vadd.f32 %v2651, %v2655
        %v2700 = vadd.f32 %v2652, %v2656
        %v2701 = vadd.f32 %v2653, %v2657
        %v2702 = vadd.f32 %v2658, %v2662
        %v2703 = vadd.f32 %v2659, %v2663
        %v2704 = vadd.f32 %v2660, %v2664
        %v2705 = vadd.f32 %v2661, %v2665
        %v2706 = vadd.f32 %v2666, %v2670
        %v2707 = vadd.f32 %v2667, %v2671
        %v2708 = vadd.f32 %v2668, %v2672
        %v2709 = vadd.f32 %v2669, %v2673
        %v2710 = vadd.f32 %v2674, %v2678
        %v2711 = vadd.f32 %v2675, %v2679
        %v2712 = vadd.f32 %v2676, %v2680
        %v2713 = vadd.f32 %v2677, %v2681
        %v2714 = vadd.f32 %v2682, %v2684
        %v2715 = vadd.f32 %v2683, %v2685
        %v2716 = vadd.f32 %v2686, %v2688
        %v2717 = vadd.f32 %v2687, %v2689
        %v2718 = vadd.f32 %v2690, %v2692
        %v2719 = vadd.f32 %v2691, %v2693
        %v2720 = vadd.f32 %v2694, %v2696
        %v2721 = vadd.f32 %v2695, %v2697
        %v2722 = vadd.f32 %v2698, %v2700
        %v2723 = vadd.f32 %v2699, %v2701
        %v2724 = vadd.f32 %v2702, %v2704
        %v2725 = vadd.f32 %v2703, %v2705
        %v2726 = vadd.f32 %v2706, %v2708
        %v2727 = vadd.f32 %v2707, %v2709
        %v2728 = vadd.f32 %v2710, %v2712
        %v2729 = vadd.f32 %v2711, %v2713
        %v2730 = vadd.f32 %v2714, %v2715
        %v2731 = vadd.f32 %v2716, %v2717
        %v2732 = vadd.f32 %v2718, %v2719
        %v2733 = vadd.f32 %v2720, %v2721
        %v2734 = vadd.f32 %v2722, %v2723
        %v2735 = vadd.f32 %v2724, %v2725
        %v2736 = vadd.f32 %v2726, %v2727
        %v2737 = vadd.f32 %v2728, %v2729
        %2738 = vrot.lane.b32.xlu0 %v2730, 64
        %v2739 = vpop.permute.xlu0 %2738
        %2740 = vrot.lane.b32.xlu0 %v2731, 64
        %v2741 = vpop.permute.xlu0 %2740
        %2742 = vrot.lane.b32.xlu0 %v2732, 64
        %v2743 = vpop.permute.xlu0 %2742
        %2744 = vrot.lane.b32.xlu0 %v2733, 64
        %v2745 = vpop.permute.xlu0 %2744
        %2746 = vrot.lane.b32.xlu0 %v2734, 64
        %v2747 = vpop.permute.xlu0 %2746
        %2748 = vrot.lane.b32.xlu0 %v2735, 64
        %v2749 = vpop.permute.xlu0 %2748
        %2750 = vrot.lane.b32.xlu0 %v2736, 64
        %v2751 = vpop.permute.xlu0 %2750
        %2752 = vrot.lane.b32.xlu0 %v2737, 64
        %v2753 = vpop.permute.xlu0 %2752
        %v2754 = vmax.f32 %v2730, %v2739
        %v2755 = vmax.f32 %v2731, %v2741
        %v2756 = vmax.f32 %v2732, %v2743
        %v2757 = vmax.f32 %v2733, %v2745
        %v2758 = vmax.f32 %v2734, %v2747
        %v2759 = vmax.f32 %v2735, %v2749
        %v2760 = vmax.f32 %v2736, %v2751
        %v2761 = vmax.f32 %v2737, %v2753
        %2762 = vrot.lane.b32.xlu0 %v2754, 32
        %v2763 = vpop.permute.xlu0 %2762
        %2764 = vrot.lane.b32.xlu0 %v2755, 32
        %v2765 = vpop.permute.xlu0 %2764
        %2766 = vrot.lane.b32.xlu0 %v2756, 32
        %v2767 = vpop.permute.xlu0 %2766
        %2768 = vrot.lane.b32.xlu0 %v2757, 32
        %v2769 = vpop.permute.xlu0 %2768
        %2770 = vrot.lane.b32.xlu0 %v2758, 32
        %v2771 = vpop.permute.xlu0 %2770
        %2772 = vrot.lane.b32.xlu0 %v2759, 32
        %v2773 = vpop.permute.xlu0 %2772
        %2774 = vrot.lane.b32.xlu0 %v2760, 32
        %v2775 = vpop.permute.xlu0 %2774
        %2776 = vrot.lane.b32.xlu0 %v2761, 32
        %v2777 = vpop.permute.xlu0 %2776
        %v2778 = vmax.f32 %v2754, %v2763
        %v2779 = vmax.f32 %v2755, %v2765
        %v2780 = vmax.f32 %v2756, %v2767
        %v2781 = vmax.f32 %v2757, %v2769
        %v2782 = vmax.f32 %v2758, %v2771
        %v2783 = vmax.f32 %v2759, %v2773
        %v2784 = vmax.f32 %v2760, %v2775
        %v2785 = vmax.f32 %v2761, %v2777
        %2786 = vrot.lane.b32.xlu0 %v2778, 16
        %v2787 = vpop.permute.xlu0 %2786
        %2788 = vrot.lane.b32.xlu0 %v2779, 16
        %v2789 = vpop.permute.xlu0 %2788
        %2790 = vrot.lane.b32.xlu0 %v2780, 16
        %v2791 = vpop.permute.xlu0 %2790
        %2792 = vrot.lane.b32.xlu0 %v2781, 16
        %v2793 = vpop.permute.xlu0 %2792
        %2794 = vrot.lane.b32.xlu0 %v2782, 16
        %v2795 = vpop.permute.xlu0 %2794
        %2796 = vrot.lane.b32.xlu0 %v2783, 16
        %v2797 = vpop.permute.xlu0 %2796
        %2798 = vrot.lane.b32.xlu0 %v2784, 16
        %v2799 = vpop.permute.xlu0 %2798
        %2800 = vrot.lane.b32.xlu0 %v2785, 16
        %v2801 = vpop.permute.xlu0 %2800
        %v2802 = vmax.f32 %v2778, %v2787
        %v2803 = vmax.f32 %v2779, %v2789
        %v2804 = vmax.f32 %v2780, %v2791
        %v2805 = vmax.f32 %v2781, %v2793
        %v2806 = vmax.f32 %v2782, %v2795
        %v2807 = vmax.f32 %v2783, %v2797
        %v2808 = vmax.f32 %v2784, %v2799
        %v2809 = vmax.f32 %v2785, %v2801
        %v2810 = vsub.f32 %v2730, %v2802
        %v2811 = vsub.f32 %v2731, %v2803
        %v2812 = vsub.f32 %v2732, %v2804
        %v2813 = vsub.f32 %v2733, %v2805
        %v2814 = vsub.f32 %v2734, %v2806
        %v2815 = vsub.f32 %v2735, %v2807
        %v2816 = vsub.f32 %v2736, %v2808
        %v2817 = vsub.f32 %v2737, %v2809
        %v2818 = vmul.f32 %v2810, 1.442695
        %v2819 = vpow.pop %v2818
        %v2820 = vmul.f32 %v2811, 1.442695
        %v2821 = vpow.pop %v2820
        %v2822 = vmul.f32 %v2812, 1.442695
        %v2823 = vpow.pop %v2822
        %v2824 = vmul.f32 %v2813, 1.442695
        %v2825 = vpow.pop %v2824
        %v2826 = vmul.f32 %v2814, 1.442695
        %v2827 = vpow.pop %v2826
        %v2828 = vmul.f32 %v2815, 1.442695
        %v2829 = vpow.pop %v2828
        %v2830 = vmul.f32 %v2816, 1.442695
        %v2831 = vpow.pop %v2830
        %v2832 = vmul.f32 %v2817, 1.442695
        %v2833 = vpow.pop %v2832
        %2834 = vrot.lane.b32.xlu0 %v2819, 64
        %v2835 = vpop.permute.xlu0 %2834
        %2836 = vrot.lane.b32.xlu0 %v2821, 64
        %v2837 = vpop.permute.xlu0 %2836
        %2838 = vrot.lane.b32.xlu0 %v2823, 64
        %v2839 = vpop.permute.xlu0 %2838
        %2840 = vrot.lane.b32.xlu0 %v2825, 64
        %v2841 = vpop.permute.xlu0 %2840
        %2842 = vrot.lane.b32.xlu0 %v2827, 64
        %v2843 = vpop.permute.xlu0 %2842
        %2844 = vrot.lane.b32.xlu0 %v2829, 64
        %v2845 = vpop.permute.xlu0 %2844
        %2846 = vrot.lane.b32.xlu0 %v2831, 64
        %v2847 = vpop.permute.xlu0 %2846
        %2848 = vrot.lane.b32.xlu0 %v2833, 64
        %v2849 = vpop.permute.xlu0 %2848
        %v2850 = vadd.f32 %v2819, %v2835
        %v2851 = vadd.f32 %v2821, %v2837
        %v2852 = vadd.f32 %v2823, %v2839
        %v2853 = vadd.f32 %v2825, %v2841
        %v2854 = vadd.f32 %v2827, %v2843
        %v2855 = vadd.f32 %v2829, %v2845
        %v2856 = vadd.f32 %v2831, %v2847
        %v2857 = vadd.f32 %v2833, %v2849
        %2858 = vrot.lane.b32.xlu0 %v2850, 32
        %v2859 = vpop.permute.xlu0 %2858
        %2860 = vrot.lane.b32.xlu0 %v2851, 32
        %v2861 = vpop.permute.xlu0 %2860
        %2862 = vrot.lane.b32.xlu0 %v2852, 32
        %v2863 = vpop.permute.xlu0 %2862
        %2864 = vrot.lane.b32.xlu0 %v2853, 32
        %v2865 = vpop.permute.xlu0 %2864
        %2866 = vrot.lane.b32.xlu0 %v2854, 32
        %v2867 = vpop.permute.xlu0 %2866
        %2868 = vrot.lane.b32.xlu0 %v2855, 32
        %v2869 = vpop.permute.xlu0 %2868
        %2870 = vrot.lane.b32.xlu0 %v2856, 32
        %v2871 = vpop.permute.xlu0 %2870
        %2872 = vrot.lane.b32.xlu0 %v2857, 32
        %v2873 = vpop.permute.xlu0 %2872
        %v2874 = vadd.f32 %v2850, %v2859
        %v2875 = vadd.f32 %v2851, %v2861
        %v2876 = vadd.f32 %v2852, %v2863
        %v2877 = vadd.f32 %v2853, %v2865
        %v2878 = vadd.f32 %v2854, %v2867
        %v2879 = vadd.f32 %v2855, %v2869
        %v2880 = vadd.f32 %v2856, %v2871
        %v2881 = vadd.f32 %v2857, %v2873
        %2882 = vrot.lane.b32.xlu0 %v2874, 16
        %v2883 = vpop.permute.xlu0 %2882
        %2884 = vrot.lane.b32.xlu0 %v2875, 16
        %v2885 = vpop.permute.xlu0 %2884
        %2886 = vrot.lane.b32.xlu0 %v2876, 16
        %v2887 = vpop.permute.xlu0 %2886
        %2888 = vrot.lane.b32.xlu0 %v2877, 16
        %v2889 = vpop.permute.xlu0 %2888
        %2890 = vrot.lane.b32.xlu0 %v2878, 16
        %v2891 = vpop.permute.xlu0 %2890
        %2892 = vrot.lane.b32.xlu0 %v2879, 16
        %v2893 = vpop.permute.xlu0 %2892
        %2894 = vrot.lane.b32.xlu0 %v2880, 16
        %v2895 = vpop.permute.xlu0 %2894
        %2896 = vrot.lane.b32.xlu0 %v2881, 16
        %v2897 = vpop.permute.xlu0 %2896
        %v2898 = vadd.f32 %v2874, %v2883
        %v2899 = vadd.f32 %v2875, %v2885
        %v2900 = vadd.f32 %v2876, %v2887
        %v2901 = vadd.f32 %v2877, %v2889
        %v2902 = vadd.f32 %v2878, %v2891
        %v2903 = vadd.f32 %v2879, %v2893
        %v2904 = vadd.f32 %v2880, %v2895
        %v2905 = vadd.f32 %v2881, %v2897
        %v2906 = vrcp.pop %v2898
        %v2907 = vrcp.pop %v2899
        %v2908 = vrcp.pop %v2900
        %v2909 = vrcp.pop %v2901
        %v2910 = vrcp.pop %v2902
        %v2911 = vrcp.pop %v2903
        %v2912 = vrcp.pop %v2904
        %v2913 = vrcp.pop %v2905
        %v2914 = vmul.f32 %v2819, %v2906
        %v2915 = vmul.f32 %v2821, %v2907
        %v2916 = vmul.f32 %v2823, %v2908
        %v2917 = vmul.f32 %v2825, %v2909
        %v2918 = vmul.f32 %v2827, %v2910
        %v2919 = vmul.f32 %v2829, %v2911
        %v2920 = vmul.f32 %v2831, %v2912
        %v2921 = vmul.f32 %v2833, %v2913
        %v2922 = vpack.c.bf16 %v2915, %v2914
        %v2923 = vpack.c.bf16 %v2917, %v2916
        %v2924 = vpack.c.bf16 %v2919, %v2918
        %v2925 = vpack.c.bf16 %v2921, %v2920
        %v2926 = vld [vmem:[#allocation7] sm:$0xff]
        %v2927 = vld [vmem:[#allocation7 + $0x8] sm:$0xff]
        %v2928 = vld [vmem:[#allocation7 + $0x10] sm:$0xff]
        %v2929 = vld [vmem:[#allocation7 + $0x18] sm:$0xff]
        %v2930 = vld [vmem:[#allocation7 + $0x20] sm:$0xff]
        %v2931 = vld [vmem:[#allocation7 + $0x28] sm:$0xff]
        %v2932 = vld [vmem:[#allocation7 + $0x30] sm:$0xff]
        %v2933 = vld [vmem:[#allocation7 + $0x38] sm:$0xff]
        %v2934 = vld [vmem:[#allocation7 + $0x40] sm:$0xff]
        %v2935 = vld [vmem:[#allocation7 + $0x48] sm:$0xff]
        %v2936 = vld [vmem:[#allocation7 + $0x50] sm:$0xff]
        %v2937 = vld [vmem:[#allocation7 + $0x58] sm:$0xff]
        %v2938 = vld [vmem:[#allocation7 + $0x60] sm:$0xff]
        %v2939 = vld [vmem:[#allocation7 + $0x68] sm:$0xff]
        %v2940 = vld [vmem:[#allocation7 + $0x70] sm:$0xff]
        %v2941 = vld [vmem:[#allocation7 + $0x78] sm:$0xff]
        %v2942 = vld [vmem:[#allocation7 + $0x80] sm:$0xff]
        %v2943 = vld [vmem:[#allocation7 + $0x88] sm:$0xff]
        %v2944 = vld [vmem:[#allocation7 + $0x90] sm:$0xff]
        %v2945 = vld [vmem:[#allocation7 + $0x98] sm:$0xff]
        %v2946 = vld [vmem:[#allocation7 + $0xa0] sm:$0xff]
        %v2947 = vld [vmem:[#allocation7 + $0xa8] sm:$0xff]
        %v2948 = vld [vmem:[#allocation7 + $0xb0] sm:$0xff]
        %v2949 = vld [vmem:[#allocation7 + $0xb8] sm:$0xff]
        %v2950 = vld [vmem:[#allocation7 + $0xc0] sm:$0xff]
        %v2951 = vld [vmem:[#allocation7 + $0xc8] sm:$0xff]
        %v2952 = vld [vmem:[#allocation7 + $0xd0] sm:$0xff]
        %v2953 = vld [vmem:[#allocation7 + $0xd8] sm:$0xff]
        %v2954 = vld [vmem:[#allocation7 + $0xe0] sm:$0xff]
        %v2955 = vld [vmem:[#allocation7 + $0xe8] sm:$0xff]
        %v2956 = vld [vmem:[#allocation7 + $0xf0] sm:$0xff]
        %v2957 = vld [vmem:[#allocation7 + $0xf8] sm:$0xff]
        %v2958 = vld [vmem:[#allocation7 + $0x100] sm:$0xff]
        %v2959 = vld [vmem:[#allocation7 + $0x108] sm:$0xff]
        %v2960 = vld [vmem:[#allocation7 + $0x110] sm:$0xff]
        %v2961 = vld [vmem:[#allocation7 + $0x118] sm:$0xff]
        %v2962 = vld [vmem:[#allocation7 + $0x120] sm:$0xff]
        %v2963 = vld [vmem:[#allocation7 + $0x128] sm:$0xff]
        %v2964 = vld [vmem:[#allocation7 + $0x130] sm:$0xff]
        %v2965 = vld [vmem:[#allocation7 + $0x138] sm:$0xff]
        %v2966 = vld [vmem:[#allocation7 + $0x140] sm:$0xff]
        %v2967 = vld [vmem:[#allocation7 + $0x148] sm:$0xff]
        %v2968 = vld [vmem:[#allocation7 + $0x150] sm:$0xff]
        %v2969 = vld [vmem:[#allocation7 + $0x158] sm:$0xff]
        %v2970 = vld [vmem:[#allocation7 + $0x160] sm:$0xff]
        %v2971 = vld [vmem:[#allocation7 + $0x168] sm:$0xff]
        %v2972 = vld [vmem:[#allocation7 + $0x170] sm:$0xff]
        %v2973 = vld [vmem:[#allocation7 + $0x178] sm:$0xff]
        %v2974 = vld [vmem:[#allocation7 + $0x180] sm:$0xff]
        %v2975 = vld [vmem:[#allocation7 + $0x188] sm:$0xff]
        %v2976 = vld [vmem:[#allocation7 + $0x190] sm:$0xff]
        %v2977 = vld [vmem:[#allocation7 + $0x198] sm:$0xff]
        %v2978 = vld [vmem:[#allocation7 + $0x1a0] sm:$0xff]
        %v2979 = vld [vmem:[#allocation7 + $0x1a8] sm:$0xff]
        %v2980 = vld [vmem:[#allocation7 + $0x1b0] sm:$0xff]
        %v2981 = vld [vmem:[#allocation7 + $0x1b8] sm:$0xff]
        %v2982 = vld [vmem:[#allocation7 + $0x1c0] sm:$0xff]
        %v2983 = vld [vmem:[#allocation7 + $0x1c8] sm:$0xff]
        %v2984 = vld [vmem:[#allocation7 + $0x1d0] sm:$0xff]
        %v2985 = vld [vmem:[#allocation7 + $0x1d8] sm:$0xff]
        %v2986 = vld [vmem:[#allocation7 + $0x1e0] sm:$0xff]
        %v2987 = vld [vmem:[#allocation7 + $0x1e8] sm:$0xff]
        %v2988 = vld [vmem:[#allocation7 + $0x1f0] sm:$0xff]
        %v2989 = vld [vmem:[#allocation7 + $0x1f8] sm:$0xff]
        %v3054 = vunpack.c.l.b16 %v2926
        %v3055 = vunpack.c.h.b16 %v2926
        %v3056 = vunpack.c.l.b16 %v2927
        %v3057 = vunpack.c.h.b16 %v2927
        %v3058 = vunpack.c.l.b16 %v2928
        %v3059 = vunpack.c.h.b16 %v2928
        %v3060 = vunpack.c.l.b16 %v2929
        %v3061 = vunpack.c.h.b16 %v2929
        %v3062 = vunpack.c.l.b16 %v2930
        %v3063 = vunpack.c.h.b16 %v2930
        %v3064 = vunpack.c.l.b16 %v2931
        %v3065 = vunpack.c.h.b16 %v2931
        %v3066 = vunpack.c.l.b16 %v2932
        %v3067 = vunpack.c.h.b16 %v2932
        %v3068 = vunpack.c.l.b16 %v2933
        %v3069 = vunpack.c.h.b16 %v2933
        %v3070 = vunpack.c.l.b16 %v2934
        %v3071 = vunpack.c.h.b16 %v2934
        %v3072 = vunpack.c.l.b16 %v2935
        %v3073 = vunpack.c.h.b16 %v2935
        %v3074 = vunpack.c.l.b16 %v2936
        %v3075 = vunpack.c.h.b16 %v2936
        %v3076 = vunpack.c.l.b16 %v2937
        %v3077 = vunpack.c.h.b16 %v2937
        %v3078 = vunpack.c.l.b16 %v2938
        %v3079 = vunpack.c.h.b16 %v2938
        %v3080 = vunpack.c.l.b16 %v2939
        %v3081 = vunpack.c.h.b16 %v2939
        %v3082 = vunpack.c.l.b16 %v2940
        %v3083 = vunpack.c.h.b16 %v2940
        %v3084 = vunpack.c.l.b16 %v2941
        %v3085 = vunpack.c.h.b16 %v2941
        %v3086 = vunpack.c.l.b16 %v2942
        %v3087 = vunpack.c.h.b16 %v2942
        %v3088 = vunpack.c.l.b16 %v2943
        %v3089 = vunpack.c.h.b16 %v2943
        %v3090 = vunpack.c.l.b16 %v2944
        %v3091 = vunpack.c.h.b16 %v2944
        %v3092 = vunpack.c.l.b16 %v2945
        %v3093 = vunpack.c.h.b16 %v2945
        %v3094 = vunpack.c.l.b16 %v2946
        %v3095 = vunpack.c.h.b16 %v2946
        %v3096 = vunpack.c.l.b16 %v2947
        %v3097 = vunpack.c.h.b16 %v2947
        %v3098 = vunpack.c.l.b16 %v2948
        %v3099 = vunpack.c.h.b16 %v2948
        %v3100 = vunpack.c.l.b16 %v2949
        %v3101 = vunpack.c.h.b16 %v2949
        %v3102 = vunpack.c.l.b16 %v2950
        %v3103 = vunpack.c.h.b16 %v2950
        %v3104 = vunpack.c.l.b16 %v2951
        %v3105 = vunpack.c.h.b16 %v2951
        %v3106 = vunpack.c.l.b16 %v2952
        %v3107 = vunpack.c.h.b16 %v2952
        %v3108 = vunpack.c.l.b16 %v2953
        %v3109 = vunpack.c.h.b16 %v2953
        %v3110 = vunpack.c.l.b16 %v2954
        %v3111 = vunpack.c.h.b16 %v2954
        %v3112 = vunpack.c.l.b16 %v2955
        %v3113 = vunpack.c.h.b16 %v2955
        %v3114 = vunpack.c.l.b16 %v2956
        %v3115 = vunpack.c.h.b16 %v2956
        %v3116 = vunpack.c.l.b16 %v2957
        %v3117 = vunpack.c.h.b16 %v2957
        %v3118 = vunpack.c.l.b16 %v2958
        %v3119 = vunpack.c.h.b16 %v2958
        %v3120 = vunpack.c.l.b16 %v2959
        %v3121 = vunpack.c.h.b16 %v2959
        %v3122 = vunpack.c.l.b16 %v2960
        %v3123 = vunpack.c.h.b16 %v2960
        %v3124 = vunpack.c.l.b16 %v2961
        %v3125 = vunpack.c.h.b16 %v2961
        %v3126 = vunpack.c.l.b16 %v2962
        %v3127 = vunpack.c.h.b16 %v2962
        %v3128 = vunpack.c.l.b16 %v2963
        %v3129 = vunpack.c.h.b16 %v2963
        %v3130 = vunpack.c.l.b16 %v2964
        %v3131 = vunpack.c.h.b16 %v2964
        %v3132 = vunpack.c.l.b16 %v2965
        %v3133 = vunpack.c.h.b16 %v2965
        %v3134 = vunpack.c.l.b16 %v2966
        %v3135 = vunpack.c.h.b16 %v2966
        %v3136 = vunpack.c.l.b16 %v2967
        %v3137 = vunpack.c.h.b16 %v2967
        %v3138 = vunpack.c.l.b16 %v2968
        %v3139 = vunpack.c.h.b16 %v2968
        %v3140 = vunpack.c.l.b16 %v2969
        %v3141 = vunpack.c.h.b16 %v2969
        %v3142 = vunpack.c.l.b16 %v2970
        %v3143 = vunpack.c.h.b16 %v2970
        %v3144 = vunpack.c.l.b16 %v2971
        %v3145 = vunpack.c.h.b16 %v2971
        %v3146 = vunpack.c.l.b16 %v2972
        %v3147 = vunpack.c.h.b16 %v2972
        %v3148 = vunpack.c.l.b16 %v2973
        %v3149 = vunpack.c.h.b16 %v2973
        %v3150 = vunpack.c.l.b16 %v2974
        %v3151 = vunpack.c.h.b16 %v2974
        %v3152 = vunpack.c.l.b16 %v2975
        %v3153 = vunpack.c.h.b16 %v2975
        %v3154 = vunpack.c.l.b16 %v2976
        %v3155 = vunpack.c.h.b16 %v2976
        %v3156 = vunpack.c.l.b16 %v2977
        %v3157 = vunpack.c.h.b16 %v2977
        %v3158 = vunpack.c.l.b16 %v2978
        %v3159 = vunpack.c.h.b16 %v2978
        %v3160 = vunpack.c.l.b16 %v2979
        %v3161 = vunpack.c.h.b16 %v2979
        %v3162 = vunpack.c.l.b16 %v2980
        %v3163 = vunpack.c.h.b16 %v2980
        %v3164 = vunpack.c.l.b16 %v2981
        %v3165 = vunpack.c.h.b16 %v2981
        %v3166 = vunpack.c.l.b16 %v2982
        %v3167 = vunpack.c.h.b16 %v2982
        %v3168 = vunpack.c.l.b16 %v2983
        %v3169 = vunpack.c.h.b16 %v2983
        %v3170 = vunpack.c.l.b16 %v2984
        %v3171 = vunpack.c.h.b16 %v2984
        %v3172 = vunpack.c.l.b16 %v2985
        %v3173 = vunpack.c.h.b16 %v2985
        %v3174 = vunpack.c.l.b16 %v2986
        %v3175 = vunpack.c.h.b16 %v2986
        %v3176 = vunpack.c.l.b16 %v2987
        %v3177 = vunpack.c.h.b16 %v2987
        %v3178 = vunpack.c.l.b16 %v2988
        %v3179 = vunpack.c.h.b16 %v2988
        %v3180 = vunpack.c.l.b16 %v2989
        %v3181 = vunpack.c.h.b16 %v2989
        %v3182 = vpack.c.b16 %v3062, %v3054
        %v3183 = vpack.c.b16 %v3063, %v3055
        %v3184 = vpack.c.b16 %v3064, %v3056
        %v3185 = vpack.c.b16 %v3065, %v3057
        %v3186 = vpack.c.b16 %v3066, %v3058
        %v3187 = vpack.c.b16 %v3067, %v3059
        %v3188 = vpack.c.b16 %v3068, %v3060
        %v3189 = vpack.c.b16 %v3069, %v3061
        %v3190 = vpack.c.b16 %v3078, %v3070
        %v3191 = vpack.c.b16 %v3079, %v3071
        %v3192 = vpack.c.b16 %v3080, %v3072
        %v3193 = vpack.c.b16 %v3081, %v3073
        %v3194 = vpack.c.b16 %v3082, %v3074
        %v3195 = vpack.c.b16 %v3083, %v3075
        %v3196 = vpack.c.b16 %v3084, %v3076
        %v3197 = vpack.c.b16 %v3085, %v3077
        %v3198 = vpack.c.b16 %v3094, %v3086
        %v3199 = vpack.c.b16 %v3095, %v3087
        %v3200 = vpack.c.b16 %v3096, %v3088
        %v3201 = vpack.c.b16 %v3097, %v3089
        %v3202 = vpack.c.b16 %v3098, %v3090
        %v3203 = vpack.c.b16 %v3099, %v3091
        %v3204 = vpack.c.b16 %v3100, %v3092
        %v3205 = vpack.c.b16 %v3101, %v3093
        %v3206 = vpack.c.b16 %v3110, %v3102
        %v3207 = vpack.c.b16 %v3111, %v3103
        %v3208 = vpack.c.b16 %v3112, %v3104
        %v3209 = vpack.c.b16 %v3113, %v3105
        %v3210 = vpack.c.b16 %v3114, %v3106
        %v3211 = vpack.c.b16 %v3115, %v3107
        %v3212 = vpack.c.b16 %v3116, %v3108
        %v3213 = vpack.c.b16 %v3117, %v3109
        %v3214 = vpack.c.b16 %v3126, %v3118
        %v3215 = vpack.c.b16 %v3127, %v3119
        %v3216 = vpack.c.b16 %v3128, %v3120
        %v3217 = vpack.c.b16 %v3129, %v3121
        %v3218 = vpack.c.b16 %v3130, %v3122
        %v3219 = vpack.c.b16 %v3131, %v3123
        %v3220 = vpack.c.b16 %v3132, %v3124
        %v3221 = vpack.c.b16 %v3133, %v3125
        %v3222 = vpack.c.b16 %v3142, %v3134
        %v3223 = vpack.c.b16 %v3143, %v3135
        %v3224 = vpack.c.b16 %v3144, %v3136
        %v3225 = vpack.c.b16 %v3145, %v3137
        %v3226 = vpack.c.b16 %v3146, %v3138
        %v3227 = vpack.c.b16 %v3147, %v3139
        %v3228 = vpack.c.b16 %v3148, %v3140
        %v3229 = vpack.c.b16 %v3149, %v3141
        %v3230 = vpack.c.b16 %v3158, %v3150
        %v3231 = vpack.c.b16 %v3159, %v3151
        %v3232 = vpack.c.b16 %v3160, %v3152
        %v3233 = vpack.c.b16 %v3161, %v3153
        %v3234 = vpack.c.b16 %v3162, %v3154
        %v3235 = vpack.c.b16 %v3163, %v3155
        %v3236 = vpack.c.b16 %v3164, %v3156
        %v3237 = vpack.c.b16 %v3165, %v3157
        %v3238 = vpack.c.b16 %v3174, %v3166
        %v3239 = vpack.c.b16 %v3175, %v3167
        %v3240 = vpack.c.b16 %v3176, %v3168
        %v3241 = vpack.c.b16 %v3177, %v3169
        %v3242 = vpack.c.b16 %v3178, %v3170
        %v3243 = vpack.c.b16 %v3179, %v3171
        %v3244 = vpack.c.b16 %v3180, %v3172
        %v3245 = vpack.c.b16 %v3181, %v3173
        %3310 = vmatprep.subr.bf16.mxu0 %v3183
        %3311 = vmatpush1.bf16.msra.mxu0 %v3182
        %3312 = vmatprep.subr.bf16.mxu0 %v3191
        %3313 = vmatpush1.bf16.msra.mxu0 %v3190
        %3314 = vmatprep.subr.bf16.mxu0 %v3199
        %3315 = vmatpush1.bf16.msra.mxu0 %v3198
        %3316 = vmatprep.subr.bf16.mxu0 %v3207
        %3317 = vmatpush1.bf16.msra.mxu0 %v3206
        %3318 = vmatprep.subr.bf16.mxu0 %v3215
        %3319 = vmatpush1.bf16.msra.mxu0 %v3214
        %3320 = vmatprep.subr.bf16.mxu0 %v3223
        %3321 = vmatpush1.bf16.msra.mxu0 %v3222
        %3322 = vmatprep.subr.bf16.mxu0 %v3231
        %3323 = vmatpush1.bf16.msra.mxu0 %v3230
        %3324 = vmatprep.subr.bf16.mxu0 %v3239
        %3325 = vmatpush1.bf16.msra.mxu0 %v3238
        %3326 = vmatprep.subr.bf16.mxu0 0
        %3327 = vmatpush1.bf16.msra.mxu0 0
        %3328 = vmatprep.subr.bf16.mxu0 0
        %3329 = vmatpush1.bf16.msra.mxu0 0
        %3330 = vmatprep.subr.bf16.mxu0 0
        %3331 = vmatpush1.bf16.msra.mxu0 0
        %3332 = vmatprep.subr.bf16.mxu0 0
        %3333 = vmatpush1.bf16.msra.mxu0 0
        %3334 = vmatprep.subr.bf16.mxu0 0
        %3335 = vmatpush1.bf16.msra.mxu0 0
        %3336 = vmatprep.subr.bf16.mxu0 0
        %3337 = vmatpush1.bf16.msra.mxu0 0
        %3338 = vmatprep.subr.bf16.mxu0 0
        %3339 = vmatpush1.bf16.msra.mxu0 0
        %3340 = vmatprep.subr.bf16.mxu0 0
        %3341 = vmatpush1.bf16.msra.mxu0 0
        %3342 = vmatprep.mubr.bf16.mxu0 0
        %3343 = vmatmul.mubr.bf16.gmra.mrb[0].mxu0 %v2922
        %v3344 = vpop.f32.mrb[0].mxu0
        %v3345 = vadd.f32 0.0, %v3344
        %v3346 = vpop.f32.mrb[0].mxu0
        %v3347 = vadd.f32 0.0, %v3346
        %v3348 = vpop.f32.mrb[0].mxu0
        %v3349 = vadd.f32 0.0, %v3348
        %v3350 = vpop.f32.mrb[0].mxu0
        %v3351 = vadd.f32 0.0, %v3350
        %3352 = vmatprep.mubr.bf16.mxu0 0
        %3353 = vmatmul.mubr.bf16.gmra.mrb[0].mxu0 %v2923
        %v3354 = vpop.f32.mrb[0].mxu0
        %v3355 = vadd.f32 0.0, %v3354
        %v3356 = vpop.f32.mrb[0].mxu0
        %v3357 = vadd.f32 0.0, %v3356
        %v3358 = vpop.f32.mrb[0].mxu0
        %v3359 = vadd.f32 0.0, %v3358
        %v3360 = vpop.f32.mrb[0].mxu0
        %v3361 = vadd.f32 0.0, %v3360
        %3362 = vmatprep.mubr.bf16.mxu0 0
        %3363 = vmatmul.mubr.bf16.gmra.mrb[0].mxu0 %v2924
        %v3364 = vpop.f32.mrb[0].mxu0
        %v3365 = vadd.f32 0.0, %v3364
        %v3366 = vpop.f32.mrb[0].mxu0
        %v3367 = vadd.f32 0.0, %v3366
        %v3368 = vpop.f32.mrb[0].mxu0
        %v3369 = vadd.f32 0.0, %v3368
        %v3370 = vpop.f32.mrb[0].mxu0
        %v3371 = vadd.f32 0.0, %v3370
        %3372 = vmatprep.mubr.bf16.mxu0 0
        %3373 = vmatmul.mubr.bf16.gmra.mrb[0].mxu0 %v2925
        %v3374 = vpop.f32.mrb[0].mxu0
        %v3375 = vadd.f32 0.0, %v3374
        %v3376 = vpop.f32.mrb[0].mxu0
        %v3377 = vadd.f32 0.0, %v3376
        %v3378 = vpop.f32.mrb[0].mxu0
        %v3379 = vadd.f32 0.0, %v3378
        %v3380 = vpop.f32.mrb[0].mxu0
        %v3381 = vadd.f32 0.0, %v3380
        %3382 = vdwg.mxu0
        %3383 = vmatprep.subr.bf16.mxu0 %v3185
        %3384 = vmatpush1.bf16.msra.mxu0 %v3184
        %3385 = vmatprep.subr.bf16.mxu0 %v3193
        %3386 = vmatpush1.bf16.msra.mxu0 %v3192
        %3387 = vmatprep.subr.bf16.mxu0 %v3201
        %3388 = vmatpush1.bf16.msra.mxu0 %v3200
        %3389 = vmatprep.subr.bf16.mxu0 %v3209
        %3390 = vmatpush1.bf16.msra.mxu0 %v3208
        %3391 = vmatprep.subr.bf16.mxu0 %v3217
        %3392 = vmatpush1.bf16.msra.mxu0 %v3216
        %3393 = vmatprep.subr.bf16.mxu0 %v3225
        %3394 = vmatpush1.bf16.msra.mxu0 %v3224
        %3395 = vmatprep.subr.bf16.mxu0 %v3233
        %3396 = vmatpush1.bf16.msra.mxu0 %v3232
        %3397 = vmatprep.subr.bf16.mxu0 %v3241
        %3398 = vmatpush1.bf16.msra.mxu0 %v3240
        %3399 = vmatprep.subr.bf16.mxu0 0
        %3400 = vmatpush1.bf16.msra.mxu0 0
        %3401 = vmatprep.subr.bf16.mxu0 0
        %3402 = vmatpush1.bf16.msra.mxu0 0
        %3403 = vmatprep.subr.bf16.mxu0 0
        %3404 = vmatpush1.bf16.msra.mxu0 0
        %3405 = vmatprep.subr.bf16.mxu0 0
        %3406 = vmatpush1.bf16.msra.mxu0 0
        %3407 = vmatprep.subr.bf16.mxu0 0
        %3408 = vmatpush1.bf16.msra.mxu0 0
        %3409 = vmatprep.subr.bf16.mxu0 0
        %3410 = vmatpush1.bf16.msra.mxu0 0
        %3411 = vmatprep.subr.bf16.mxu0 0
        %3412 = vmatpush1.bf16.msra.mxu0 0
        %3413 = vmatprep.subr.bf16.mxu0 0
        %3414 = vmatpush1.bf16.msra.mxu0 0
        %3415 = vmatprep.mubr.bf16.mxu0 0
        %3416 = vmatmul.mubr.bf16.gmra.mrb[0].mxu0 %v2922
        %v3417 = vpop.f32.mrb[0].mxu0
        %v3418 = vadd.f32 0.0, %v3417
        %v3419 = vpop.f32.mrb[0].mxu0
        %v3420 = vadd.f32 0.0, %v3419
        %v3421 = vpop.f32.mrb[0].mxu0
        %v3422 = vadd.f32 0.0, %v3421
        %v3423 = vpop.f32.mrb[0].mxu0
        %v3424 = vadd.f32 0.0, %v3423
        %3425 = vmatprep.mubr.bf16.mxu0 0
        %3426 = vmatmul.mubr.bf16.gmra.mrb[0].mxu0 %v2923
        %v3427 = vpop.f32.mrb[0].mxu0
        %v3428 = vadd.f32 0.0, %v3427
        %v3429 = vpop.f32.mrb[0].mxu0
        %v3430 = vadd.f32 0.0, %v3429
        %v3431 = vpop.f32.mrb[0].mxu0
        %v3432 = vadd.f32 0.0, %v3431
        %v3433 = vpop.f32.mrb[0].mxu0
        %v3434 = vadd.f32 0.0, %v3433
        %3435 = vmatprep.mubr.bf16.mxu0 0
        %3436 = vmatmul.mubr.bf16.gmra.mrb[0].mxu0 %v2924
        %v3437 = vpop.f32.mrb[0].mxu0
        %v3438 = vadd.f32 0.0, %v3437
        %v3439 = vpop.f32.mrb[0].mxu0
        %v3440 = vadd.f32 0.0, %v3439
        %v3441 = vpop.f32.mrb[0].mxu0
        %v3442 = vadd.f32 0.0, %v3441
        %v3443 = vpop.f32.mrb[0].mxu0
        %v3444 = vadd.f32 0.0, %v3443
        %3445 = vmatprep.mubr.bf16.mxu0 0
        %3446 = vmatmul.mubr.bf16.gmra.mrb[0].mxu0 %v2925
        %v3447 = vpop.f32.mrb[0].mxu0
        %v3448 = vadd.f32 0.0, %v3447
        %v3449 = vpop.f32.mrb[0].mxu0
        %v3450 = vadd.f32 0.0, %v3449
        %v3451 = vpop.f32.mrb[0].mxu0
        %v3452 = vadd.f32 0.0, %v3451
        %v3453 = vpop.f32.mrb[0].mxu0
        %v3454 = vadd.f32 0.0, %v3453
        %3455 = vdwg.mxu0
        %3456 = vmatprep.subr.bf16.mxu0 %v3187
        %3457 = vmatpush1.bf16.msra.mxu0 %v3186
        %3458 = vmatprep.subr.bf16.mxu0 %v3195
        %3459 = vmatpush1.bf16.msra.mxu0 %v3194
        %3460 = vmatprep.subr.bf16.mxu0 %v3203
        %3461 = vmatpush1.bf16.msra.mxu0 %v3202
        %3462 = vmatprep.subr.bf16.mxu0 %v3211
        %3463 = vmatpush1.bf16.msra.mxu0 %v3210
        %3464 = vmatprep.subr.bf16.mxu0 %v3219
        %3465 = vmatpush1.bf16.msra.mxu0 %v3218
        %3466 = vmatprep.subr.bf16.mxu0 %v3227
        %3467 = vmatpush1.bf16.msra.mxu0 %v3226
        %3468 = vmatprep.subr.bf16.mxu0 %v3235
        %3469 = vmatpush1.bf16.msra.mxu0 %v3234
        %3470 = vmatprep.subr.bf16.mxu0 %v3243
        %3471 = vmatpush1.bf16.msra.mxu0 %v3242
        %3472 = vmatprep.subr.bf16.mxu0 0
        %3473 = vmatpush1.bf16.msra.mxu0 0
        %3474 = vmatprep.subr.bf16.mxu0 0
        %3475 = vmatpush1.bf16.msra.mxu0 0
        %3476 = vmatprep.subr.bf16.mxu0 0
        %3477 = vmatpush1.bf16.msra.mxu0 0
        %3478 = vmatprep.subr.bf16.mxu0 0
        %3479 = vmatpush1.bf16.msra.mxu0 0
        %3480 = vmatprep.subr.bf16.mxu0 0
        %3481 = vmatpush1.bf16.msra.mxu0 0
        %3482 = vmatprep.subr.bf16.mxu0 0
        %3483 = vmatpush1.bf16.msra.mxu0 0
        %3484 = vmatprep.subr.bf16.mxu0 0
        %3485 = vmatpush1.bf16.msra.mxu0 0
        %3486 = vmatprep.subr.bf16.mxu0 0
        %3487 = vmatpush1.bf16.msra.mxu0 0
        %3488 = vmatprep.mubr.bf16.mxu0 0
        %3489 = vmatmul.mubr.bf16.gmra.mrb[0].mxu0 %v2922
        %v3490 = vpop.f32.mrb[0].mxu0
        %v3491 = vadd.f32 0.0, %v3490
        %v3492 = vpop.f32.mrb[0].mxu0
        %v3493 = vadd.f32 0.0, %v3492
        %v3494 = vpop.f32.mrb[0].mxu0
        %v3495 = vadd.f32 0.0, %v3494
        %v3496 = vpop.f32.mrb[0].mxu0
        %v3497 = vadd.f32 0.0, %v3496
        %3498 = vmatprep.mubr.bf16.mxu0 0
        %3499 = vmatmul.mubr.bf16.gmra.mrb[0].mxu0 %v2923
        %v3500 = vpop.f32.mrb[0].mxu0
        %v3501 = vadd.f32 0.0, %v3500
        %v3502 = vpop.f32.mrb[0].mxu0
        %v3503 = vadd.f32 0.0, %v3502
        %v3504 = vpop.f32.mrb[0].mxu0
        %v3505 = vadd.f32 0.0, %v3504
        %v3506 = vpop.f32.mrb[0].mxu0
        %v3507 = vadd.f32 0.0, %v3506
        %3508 = vmatprep.mubr.bf16.mxu0 0
        %3509 = vmatmul.mubr.bf16.gmra.mrb[0].mxu0 %v2924
        %v3510 = vpop.f32.mrb[0].mxu0
        %v3511 = vadd.f32 0.0, %v3510
        %v3512 = vpop.f32.mrb[0].mxu0
        %v3513 = vadd.f32 0.0, %v3512
        %v3514 = vpop.f32.mrb[0].mxu0
        %v3515 = vadd.f32 0.0, %v3514
        %v3516 = vpop.f32.mrb[0].mxu0
        %v3517 = vadd.f32 0.0, %v3516
        %3518 = vmatprep.mubr.bf16.mxu0 0
        %3519 = vmatmul.mubr.bf16.gmra.mrb[0].mxu0 %v2925
        %v3520 = vpop.f32.mrb[0].mxu0
        %v3521 = vadd.f32 0.0, %v3520
        %v3522 = vpop.f32.mrb[0].mxu0
        %v3523 = vadd.f32 0.0, %v3522
        %v3524 = vpop.f32.mrb[0].mxu0
        %v3525 = vadd.f32 0.0, %v3524
        %v3526 = vpop.f32.mrb[0].mxu0
        %v3527 = vadd.f32 0.0, %v3526
        %3528 = vdwg.mxu0
        %3529 = vmatprep.subr.bf16.mxu0 %v3189
        %3530 = vmatpush1.bf16.msra.mxu0 %v3188
        %3531 = vmatprep.subr.bf16.mxu0 %v3197
        %3532 = vmatpush1.bf16.msra.mxu0 %v3196
        %3533 = vmatprep.subr.bf16.mxu0 %v3205
        %3534 = vmatpush1.bf16.msra.mxu0 %v3204
        %3535 = vmatprep.subr.bf16.mxu0 %v3213
        %3536 = vmatpush1.bf16.msra.mxu0 %v3212
        %3537 = vmatprep.subr.bf16.mxu0 %v3221
        %3538 = vmatpush1.bf16.msra.mxu0 %v3220
        %3539 = vmatprep.subr.bf16.mxu0 %v3229
        %3540 = vmatpush1.bf16.msra.mxu0 %v3228
        %3541 = vmatprep.subr.bf16.mxu0 %v3237
        %3542 = vmatpush1.bf16.msra.mxu0 %v3236
        %3543 = vmatprep.subr.bf16.mxu0 %v3245
        %3544 = vmatpush1.bf16.msra.mxu0 %v3244
        %3545 = vmatprep.subr.bf16.mxu0 0
        %3546 = vmatpush1.bf16.msra.mxu0 0
        %3547 = vmatprep.subr.bf16.mxu0 0
        %3548 = vmatpush1.bf16.msra.mxu0 0
        %3549 = vmatprep.subr.bf16.mxu0 0
        %3550 = vmatpush1.bf16.msra.mxu0 0
        %3551 = vmatprep.subr.bf16.mxu0 0
        %3552 = vmatpush1.bf16.msra.mxu0 0
        %3553 = vmatprep.subr.bf16.mxu0 0
        %3554 = vmatpush1.bf16.msra.mxu0 0
        %3555 = vmatprep.subr.bf16.mxu0 0
        %3556 = vmatpush1.bf16.msra.mxu0 0
        %3557 = vmatprep.subr.bf16.mxu0 0
        %3558 = vmatpush1.bf16.msra.mxu0 0
        %3559 = vmatprep.subr.bf16.mxu0 0
        %3560 = vmatpush1.bf16.msra.mxu0 0
        %3561 = vmatprep.mubr.bf16.mxu0 0
        %3562 = vmatmul.mubr.bf16.gmra.mrb[0].mxu0 %v2922
        %v3563 = vpop.f32.mrb[0].mxu0
        %v3564 = vadd.f32 0.0, %v3563
        %v3565 = vpop.f32.mrb[0].mxu0
        %v3566 = vadd.f32 0.0, %v3565
        %v3567 = vpop.f32.mrb[0].mxu0
        %v3568 = vadd.f32 0.0, %v3567
        %v3569 = vpop.f32.mrb[0].mxu0
        %v3570 = vadd.f32 0.0, %v3569
        %3571 = vmatprep.mubr.bf16.mxu0 0
        %3572 = vmatmul.mubr.bf16.gmra.mrb[0].mxu0 %v2923
        %v3573 = vpop.f32.mrb[0].mxu0
        %v3574 = vadd.f32 0.0, %v3573
        %v3575 = vpop.f32.mrb[0].mxu0
        %v3576 = vadd.f32 0.0, %v3575
        %v3577 = vpop.f32.mrb[0].mxu0
        %v3578 = vadd.f32 0.0, %v3577
        %v3579 = vpop.f32.mrb[0].mxu0
        %v3580 = vadd.f32 0.0, %v3579
        %3581 = vmatprep.mubr.bf16.mxu0 0
        %3582 = vmatmul.mubr.bf16.gmra.mrb[0].mxu0 %v2924
        %v3583 = vpop.f32.mrb[0].mxu0
        %v3584 = vadd.f32 0.0, %v3583
        %v3585 = vpop.f32.mrb[0].mxu0
        %v3586 = vadd.f32 0.0, %v3585
        %v3587 = vpop.f32.mrb[0].mxu0
        %v3588 = vadd.f32 0.0, %v3587
        %v3589 = vpop.f32.mrb[0].mxu0
        %v3590 = vadd.f32 0.0, %v3589
        %3591 = vmatprep.mubr.bf16.mxu0 0
        %3592 = vmatmul.mubr.bf16.gmra.mrb[0].mxu0 %v2925
        %v3593 = vpop.f32.mrb[0].mxu0
        %v3594 = vadd.f32 0.0, %v3593
        %v3595 = vpop.f32.mrb[0].mxu0
        %v3596 = vadd.f32 0.0, %v3595
        %v3597 = vpop.f32.mrb[0].mxu0
        %v3598 = vadd.f32 0.0, %v3597
        %v3599 = vpop.f32.mrb[0].mxu0
        %v3600 = vadd.f32 0.0, %v3599
        %3601 = vdwg.mxu0
        %v3602 = vpack.c.bf16 %v3349, %v3345
        %v3603 = vpack.c.bf16 %v3351, %v3347
        %v3604 = vpack.c.bf16 %v3422, %v3418
        %v3605 = vpack.c.bf16 %v3424, %v3420
        %v3606 = vpack.c.bf16 %v3495, %v3491
        %v3607 = vpack.c.bf16 %v3497, %v3493
        %v3608 = vpack.c.bf16 %v3568, %v3564
        %v3609 = vpack.c.bf16 %v3570, %v3566
        %v3610 = vpack.c.bf16 %v3359, %v3355
        %v3611 = vpack.c.bf16 %v3361, %v3357
        %v3612 = vpack.c.bf16 %v3432, %v3428
        %v3613 = vpack.c.bf16 %v3434, %v3430
        %v3614 = vpack.c.bf16 %v3505, %v3501
        %v3615 = vpack.c.bf16 %v3507, %v3503
        %v3616 = vpack.c.bf16 %v3578, %v3574
        %v3617 = vpack.c.bf16 %v3580, %v3576
        %v3618 = vpack.c.bf16 %v3369, %v3365
        %v3619 = vpack.c.bf16 %v3371, %v3367
        %v3620 = vpack.c.bf16 %v3442, %v3438
        %v3621 = vpack.c.bf16 %v3444, %v3440
        %v3622 = vpack.c.bf16 %v3515, %v3511
        %v3623 = vpack.c.bf16 %v3517, %v3513
        %v3624 = vpack.c.bf16 %v3588, %v3584
        %v3625 = vpack.c.bf16 %v3590, %v3586
        %v3626 = vpack.c.bf16 %v3379, %v3375
        %v3627 = vpack.c.bf16 %v3381, %v3377
        %v3628 = vpack.c.bf16 %v3452, %v3448
        %v3629 = vpack.c.bf16 %v3454, %v3450
        %v3630 = vpack.c.bf16 %v3525, %v3521
        %v3631 = vpack.c.bf16 %v3527, %v3523
        %v3632 = vpack.c.bf16 %v3598, %v3594
        %v3633 = vpack.c.bf16 %v3600, %v3596
        %v3634 = vunpack.c.l.bf16 %v3602
        %v3635 = vunpack.c.l.bf16 %v3603
        %v3636 = vunpack.c.l.bf16 %v3604
        %v3637 = vunpack.c.l.bf16 %v3605
        %v3638 = vunpack.c.l.bf16 %v3606
        %v3639 = vunpack.c.l.bf16 %v3607
        %v3640 = vunpack.c.l.bf16 %v3608
        %v3641 = vunpack.c.l.bf16 %v3609
        %v3642 = vunpack.c.h.bf16 %v3602
        %v3643 = vunpack.c.h.bf16 %v3603
        %v3644 = vunpack.c.h.bf16 %v3604
        %v3645 = vunpack.c.h.bf16 %v3605
        %v3646 = vunpack.c.h.bf16 %v3606
        %v3647 = vunpack.c.h.bf16 %v3607
        %v3648 = vunpack.c.h.bf16 %v3608
        %v3649 = vunpack.c.h.bf16 %v3609
        %v3650 = vunpack.c.l.bf16 %v3610
        %v3651 = vunpack.c.l.bf16 %v3611
        %v3652 = vunpack.c.l.bf16 %v3612
        %v3653 = vunpack.c.l.bf16 %v3613
        %v3654 = vunpack.c.l.bf16 %v3614
        %v3655 = vunpack.c.l.bf16 %v3615
        %v3656 = vunpack.c.l.bf16 %v3616
        %v3657 = vunpack.c.l.bf16 %v3617
        %v3658 = vunpack.c.h.bf16 %v3610
        %v3659 = vunpack.c.h.bf16 %v3611
        %v3660 = vunpack.c.h.bf16 %v3612
        %v3661 = vunpack.c.h.bf16 %v3613
        %v3662 = vunpack.c.h.bf16 %v3614
        %v3663 = vunpack.c.h.bf16 %v3615
        %v3664 = vunpack.c.h.bf16 %v3616
        %v3665 = vunpack.c.h.bf16 %v3617
        %v3666 = vunpack.c.l.bf16 %v3618
        %v3667 = vunpack.c.l.bf16 %v3619
        %v3668 = vunpack.c.l.bf16 %v3620
        %v3669 = vunpack.c.l.bf16 %v3621
        %v3670 = vunpack.c.l.bf16 %v3622
        %v3671 = vunpack.c.l.bf16 %v3623
        %v3672 = vunpack.c.l.bf16 %v3624
        %v3673 = vunpack.c.l.bf16 %v3625
        %v3674 = vunpack.c.h.bf16 %v3618
        %v3675 = vunpack.c.h.bf16 %v3619
        %v3676 = vunpack.c.h.bf16 %v3620
        %v3677 = vunpack.c.h.bf16 %v3621
        %v3678 = vunpack.c.h.bf16 %v3622
        %v3679 = vunpack.c.h.bf16 %v3623
        %v3680 = vunpack.c.h.bf16 %v3624
        %v3681 = vunpack.c.h.bf16 %v3625
        %v3682 = vunpack.c.l.bf16 %v3626
        %v3683 = vunpack.c.l.bf16 %v3627
        %v3684 = vunpack.c.l.bf16 %v3628
        %v3685 = vunpack.c.l.bf16 %v3629
        %v3686 = vunpack.c.l.bf16 %v3630
        %v3687 = vunpack.c.l.bf16 %v3631
        %v3688 = vunpack.c.l.bf16 %v3632
        %v3689 = vunpack.c.l.bf16 %v3633
        %v3690 = vunpack.c.h.bf16 %v3626
        %v3691 = vunpack.c.h.bf16 %v3627
        %v3692 = vunpack.c.h.bf16 %v3628
        %v3693 = vunpack.c.h.bf16 %v3629
        %v3694 = vunpack.c.h.bf16 %v3630
        %v3695 = vunpack.c.h.bf16 %v3631
        %v3696 = vunpack.c.h.bf16 %v3632
        %v3697 = vunpack.c.h.bf16 %v3633
        %v3698 = vmul.f32 %v3634, %v2554
        %v3699 = vmul.f32 %v3635, %v2555
        %v3700 = vmul.f32 %v3636, %v2556
        %v3701 = vmul.f32 %v3637, %v2557
        %v3702 = vmul.f32 %v3638, %v2558
        %v3703 = vmul.f32 %v3639, %v2559
        %v3704 = vmul.f32 %v3640, %v2560
        %v3705 = vmul.f32 %v3641, %v2561
        %v3706 = vmul.f32 %v3642, %v2562
        %v3707 = vmul.f32 %v3643, %v2563
        %v3708 = vmul.f32 %v3644, %v2564
        %v3709 = vmul.f32 %v3645, %v2565
        %v3710 = vmul.f32 %v3646, %v2566
        %v3711 = vmul.f32 %v3647, %v2567
        %v3712 = vmul.f32 %v3648, %v2568
        %v3713 = vmul.f32 %v3649, %v2569
        %v3714 = vmul.f32 %v3650, %v2570
        %v3715 = vmul.f32 %v3651, %v2571
        %v3716 = vmul.f32 %v3652, %v2572
        %v3717 = vmul.f32 %v3653, %v2573
        %v3718 = vmul.f32 %v3654, %v2574
        %v3719 = vmul.f32 %v3655, %v2575
        %v3720 = vmul.f32 %v3656, %v2576
        %v3721 = vmul.f32 %v3657, %v2577
        %v3722 = vmul.f32 %v3658, %v2578
        %v3723 = vmul.f32 %v3659, %v2579
        %v3724 = vmul.f32 %v3660, %v2580
        %v3725 = vmul.f32 %v3661, %v2581
        %v3726 = vmul.f32 %v3662, %v2582
        %v3727 = vmul.f32 %v3663, %v2583
        %v3728 = vmul.f32 %v3664, %v2584
        %v3729 = vmul.f32 %v3665, %v2585
        %v3730 = vmul.f32 %v3666, %v2586
        %v3731 = vmul.f32 %v3667, %v2587
        %v3732 = vmul.f32 %v3668, %v2588
        %v3733 = vmul.f32 %v3669, %v2589
        %v3734 = vmul.f32 %v3670, %v2590
        %v3735 = vmul.f32 %v3671, %v2591
        %v3736 = vmul.f32 %v3672, %v2592
        %v3737 = vmul.f32 %v3673, %v2593
        %v3738 = vmul.f32 %v3674, %v2594
        %v3739 = vmul.f32 %v3675, %v2595
        %v3740 = vmul.f32 %v3676, %v2596
        %v3741 = vmul.f32 %v3677, %v2597
        %v3742 = vmul.f32 %v3678, %v2598
        %v3743 = vmul.f32 %v3679, %v2599
        %v3744 = vmul.f32 %v3680, %v2600
        %v3745 = vmul.f32 %v3681, %v2601
        %v3746 = vmul.f32 %v3682, %v2602
        %v3747 = vmul.f32 %v3683, %v2603
        %v3748 = vmul.f32 %v3684, %v2604
        %v3749 = vmul.f32 %v3685, %v2605
        %v3750 = vmul.f32 %v3686, %v2606
        %v3751 = vmul.f32 %v3687, %v2607
        %v3752 = vmul.f32 %v3688, %v2608
        %v3753 = vmul.f32 %v3689, %v2609
        %v3754 = vmul.f32 %v3690, %v2610
        %v3755 = vmul.f32 %v3691, %v2611
        %v3756 = vmul.f32 %v3692, %v2612
        %v3757 = vmul.f32 %v3693, %v2613
        %v3758 = vmul.f32 %v3694, %v2614
        %v3759 = vmul.f32 %v3695, %v2615
        %v3760 = vmul.f32 %v3696, %v2616
        %v3761 = vmul.f32 %v3697, %v2617
        %v3762 = vadd.f32 %v3698, %v3702
        %v3763 = vadd.f32 %v3699, %v3703
        %v3764 = vadd.f32 %v3700, %v3704
        %v3765 = vadd.f32 %v3701, %v3705
        %v3766 = vadd.f32 %v3706, %v3710
        %v3767 = vadd.f32 %v3707, %v3711
        %v3768 = vadd.f32 %v3708, %v3712
        %v3769 = vadd.f32 %v3709, %v3713
        %v3770 = vadd.f32 %v3714, %v3718
        %v3771 = vadd.f32 %v3715, %v3719
        %v3772 = vadd.f32 %v3716, %v3720
        %v3773 = vadd.f32 %v3717, %v3721
        %v3774 = vadd.f32 %v3722, %v3726
        %v3775 = vadd.f32 %v3723, %v3727
        %v3776 = vadd.f32 %v3724, %v3728
        %v3777 = vadd.f32 %v3725, %v3729
        %v3778 = vadd.f32 %v3730, %v3734
        %v3779 = vadd.f32 %v3731, %v3735
        %v3780 = vadd.f32 %v3732, %v3736
        %v3781 = vadd.f32 %v3733, %v3737
        %v3782 = vadd.f32 %v3738, %v3742
        %v3783 = vadd.f32 %v3739, %v3743
        %v3784 = vadd.f32 %v3740, %v3744
        %v3785 = vadd.f32 %v3741, %v3745
        %v3786 = vadd.f32 %v3746, %v3750
        %v3787 = vadd.f32 %v3747, %v3751
        %v3788 = vadd.f32 %v3748, %v3752
        %v3789 = vadd.f32 %v3749, %v3753
        %v3790 = vadd.f32 %v3754, %v3758
        %v3791 = vadd.f32 %v3755, %v3759
        %v3792 = vadd.f32 %v3756, %v3760
        %v3793 = vadd.f32 %v3757, %v3761
        %v3794 = vadd.f32 %v3762, %v3764
        %v3795 = vadd.f32 %v3763, %v3765
        %v3796 = vadd.f32 %v3766, %v3768
        %v3797 = vadd.f32 %v3767, %v3769
        %v3798 = vadd.f32 %v3770, %v3772
        %v3799 = vadd.f32 %v3771, %v3773
        %v3800 = vadd.f32 %v3774, %v3776
        %v3801 = vadd.f32 %v3775, %v3777
        %v3802 = vadd.f32 %v3778, %v3780
        %v3803 = vadd.f32 %v3779, %v3781
        %v3804 = vadd.f32 %v3782, %v3784
        %v3805 = vadd.f32 %v3783, %v3785
        %v3806 = vadd.f32 %v3786, %v3788
        %v3807 = vadd.f32 %v3787, %v3789
        %v3808 = vadd.f32 %v3790, %v3792
        %v3809 = vadd.f32 %v3791, %v3793
        %v3810 = vadd.f32 %v3794, %v3795
        %v3811 = vadd.f32 %v3796, %v3797
        %v3812 = vadd.f32 %v3798, %v3799
        %v3813 = vadd.f32 %v3800, %v3801
        %v3814 = vadd.f32 %v3802, %v3803
        %v3815 = vadd.f32 %v3804, %v3805
        %v3816 = vadd.f32 %v3806, %v3807
        %v3817 = vadd.f32 %v3808, %v3809
        %v3818 = vpack.c.bf16 %v3811, %v3810
        %v3819 = vpack.c.bf16 %v3813, %v3812
        %v3820 = vpack.c.bf16 %v3815, %v3814
        %v3821 = vpack.c.bf16 %v3817, %v3816
        %v3822 = vld [vmem:[#allocation8] sm:$0xf]
        %v3823 = vld [vmem:[#allocation8 + $0x4] sm:$0xf]
        %v3824 = vld [vmem:[#allocation8 + $0x8] sm:$0xf]
        %v3825 = vld [vmem:[#allocation8 + $0xc] sm:$0xf]
        %v3826 = vld [vmem:[#allocation8 + $0x10] sm:$0xf]
        %v3827 = vld [vmem:[#allocation8 + $0x14] sm:$0xf]
        %v3828 = vld [vmem:[#allocation8 + $0x18] sm:$0xf]
        %v3829 = vld [vmem:[#allocation8 + $0x1c] sm:$0xf]
        %v3830 = vld [vmem:[#allocation8 + $0x20] sm:$0xf]
        %v3831 = vld [vmem:[#allocation8 + $0x24] sm:$0xf]
        %v3832 = vld [vmem:[#allocation8 + $0x28] sm:$0xf]
        %v3833 = vld [vmem:[#allocation8 + $0x2c] sm:$0xf]
        %v3834 = vld [vmem:[#allocation8 + $0x30] sm:$0xf]
        %v3835 = vld [vmem:[#allocation8 + $0x34] sm:$0xf]
        %v3836 = vld [vmem:[#allocation8 + $0x38] sm:$0xf]
        %v3837 = vld [vmem:[#allocation8 + $0x3c] sm:$0xf]
        %v3838 = vld [vmem:[%s4] sm:$0x1]
        %v3840 = vlaneseq
        %v3841 = vshrl.u32 %v3840, 7
        %v3842 = vsub.s32 0, %v3841
        %v3843 = vrot.slane %v3838, %v3842
        %v3861 = vunpack.c.l.b16 %v3822
        %v3862 = vunpack.c.l.b16 %v3823
        %v3863 = vunpack.c.l.b16 %v3824
        %v3864 = vunpack.c.l.b16 %v3825
        %v3865 = vunpack.c.l.b16 %v3826
        %v3866 = vunpack.c.l.b16 %v3827
        %v3867 = vunpack.c.l.b16 %v3828
        %v3868 = vunpack.c.l.b16 %v3829
        %v3869 = vunpack.c.l.b16 %v3830
        %v3870 = vunpack.c.l.b16 %v3831
        %v3871 = vunpack.c.l.b16 %v3832
        %v3872 = vunpack.c.l.b16 %v3833
        %v3873 = vunpack.c.l.b16 %v3834
        %v3874 = vunpack.c.l.b16 %v3835
        %v3875 = vunpack.c.l.b16 %v3836
        %v3876 = vunpack.c.l.b16 %v3837
        %v3877 = vpack.c.b16 %v3862, %v3861
        %v3878 = vpack.c.b16 %v3864, %v3863
        %v3879 = vpack.c.b16 %v3866, %v3865
        %v3880 = vpack.c.b16 %v3868, %v3867
        %v3881 = vpack.c.b16 %v3870, %v3869
        %v3882 = vpack.c.b16 %v3872, %v3871
        %v3883 = vpack.c.b16 %v3874, %v3873
        %v3884 = vpack.c.b16 %v3876, %v3875
        %3893 = vmatprep.subr.bf16.mxu0 0
        %3894 = vmatpush1.bf16.msra.mxu0 %v3877
        %3895 = vmatprep.subr.bf16.mxu0 0
        %3896 = vmatpush1.bf16.msra.mxu0 %v3878
        %3897 = vmatprep.subr.bf16.mxu0 0
        %3898 = vmatpush1.bf16.msra.mxu0 %v3879
        %3899 = vmatprep.subr.bf16.mxu0 0
        %3900 = vmatpush1.bf16.msra.mxu0 %v3880
        %3901 = vmatprep.subr.bf16.mxu0 0
        %3902 = vmatpush1.bf16.msra.mxu0 %v3881
        %3903 = vmatprep.subr.bf16.mxu0 0
        %3904 = vmatpush1.bf16.msra.mxu0 %v3882
        %3905 = vmatprep.subr.bf16.mxu0 0
        %3906 = vmatpush1.bf16.msra.mxu0 %v3883
        %3907 = vmatprep.subr.bf16.mxu0 0
        %3908 = vmatpush1.bf16.msra.mxu0 %v3884
        %3909 = vmatprep.subr.bf16.mxu0 0
        %3910 = vmatpush1.bf16.msra.mxu0 0
        %3911 = vmatprep.subr.bf16.mxu0 0
        %3912 = vmatpush1.bf16.msra.mxu0 0
        %3913 = vmatprep.subr.bf16.mxu0 0
        %3914 = vmatpush1.bf16.msra.mxu0 0
        %3915 = vmatprep.subr.bf16.mxu0 0
        %3916 = vmatpush1.bf16.msra.mxu0 0
        %3917 = vmatprep.subr.bf16.mxu0 0
        %3918 = vmatpush1.bf16.msra.mxu0 0
        %3919 = vmatprep.subr.bf16.mxu0 0
        %3920 = vmatpush1.bf16.msra.mxu0 0
        %3921 = vmatprep.subr.bf16.mxu0 0
        %3922 = vmatpush1.bf16.msra.mxu0 0
        %3923 = vmatprep.subr.bf16.mxu0 0
        %3924 = vmatpush1.bf16.msra.mxu0 0
        %3925 = vmatprep.mubr.bf16.mxu0 0
        %3926 = vmatmul.mubr.bf16.gmra.mrb[0].mxu0 %v3818
        %v3927 = vpop.f32.mrb[0].mxu0
        %v3928 = vadd.f32 %v3843, %v3927
        %v3929 = vpop.f32.mrb[0].mxu0
        %v3930 = vpop.f32.mrb[0].mxu0
        %v3931 = vadd.f32 %v3843, %v3930
        %v3932 = vpop.f32.mrb[0].mxu0
        %3933 = vmatprep.mubr.bf16.mxu0 0
        %3934 = vmatmul.mubr.bf16.gmra.mrb[0].mxu0 %v3819
        %v3935 = vpop.f32.mrb[0].mxu0
        %v3936 = vadd.f32 %v3843, %v3935
        %v3937 = vpop.f32.mrb[0].mxu0
        %v3938 = vpop.f32.mrb[0].mxu0
        %v3939 = vadd.f32 %v3843, %v3938
        %v3940 = vpop.f32.mrb[0].mxu0
        %3941 = vmatprep.mubr.bf16.mxu0 0
        %3942 = vmatmul.mubr.bf16.gmra.mrb[0].mxu0 %v3820
        %v3943 = vpop.f32.mrb[0].mxu0
        %v3944 = vadd.f32 %v3843, %v3943
        %v3945 = vpop.f32.mrb[0].mxu0
        %v3946 = vpop.f32.mrb[0].mxu0
        %v3947 = vadd.f32 %v3843, %v3946
        %v3948 = vpop.f32.mrb[0].mxu0
        %3949 = vmatprep.mubr.bf16.mxu0 0
        %3950 = vmatmul.mubr.bf16.gmra.mrb[0].mxu0 %v3821
        %v3951 = vpop.f32.mrb[0].mxu0
        %v3952 = vadd.f32 %v3843, %v3951
        %v3953 = vpop.f32.mrb[0].mxu0
        %v3954 = vpop.f32.mrb[0].mxu0
        %v3955 = vadd.f32 %v3843, %v3954
        %v3956 = vpop.f32.mrb[0].mxu0
        %3957 = vdwg.mxu0
        %3958 = vst [vmem:[%s286] sm:$0xff] %v3928
        %3959 = vst [vmem:[%s286 + $0x8] sm:$0xff] %v3931
        %3960 = vst [vmem:[%s286 + $0x10] sm:$0xff] %v3936
        %3961 = vst [vmem:[%s286 + $0x18] sm:$0xff] %v3939
        %3962 = vst [vmem:[%s286 + $0x20] sm:$0xff] %v3944
        %3963 = vst [vmem:[%s286 + $0x28] sm:$0xff] %v3947
        %3964 = vst [vmem:[%s286 + $0x30] sm:$0xff] %v3952
        %3965 = vst [vmem:[%s286 + $0x38] sm:$0xff] %v3955
        %s3966 = sand.u32 %s142, 1
        %s3967 = scalar_lea.sflag [#allocation4], %s3966
        %s3968 = sand.u32 %s142, 1
        %s3969 = smul.addr %s3968, 64
        %s3970 = scalar_lea.vmem [#allocation10], %s3969
        // Predicated region
        $region57: #{tpu_custom_call.1} parent=39 // pred_check
          %p3971 = pneg %p152
        $region58: #{tpu_custom_call.1} parent=39 // pred_check_branch
          %3973 = sbr.rel (%p3971) target = $region60
        $region59: #{tpu_custom_call.1} parent=39 // pred_region
          %s3974 = smul.u32 8, %s24
          %s3976 = ssub.s32 1024, 1024
          %3977 = vsyncadd %s3967, %s3976
          %s3978 = smul.addr %s3974, 128
          %s3979 = scalar_lea.hbm %s5, %s3978
          %s3980 = sshll.u32 %s3970, 4
          %s3981 = int_to_ptr.vmem [resolvable:$true] %s3980
          %3986 = dma.vmem_to_hbm [thread:$0]  %s3981, 1024, %s3979, %s3967, 128, 128, 8
        $region60: #{tpu_custom_call.1} parent=39 // pred_fallthru
          _
      $region40: #{tpu_custom_call.1} parent=5 // pred_fallthru
        _
      %p3987 = scmp.le.s32.totalorder 2, %s19
      // Predicated region
      $region61: #{tpu_custom_call.1} parent=5 // pred_check
        %p3988 = pneg %p3987
      $region62: #{tpu_custom_call.1} parent=5 // pred_check_branch
        %3990 = sbr.rel (%p3988) target = $region64
      $region63: #{tpu_custom_call.1} parent=5 // pred_region
        %s3991 = ssub.s32 %s19, 2
        // Predicated region
        $region65: #{tpu_custom_call.1} parent=63 // pred_check
          %p3992 = pneg %p158
        $region66: #{tpu_custom_call.1} parent=63 // pred_check_branch
          %3994 = sbr.rel (%p3992) target = $region68
        $region67: #{tpu_custom_call.1} parent=63 // pred_region
          %s3995 = sand.u32 %s143, 1
          %s3996 = scalar_lea.sflag [#allocation4], %s3995
          %s3997 = sand.u32 %s143, 1
          %s3998 = smul.addr %s3997, 64
          %s3999 = scalar_lea.vmem [#allocation10], %s3998
          %4000 = dma.done %s3996, 1024
        $region68: #{tpu_custom_call.1} parent=63 // pred_fallthru
          _
      $region64: #{tpu_custom_call.1} parent=5 // pred_fallthru
        _
    $region6: #{tpu_custom_call.1} parent=1 // loop_footer
      %s23 = sadd.s32 1, %s19
    $region7: #{tpu_custom_call.1} parent=1 // loop_footer_branch
      %18 = sbr.rel target = $region3
    $region8: #{tpu_custom_call.1} parent=1 // loop_exit
      _
    %4001 = vsyncpa [#allocation3], 1
    %s4002 = scalar_lea.sflag [#allocation3], 1
    %4003 = vsyncpa %s4002, 1
    %4004 = vsyncpa [#allocation6], 1
    %4005 = vsyncpa [#allocation9], 1
    %4006 = vsyncpa [#allocation4], 1
    %s4007 = scalar_lea.sflag [#allocation4], 1
    %4008 = vsyncpa %s4007, 1

</llo_original>
